<compile_context>
chip_gen: v7x
topology: tpu7x:2x2x1
jax: 0.10.0
libtpu: 0.0.40
codegen_flags: <defaults>
</compile_context>

<pallas_src>
import math

import jax
import jax.numpy as jnp
from jax.experimental import pallas as pl
from jax.experimental.pallas import tpu as pltpu

# ---------------- model hyper-parameters (small, deterministic) ----------------
N_LAYER = 2
HIDDEN = 32
INTERMEDIATE = 64
NUM_HEADS = 4
HEAD_DIM = HIDDEN // NUM_HEADS
BATCH = 2
SEQ = 8

# MXU operand dtype.  jnp.float32 matches the PyTorch module bit-for-bit in structure;
# use jnp.bfloat16 on v6e/v7x for ~2x MXU rate and half the weight/activation DMA bytes.
MM_DTYPE = jnp.float32

# row indices inside the packed per-layer "vec" parameter block (shape (6, H))
_BO, _G1, _BE1, _B2, _G2, _BE2 = range(6)


def _layer_norm(x, g, b, eps=1e-12):
    # matches torch LayerNorm in the module (biased variance); rsqrt -> EUP slot
    u = jnp.mean(x, axis=-1, keepdims=True)
    s = jnp.mean((x - u) ** 2, axis=-1, keepdims=True)
    return g * ((x - u) * jax.lax.rsqrt(s + eps)) + b


# ------------------------------- Pallas kernel --------------------------------
def fused_encoder_kernel(
    x_ref, mask_ref,            # activations / additive mask
    wqkv_ref, bqkv_ref,         # (1, 3*NH, H, HD), (1, 3*NH, 1, HD)   head-major QKV
    wo_ref, vec_ref,            # (1, NH, HD, H),   (1, 6, H)
    wi_ref, bi_ref, w2_ref,     # (1, H, I), (1, 1, I), (1, I, H)
    out_ref,                    # (B*S, H)
    h_ref,                      # VMEM scratch: hidden state carried across layers
):
    layer = pl.program_id(0)
    bh = BATCH * NUM_HEADS
    inv_sqrt_d = 1.0 / math.sqrt(HEAD_DIM)

    @pl.when(layer == 0)
    def _():
        h_ref[...] = x_ref[...]

    h = h_ref[...]                      # (B*S, H) f32
    mask = mask_ref[...]                # (B*NH, 1, S) additive

    wqkv = wqkv_ref[0]                  # (3*NH, H, HD)
    bqkv = bqkv_ref[0]                  # (3*NH, 1, HD)
    wo_h = wo_ref[0]                    # (NH, HD, H)
    vec = vec_ref[0]                    # (6, H)

    def bcast_b(t):
        # replicate a per-head tensor over the batch: (NH, ...) -> (B*NH, ...)
        return jnp.broadcast_to(t[None], (BATCH,) + t.shape).reshape(
            (bh,) + t.shape[1:])

    # hidden state replicated per head (major-axis broadcast only, no relayout):
    # (B*S, H) -> (B*NH, S, H)
    hb = jnp.broadcast_to(
        h.reshape(BATCH, 1, SEQ, HIDDEN), (BATCH, NUM_HEADS, SEQ, HIDDEN)
    ).reshape(bh, SEQ, HIDDEN)

    # ---- SelfAttention (heads as a leading batch dim) ----
    def qkv_proj(i):
        w = bcast_b(wqkv[i * NUM_HEADS:(i + 1) * NUM_HEADS])    # (B*NH, H, HD)
        b = bcast_b(bqkv[i * NUM_HEADS:(i + 1) * NUM_HEADS])    # (B*NH, 1, HD)
        y = jnp.einsum("bsh,bhd->bsd", hb.astype(MM_DTYPE), w.astype(MM_DTYPE),
                       preferred_element_type=jnp.float32)
        return y + b

    qh, kh, vh = qkv_proj(0), qkv_proj(1), qkv_proj(2)          # (B*NH, S, HD)

    # scores: contract last dims of both operands (no explicit transpose)
    scores = jnp.einsum("bqd,bkd->bqk", qh.astype(MM_DTYPE), kh.astype(MM_DTYPE),
                        preferred_element_type=jnp.float32)
    scores = scores * inv_sqrt_d + mask                          # (B*NH, S, S)

    m = jnp.max(scores, axis=-1, keepdims=True)
    e = jnp.exp(scores - m)
    probs = e * pl.reciprocal(jnp.sum(e, axis=-1, keepdims=True), approx=True)
    # TODO(synk): attention_probs dropout omitted (eval-mode identity).

    ctx = jnp.einsum("bqk,bkd->bqd", probs.astype(MM_DTYPE), vh.astype(MM_DTYPE),
                     preferred_element_type=jnp.float32)         # (B*NH, S, HD)

    # ---- SelfOutput: fused head-merge + dense (sum_h ctx_h @ Wo_h) + residual + LN ----
    attn = jnp.einsum("bsd,bdh->bsh", ctx.astype(MM_DTYPE),
                      bcast_b(wo_h).astype(MM_DTYPE),
                      preferred_element_type=jnp.float32)        # (B*NH, S, H)
    attn = jnp.sum(attn.reshape(BATCH, NUM_HEADS, SEQ, HIDDEN), axis=1)
    attn = attn.reshape(BATCH * SEQ, HIDDEN) + vec[_BO:_BO + 1]
    h1 = _layer_norm(attn + h, vec[_G1:_G1 + 1], vec[_BE1:_BE1 + 1])

    # ---- Intermediate (dense + relu) and Output (dense + residual + LN) ----
    inter = jnp.maximum(
        jnp.dot(h1.astype(MM_DTYPE), wi_ref[0].astype(MM_DTYPE),
                preferred_element_type=jnp.float32) + bi_ref[0], 0.0)
    out = jnp.dot(inter.astype(MM_DTYPE), w2_ref[0].astype(MM_DTYPE),
                  preferred_element_type=jnp.float32) + vec[_B2:_B2 + 1]
    h2 = _layer_norm(out + h1, vec[_G2:_G2 + 1], vec[_BE2:_BE2 + 1])

    # carry hidden state to the next layer; write HBM output only once, at the end
    h_ref[...] = h2

    @pl.when(layer == pl.num_programs(0) - 1)
    def _():
        out_ref[...] = h2


# ------------------------------- wrapper / call --------------------------------
def pack_layer(p):
    """Pack one layer's params into head-major / stacked blocks."""
    def head_major(w):  # (H, H) -> (NH, H, HD)
        return w.reshape(HIDDEN, NUM_HEADS, HEAD_DIM).transpose(1, 0, 2)

    w_qkv = jnp.concatenate(
        [head_major(p["wq"]), head_major(p["wk"]), head_major(p["wv"])], axis=0)
    b_qkv = jnp.concatenate(
        [p["bq"].reshape(NUM_HEADS, 1, HEAD_DIM),
         p["bk"].reshape(NUM_HEADS, 1, HEAD_DIM),
         p["bv"].reshape(NUM_HEADS, 1, HEAD_DIM)], axis=0)
    w_o = p["wo"].reshape(NUM_HEADS, HEAD_DIM, HIDDEN)
    vec = jnp.stack([p["bo"], p["ln1_g"], p["ln1_b"],
                     p["b2"], p["ln2_g"], p["ln2_b"]])
    return (w_qkv, b_qkv, w_o, vec,
            p["wi"], p["bi"].reshape(1, INTERMEDIATE), p["w2"])


def pack_params(all_params):
    per_layer = [pack_layer(p) for p in all_params]
    return tuple(jnp.stack([layer[i] for layer in per_layer]) for i in range(7))


@jax.jit
def encoder_multiple_layers(x, mask, w_qkv, b_qkv, w_o, vec, w_i, b_i, w_2):
    """Encoder_MultipleLayers.forward.  x: (B,S,H) f32; mask: (B,1,S) additive."""
    B, S, H = x.shape
    L = w_qkv.shape[0]
    BS, BH = B * S, B * NUM_HEADS

    x2 = x.reshape(BS, H)                                  # fold batch into sublanes
    mask_bh = jnp.repeat(mask, NUM_HEADS, axis=0)          # (B*NH, 1, S)

    out2 = pl.pallas_call(
        fused_encoder_kernel,
        out_shape=jax.ShapeDtypeStruct((BS, H), jnp.float32),
        grid_spec=pltpu.PrefetchScalarGridSpec(
            num_scalar_prefetch=0,
            grid=(L,),
            in_specs=[
                pl.BlockSpec((BS, H), lambda l: (0, 0)),                         # x (layer-resident)
                pl.BlockSpec((BH, 1, S), lambda l: (0, 0, 0)),                   # mask
                pl.BlockSpec((1, 3 * NUM_HEADS, H, HEAD_DIM), lambda l: (l, 0, 0, 0)),
                pl.BlockSpec((1, 3 * NUM_HEADS, 1, HEAD_DIM), lambda l: (l, 0, 0, 0)),
                pl.BlockSpec((1, NUM_HEADS, HEAD_DIM, H), lambda l: (l, 0, 0, 0)),
                pl.BlockSpec((1, 6, H), lambda l: (l, 0, 0)),
                pl.BlockSpec((1, H, INTERMEDIATE), lambda l: (l, 0, 0)),
                pl.BlockSpec((1, 1, INTERMEDIATE), lambda l: (l, 0, 0)),
                pl.BlockSpec((1, INTERMEDIATE, H), lambda l: (l, 0, 0)),
            ],
            out_specs=pl.BlockSpec((BS, H), lambda l: (0, 0)),                   # single HBM writeback
            scratch_shapes=[pltpu.VMEM((BS, H), jnp.float32)],                   # carried hidden state
        ),
        compiler_params=pltpu.CompilerParams(
            dimension_semantics=("arbitrary",),   # layers are sequential (carried state)
        ),
    )(x2, mask_bh, w_qkv, b_qkv, w_o, vec, w_i, b_i, w_2)

    return out2.reshape(B, S, H)


# ------------------------- pure-JAX reference (for check) ----------------------
def _ref_forward(x, mask, all_params):
    def ln(t, g, b):
        u = t.mean(-1, keepdims=True)
        s = ((t - u) ** 2).mean(-1, keepdims=True)
        return g * ((t - u) / jnp.sqrt(s + 1e-12)) + b

    for p in all_params:
        q = x @ p["wq"] + p["bq"]
        k = x @ p["wk"] + p["bk"]
        v = x @ p["wv"] + p["bv"]

        def split(t):  # (B,S,H) -> (B,nh,S,hd)
            B, S, _ = t.shape
            return t.reshape(B, S, NUM_HEADS, HEAD_DIM).transpose(0, 2, 1, 3)

        qh, kh, vh = split(q), split(k), split(v)
        scores = jnp.einsum("bhqd,bhkd->bhqk", qh, kh) / math.sqrt(HEAD_DIM)
        scores = scores + mask[:, None, :, :]
        probs = jax.nn.softmax(scores, axis=-1)
        ctx = jnp.einsum("bhqk,bhkd->bhqd", probs, vh)
        B, _, S, _ = ctx.shape
        ctx = ctx.transpose(0, 2, 1, 3).reshape(B, S, HIDDEN)

        attn = ctx @ p["wo"] + p["bo"]
        h1 = ln(attn + x, p["ln1_g"], p["ln1_b"])
        inter = jax.nn.relu(h1 @ p["wi"] + p["bi"])
        out = inter @ p["w2"] + p["b2"]
        x = ln(out + h1, p["ln2_g"], p["ln2_b"])
    return x


# ------------------------------ param construction -----------------------------
def make_params(key):
    ks = jax.random.split(key, 8)
    scale = 0.05
    return {
        "wq": scale * jax.random.normal(ks[0], (HIDDEN, HIDDEN), jnp.float32),
        "bq": jnp.zeros((HIDDEN,), jnp.float32),
        "wk": scale * jax.random.normal(ks[1], (HIDDEN, HIDDEN), jnp.float32),
        "bk": jnp.zeros((HIDDEN,), jnp.float32),
        "wv": scale * jax.random.normal(ks[2], (HIDDEN, HIDDEN), jnp.float32),
        "bv": jnp.zeros((HIDDEN,), jnp.float32),
        "wo": scale * jax.random.normal(ks[3], (HIDDEN, HIDDEN), jnp.float32),
        "bo": scale * jax.random.normal(ks[4], (HIDDEN,), jnp.float32),
        "ln1_g": jnp.ones((HIDDEN,), jnp.float32),
        "ln1_b": jnp.zeros((HIDDEN,), jnp.float32),
        "wi": scale * jax.random.normal(ks[5], (HIDDEN, INTERMEDIATE), jnp.float32),
        "bi": jnp.zeros((INTERMEDIATE,), jnp.float32),
        "w2": scale * jax.random.normal(ks[6], (INTERMEDIATE, HIDDEN), jnp.float32),
        "b2": scale * jax.random.normal(ks[7], (HIDDEN,), jnp.float32),
        "ln2_g": jnp.ones((HIDDEN,), jnp.float32),
        "ln2_b": jnp.zeros((HIDDEN,), jnp.float32),
    }


if __name__ == "__main__":
    root = jax.random.PRNGKey(0)
    k_x, k_m, k_p = jax.random.split(root, 3)

    # inputs
    x = jax.random.normal(k_x, (BATCH, SEQ, HIDDEN), jnp.float32)
    # additive attention mask: 0 for valid, -10000 for masked-out key positions
    valid = (jax.random.uniform(k_m, (BATCH, 1, SEQ)) > 0.2).astype(jnp.float32)
    mask = (1.0 - valid) * -10000.0

    # per-layer params (the module deep-copies one layer; distinct deterministic
    # weights per layer are equally valid for a synthetic kernel)
    layer_keys = jax.random.split(k_p, N_LAYER)
    all_params = [make_params(k) for k in layer_keys]
    packed = pack_params(all_params)

    out = encoder_multiple_layers(x, mask, *packed)
    out = jax.block_until_ready(out)

    ref = _ref_forward(x, mask, all_params)
    assert out.shape == (BATCH, SEQ, HIDDEN)
    # tolerance 2e-3: the kernel uses the EUP approximate reciprocal in the softmax
    # (pl.reciprocal(..., approx=True)); all other math is exact f32.
    err = float(jnp.max(jnp.abs(out - ref)))
    assert jnp.allclose(out, ref, rtol=2e-3, atol=2e-3), f"mismatch vs reference, max err {err}"

    print("KERNEL_OK")
</pallas_src>

<mosaic_0001>
module attributes {stable_mosaic.version = 11 : i64} {
  func.func @fused_encoder_kernel(%arg0: i32, %arg1: memref<16x32xf32, #tpu.memory_space<vmem>>, %arg2: memref<8x1x8xf32, #tpu.memory_space<vmem>>, %arg3: memref<1x12x32x8xf32, #tpu.memory_space<vmem>>, %arg4: memref<1x12x1x8xf32, #tpu.memory_space<vmem>>, %arg5: memref<1x4x8x32xf32, #tpu.memory_space<vmem>>, %arg6: memref<1x6x32xf32, #tpu.memory_space<vmem>>, %arg7: memref<1x32x64xf32, #tpu.memory_space<vmem>>, %arg8: memref<1x1x64xf32, #tpu.memory_space<vmem>>, %arg9: memref<1x64x32xf32, #tpu.memory_space<vmem>>, %arg10: memref<16x32xf32, #tpu.memory_space<vmem>>, %arg11: memref<16x32xf32, #tpu.memory_space<vmem>>) attributes {dimension_semantics = [#tpu.dimension_semantics<arbitrary>], iteration_bounds = array<i64: 2>, scalar_prefetch = 0 : i64, scratch_operands = 1 : i64, tpu.core_type = #tpu.core_type<tc>, window_params = [{pipeline_mode = #tpu.pipeline_mode<synchronous>, transform_indices = @transform_0, window_bounds = array<i64: 16, 32>}, {pipeline_mode = #tpu.pipeline_mode<synchronous>, transform_indices = @transform_1, window_bounds = array<i64: 8, 1, 8>}, {transform_indices = @transform_2, window_bounds = array<i64: 1, 12, 32, 8>}, {transform_indices = @transform_3, window_bounds = array<i64: 1, 12, 1, 8>}, {transform_indices = @transform_4, window_bounds = array<i64: 1, 4, 8, 32>}, {transform_indices = @transform_5, window_bounds = array<i64: 1, 6, 32>}, {transform_indices = @transform_6, window_bounds = array<i64: 1, 32, 64>}, {transform_indices = @transform_7, window_bounds = array<i64: 1, 1, 64>}, {transform_indices = @transform_8, window_bounds = array<i64: 1, 64, 32>}, {pipeline_mode = #tpu.pipeline_mode<synchronous>, transform_indices = @transform_9, window_bounds = array<i64: 16, 32>}]} {
    %c0_i32 = arith.constant 0 : i32
    %0 = arith.cmpi eq, %arg0, %c0_i32 : i32
    %1 = arith.extui %0 : i1 to i32
    %c0_i32_0 = arith.constant 0 : i32
    %2 = arith.cmpi ne, %1, %c0_i32_0 : i32
    scf.if %2 {
      %c0_54 = arith.constant 0 : index
      %c0_55 = arith.constant 0 : index
      %152 = vector.load %arg1[%c0_54, %c0_55] : memref<16x32xf32, #tpu.memory_space<vmem>>, vector<16x32xf32>
      %c0_56 = arith.constant 0 : index
      %c0_57 = arith.constant 0 : index
      %153 = vector.load %arg11[%c0_56, %c0_57] : memref<16x32xf32, #tpu.memory_space<vmem>>, vector<16x32xf32>
      tpu.vector_store %arg11[%c0_56, %c0_57], %152 {strides = array<i32>} : memref<16x32xf32, #tpu.memory_space<vmem>>, vector<16x32xf32>,
    } else {
    }
    %c0 = arith.constant 0 : index
    %c0_1 = arith.constant 0 : index
    %3 = vector.load %arg11[%c0, %c0_1] : memref<16x32xf32, #tpu.memory_space<vmem>>, vector<16x32xf32>
    %c0_2 = arith.constant 0 : index
    %c0_3 = arith.constant 0 : index
    %c0_4 = arith.constant 0 : index
    %4 = vector.load %arg2[%c0_2, %c0_3, %c0_4] : memref<8x1x8xf32, #tpu.memory_space<vmem>>, vector<8x1x8xf32>
    %c0_5 = arith.constant 0 : index
    %c0_6 = arith.constant 0 : index
    %c0_7 = arith.constant 0 : index
    %c0_8 = arith.constant 0 : index
    %5 = vector.load %arg3[%c0_5, %c0_6, %c0_7, %c0_8] : memref<1x12x32x8xf32, #tpu.memory_space<vmem>>, vector<1x12x32x8xf32>
    %6 = vector.shape_cast %5 : vector<1x12x32x8xf32> to vector<12x32x8xf32>
    %c0_9 = arith.constant 0 : index
    %c0_10 = arith.constant 0 : index
    %c0_11 = arith.constant 0 : index
    %c0_12 = arith.constant 0 : index
    %7 = vector.load %arg4[%c0_9, %c0_10, %c0_11, %c0_12] : memref<1x12x1x8xf32, #tpu.memory_space<vmem>>, vector<1x12x1x8xf32>
    %8 = vector.shape_cast %7 : vector<1x12x1x8xf32> to vector<12x1x8xf32>
    %c0_13 = arith.constant 0 : index
    %c0_14 = arith.constant 0 : index
    %c0_15 = arith.constant 0 : index
    %c0_16 = arith.constant 0 : index
    %9 = vector.load %arg5[%c0_13, %c0_14, %c0_15, %c0_16] : memref<1x4x8x32xf32, #tpu.memory_space<vmem>>, vector<1x4x8x32xf32>
    %10 = vector.shape_cast %9 : vector<1x4x8x32xf32> to vector<4x8x32xf32>
    %c0_17 = arith.constant 0 : index
    %c0_18 = arith.constant 0 : index
    %c0_19 = arith.constant 0 : index
    %11 = vector.load %arg6[%c0_17, %c0_18, %c0_19] : memref<1x6x32xf32, #tpu.memory_space<vmem>>, vector<1x6x32xf32>
    %12 = vector.shape_cast %11 : vector<1x6x32xf32> to vector<6x32xf32>
    %13 = vector.shape_cast %3 : vector<16x32xf32> to vector<2x1x8x32xf32>
    %14 = vector.shape_cast %13 : vector<2x1x8x32xf32> to vector<2x1x8x32xf32>
    %15 = vector.broadcast %14 : vector<2x1x8x32xf32> to vector<2x4x8x32xf32>
    %16 = vector.shape_cast %15 : vector<2x4x8x32xf32> to vector<8x8x32xf32>
    %17 = vector.extract_strided_slice %6 {offsets = [0, 0, 0], sizes = [4, 32, 8], strides = [1, 1, 1]} : vector<12x32x8xf32> to vector<4x32x8xf32>
    %18 = vector.shape_cast %17 : vector<4x32x8xf32> to vector<1x4x32x8xf32>
    %19 = vector.shape_cast %18 : vector<1x4x32x8xf32> to vector<1x4x32x8xf32>
    %20 = vector.broadcast %19 : vector<1x4x32x8xf32> to vector<2x4x32x8xf32>
    %21 = vector.shape_cast %20 : vector<2x4x32x8xf32> to vector<8x32x8xf32>
    %22 = vector.extract_strided_slice %8 {offsets = [0, 0, 0], sizes = [4, 1, 8], strides = [1, 1, 1]} : vector<12x1x8xf32> to vector<4x1x8xf32>
    %23 = vector.shape_cast %22 : vector<4x1x8xf32> to vector<1x4x1x8xf32>
    %24 = vector.shape_cast %23 : vector<1x4x1x8xf32> to vector<1x4x1x8xf32>
    %25 = vector.broadcast %24 : vector<1x4x1x8xf32> to vector<2x4x1x8xf32>
    %26 = vector.shape_cast %25 : vector<2x4x1x8xf32> to vector<8x1x8xf32>
    "tpu.trace_start"() <{level = 10 : i32, message = "bsh,bhd->bsd"}> : () -> ()
    %cst = arith.constant dense<0.000000e+00> : vector<8x8x8xf32>
    %27 = tpu.matmul %16, %21, %cst {dimension_numbers = #tpu.dot_dimension_numbers<[2], [1], [1], [2], [0, 0, 0, 1, 1, 2], [0], [0]>} : vector<8x8x32xf32>, vector<8x32x8xf32>, vector<8x8x8xf32> -> vector<8x8x8xf32>
    "tpu.trace_stop"() : () -> ()
    %28 = vector.broadcast %26 : vector<8x1x8xf32> to vector<8x8x8xf32>
    %29 = arith.addf %27, %28 : vector<8x8x8xf32>
    %30 = vector.extract_strided_slice %6 {offsets = [4, 0, 0], sizes = [4, 32, 8], strides = [1, 1, 1]} : vector<12x32x8xf32> to vector<4x32x8xf32>
    %31 = vector.shape_cast %30 : vector<4x32x8xf32> to vector<1x4x32x8xf32>
    %32 = vector.shape_cast %31 : vector<1x4x32x8xf32> to vector<1x4x32x8xf32>
    %33 = vector.broadcast %32 : vector<1x4x32x8xf32> to vector<2x4x32x8xf32>
    %34 = vector.shape_cast %33 : vector<2x4x32x8xf32> to vector<8x32x8xf32>
    %35 = vector.extract_strided_slice %8 {offsets = [4, 0, 0], sizes = [4, 1, 8], strides = [1, 1, 1]} : vector<12x1x8xf32> to vector<4x1x8xf32>
    %36 = vector.shape_cast %35 : vector<4x1x8xf32> to vector<1x4x1x8xf32>
    %37 = vector.shape_cast %36 : vector<1x4x1x8xf32> to vector<1x4x1x8xf32>
    %38 = vector.broadcast %37 : vector<1x4x1x8xf32> to vector<2x4x1x8xf32>
    %39 = vector.shape_cast %38 : vector<2x4x1x8xf32> to vector<8x1x8xf32>
    "tpu.trace_start"() <{level = 10 : i32, message = "bsh,bhd->bsd"}> : () -> ()
    %cst_20 = arith.constant dense<0.000000e+00> : vector<8x8x8xf32>
    %40 = tpu.matmul %16, %34, %cst_20 {dimension_numbers = #tpu.dot_dimension_numbers<[2], [1], [1], [2], [0, 0, 0, 1, 1, 2], [0], [0]>} : vector<8x8x32xf32>, vector<8x32x8xf32>, vector<8x8x8xf32> -> vector<8x8x8xf32>
    "tpu.trace_stop"() : () -> ()
    %41 = vector.broadcast %39 : vector<8x1x8xf32> to vector<8x8x8xf32>
    %42 = arith.addf %40, %41 : vector<8x8x8xf32>
    %43 = vector.extract_strided_slice %6 {offsets = [8, 0, 0], sizes = [4, 32, 8], strides = [1, 1, 1]} : vector<12x32x8xf32> to vector<4x32x8xf32>
    %44 = vector.shape_cast %43 : vector<4x32x8xf32> to vector<1x4x32x8xf32>
    %45 = vector.shape_cast %44 : vector<1x4x32x8xf32> to vector<1x4x32x8xf32>
    %46 = vector.broadcast %45 : vector<1x4x32x8xf32> to vector<2x4x32x8xf32>
    %47 = vector.shape_cast %46 : vector<2x4x32x8xf32> to vector<8x32x8xf32>
    %48 = vector.extract_strided_slice %8 {offsets = [8, 0, 0], sizes = [4, 1, 8], strides = [1, 1, 1]} : vector<12x1x8xf32> to vector<4x1x8xf32>
    %49 = vector.shape_cast %48 : vector<4x1x8xf32> to vector<1x4x1x8xf32>
    %50 = vector.shape_cast %49 : vector<1x4x1x8xf32> to vector<1x4x1x8xf32>
    %51 = vector.broadcast %50 : vector<1x4x1x8xf32> to vector<2x4x1x8xf32>
    %52 = vector.shape_cast %51 : vector<2x4x1x8xf32> to vector<8x1x8xf32>
    "tpu.trace_start"() <{level = 10 : i32, message = "bsh,bhd->bsd"}> : () -> ()
    %cst_21 = arith.constant dense<0.000000e+00> : vector<8x8x8xf32>
    %53 = tpu.matmul %16, %47, %cst_21 {dimension_numbers = #tpu.dot_dimension_numbers<[2], [1], [1], [2], [0, 0, 0, 1, 1, 2], [0], [0]>} : vector<8x8x32xf32>, vector<8x32x8xf32>, vector<8x8x8xf32> -> vector<8x8x8xf32>
    "tpu.trace_stop"() : () -> ()
    %54 = vector.broadcast %52 : vector<8x1x8xf32> to vector<8x8x8xf32>
    %55 = arith.addf %53, %54 : vector<8x8x8xf32>
    "tpu.trace_start"() <{level = 10 : i32, message = "bqd,bkd->bqk"}> : () -> ()
    %cst_22 = arith.constant dense<0.000000e+00> : vector<8x8x8xf32>
    %56 = tpu.matmul %29, %42, %cst_22 {dimension_numbers = #tpu.dot_dimension_numbers<[2], [2], [1], [1], [0, 0, 0, 1, 1, 1], [0], [0]>} : vector<8x8x8xf32>, vector<8x8x8xf32>, vector<8x8x8xf32> -> vector<8x8x8xf32>
    "tpu.trace_stop"() : () -> ()
    %cst_23 = arith.constant 0.353553385 : f32
    %57 = vector.broadcast %cst_23 : f32 to vector<8x8x8xf32>
    %58 = arith.mulf %56, %57 : vector<8x8x8xf32>
    %59 = vector.broadcast %4 : vector<8x1x8xf32> to vector<8x8x8xf32>
    %60 = arith.addf %58, %59 : vector<8x8x8xf32>
    %cst_24 = arith.constant dense<0xFF800000> : vector<8x8xf32>
    %61 = vector.multi_reduction <maximumf>, %60, %cst_24 [2] : vector<8x8x8xf32> to vector<8x8xf32>
    %62 = vector.shape_cast %61 : vector<8x8xf32> to vector<8x8x1xf32>
    %63 = vector.broadcast %62 : vector<8x8x1xf32> to vector<8x8x8xf32>
    %64 = arith.subf %60, %63 : vector<8x8x8xf32>
    %65 = math.exp %64 : vector<8x8x8xf32>
    %cst_25 = arith.constant dense<0.000000e+00> : vector<8x8xf32>
    %66 = vector.multi_reduction <add>, %65, %cst_25 [2] : vector<8x8x8xf32> to vector<8x8xf32>
    %67 = vector.shape_cast %66 : vector<8x8xf32> to vector<8x8x1xf32>
    %68 = tpu.reciprocal %67 {approx = true} : vector<8x8x1xf32> -> vector<8x8x1xf32>
    %69 = vector.broadcast %68 : vector<8x8x1xf32> to vector<8x8x8xf32>
    %70 = arith.mulf %65, %69 : vector<8x8x8xf32>
    "tpu.trace_start"() <{level = 10 : i32, message = "bqk,bkd->bqd"}> : () -> ()
    %cst_26 = arith.constant dense<0.000000e+00> : vector<8x8x8xf32>
    %71 = tpu.matmul %70, %55, %cst_26 {dimension_numbers = #tpu.dot_dimension_numbers<[2], [1], [1], [2], [0, 0, 0, 1, 1, 2], [0], [0]>} : vector<8x8x8xf32>, vector<8x8x8xf32>, vector<8x8x8xf32> -> vector<8x8x8xf32>
    "tpu.trace_stop"() : () -> ()
    %72 = vector.shape_cast %10 : vector<4x8x32xf32> to vector<1x4x8x32xf32>
    %73 = vector.shape_cast %72 : vector<1x4x8x32xf32> to vector<1x4x8x32xf32>
    %74 = vector.broadcast %73 : vector<1x4x8x32xf32> to vector<2x4x8x32xf32>
    %75 = vector.shape_cast %74 : vector<2x4x8x32xf32> to vector<8x8x32xf32>
    "tpu.trace_start"() <{level = 10 : i32, message = "bsd,bdh->bsh"}> : () -> ()
    %cst_27 = arith.constant dense<0.000000e+00> : vector<8x8x32xf32>
    %76 = tpu.matmul %71, %75, %cst_27 {dimension_numbers = #tpu.dot_dimension_numbers<[2], [1], [1], [2], [0, 0, 0, 1, 1, 2], [0], [0]>} : vector<8x8x8xf32>, vector<8x8x32xf32>, vector<8x8x32xf32> -> vector<8x8x32xf32>
    "tpu.trace_stop"() : () -> ()
    %77 = vector.shape_cast %76 : vector<8x8x32xf32> to vector<2x4x8x32xf32>
    %cst_28 = arith.constant dense<0.000000e+00> : vector<2x8x32xf32>
    %78 = vector.multi_reduction <add>, %77, %cst_28 [1] : vector<2x4x8x32xf32> to vector<2x8x32xf32>
    %79 = vector.shape_cast %78 : vector<2x8x32xf32> to vector<16x32xf32>
    %80 = vector.extract_strided_slice %12 {offsets = [0, 0], sizes = [1, 32], strides = [1, 1]} : vector<6x32xf32> to vector<1x32xf32>
    %81 = vector.broadcast %80 : vector<1x32xf32> to vector<16x32xf32>
    %82 = arith.addf %79, %81 : vector<16x32xf32>
    %83 = arith.addf %82, %3 : vector<16x32xf32>
    %84 = vector.extract_strided_slice %12 {offsets = [1, 0], sizes = [1, 32], strides = [1, 1]} : vector<6x32xf32> to vector<1x32xf32>
    %85 = vector.extract_strided_slice %12 {offsets = [2, 0], sizes = [1, 32], strides = [1, 1]} : vector<6x32xf32> to vector<1x32xf32>
    %cst_29 = arith.constant dense<0.000000e+00> : vector<16xf32>
    %86 = vector.multi_reduction <add>, %83, %cst_29 [1] : vector<16x32xf32> to vector<16xf32>
    %87 = vector.shape_cast %86 : vector<16xf32> to vector<16x1xf32>
    %cst_30 = arith.constant 3.200000e+01 : f32
    %88 = vector.broadcast %cst_30 : f32 to vector<16x1xf32>
    %89 = arith.divf %87, %88 : vector<16x1xf32>
    %90 = vector.broadcast %89 : vector<16x1xf32> to vector<16x32xf32>
    %91 = arith.subf %83, %90 : vector<16x32xf32>
    %92 = arith.mulf %91, %91 : vector<16x32xf32>
    %cst_31 = arith.constant dense<0.000000e+00> : vector<16xf32>
    %93 = vector.multi_reduction <add>, %92, %cst_31 [1] : vector<16x32xf32> to vector<16xf32>
    %94 = vector.shape_cast %93 : vector<16xf32> to vector<16x1xf32>
    %cst_32 = arith.constant 3.200000e+01 : f32
    %95 = vector.broadcast %cst_32 : f32 to vector<16x1xf32>
    %96 = arith.divf %94, %95 : vector<16x1xf32>
    %97 = vector.broadcast %89 : vector<16x1xf32> to vector<16x32xf32>
    %98 = arith.subf %83, %97 : vector<16x32xf32>
    %cst_33 = arith.constant 9.99999996E-13 : f32
    %99 = vector.broadcast %cst_33 : f32 to vector<16x1xf32>
    %100 = arith.addf %96, %99 : vector<16x1xf32>
    %101 = math.rsqrt %100 : vector<16x1xf32>
    %102 = vector.broadcast %101 : vector<16x1xf32> to vector<16x32xf32>
    %103 = arith.mulf %98, %102 : vector<16x32xf32>
    %104 = vector.broadcast %84 : vector<1x32xf32> to vector<16x32xf32>
    %105 = arith.mulf %104, %103 : vector<16x32xf32>
    %106 = vector.broadcast %85 : vector<1x32xf32> to vector<16x32xf32>
    %107 = arith.addf %105, %106 : vector<16x32xf32>
    %c0_34 = arith.constant 0 : index
    %c0_35 = arith.constant 0 : index
    %c0_36 = arith.constant 0 : index
    %108 = vector.load %arg7[%c0_34, %c0_35, %c0_36] : memref<1x32x64xf32, #tpu.memory_space<vmem>>, vector<1x32x64xf32>
    %109 = vector.shape_cast %108 : vector<1x32x64xf32> to vector<32x64xf32>
    %cst_37 = arith.constant dense<0.000000e+00> : vector<16x64xf32>
    %110 = tpu.matmul %107, %109, %cst_37 {dimension_numbers = #tpu.dot_dimension_numbers<[1], [0], [0], [1], [0, 0, 1, 1], [], []>} : vector<16x32xf32>, vector<32x64xf32>, vector<16x64xf32> -> vector<16x64xf32>
    %c0_38 = arith.constant 0 : index
    %c0_39 = arith.constant 0 : index
    %c0_40 = arith.constant 0 : index
    %111 = vector.load %arg8[%c0_38, %c0_39, %c0_40] : memref<1x1x64xf32, #tpu.memory_space<vmem>>, vector<1x1x64xf32>
    %112 = vector.shape_cast %111 : vector<1x1x64xf32> to vector<1x64xf32>
    %113 = vector.broadcast %112 : vector<1x64xf32> to vector<16x64xf32>
    %114 = arith.addf %110, %113 : vector<16x64xf32>
    %cst_41 = arith.constant 0.000000e+00 : f32
    %115 = vector.broadcast %cst_41 : f32 to vector<16x64xf32>
    %116 = arith.maximumf %114, %115 : vector<16x64xf32>
    %c0_42 = arith.constant 0 : index
    %c0_43 = arith.constant 0 : index
    %c0_44 = arith.constant 0 : index
    %117 = vector.load %arg9[%c0_42, %c0_43, %c0_44] : memref<1x64x32xf32, #tpu.memory_space<vmem>>, vector<1x64x32xf32>
    %118 = vector.shape_cast %117 : vector<1x64x32xf32> to vector<64x32xf32>
    %cst_45 = arith.constant dense<0.000000e+00> : vector<16x32xf32>
    %119 = tpu.matmul %116, %118, %cst_45 {dimension_numbers = #tpu.dot_dimension_numbers<[1], [0], [0], [1], [0, 0, 1, 1], [], []>} : vector<16x64xf32>, vector<64x32xf32>, vector<16x32xf32> -> vector<16x32xf32>
    %120 = vector.extract_strided_slice %12 {offsets = [3, 0], sizes = [1, 32], strides = [1, 1]} : vector<6x32xf32> to vector<1x32xf32>
    %121 = vector.broadcast %120 : vector<1x32xf32> to vector<16x32xf32>
    %122 = arith.addf %119, %121 : vector<16x32xf32>
    %123 = arith.addf %122, %107 : vector<16x32xf32>
    %124 = vector.extract_strided_slice %12 {offsets = [4, 0], sizes = [1, 32], strides = [1, 1]} : vector<6x32xf32> to vector<1x32xf32>
    %125 = vector.extract_strided_slice %12 {offsets = [5, 0], sizes = [1, 32], strides = [1, 1]} : vector<6x32xf32> to vector<1x32xf32>
    %cst_46 = arith.constant dense<0.000000e+00> : vector<16xf32>
    %126 = vector.multi_reduction <add>, %123, %cst_46 [1] : vector<16x32xf32> to vector<16xf32>
    %127 = vector.shape_cast %126 : vector<16xf32> to vector<16x1xf32>
    %cst_47 = arith.constant 3.200000e+01 : f32
    %128 = vector.broadcast %cst_47 : f32 to vector<16x1xf32>
    %129 = arith.divf %127, %128 : vector<16x1xf32>
    %130 = vector.broadcast %129 : vector<16x1xf32> to vector<16x32xf32>
    %131 = arith.subf %123, %130 : vector<16x32xf32>
    %132 = arith.mulf %131, %131 : vector<16x32xf32>
    %cst_48 = arith.constant dense<0.000000e+00> : vector<16xf32>
    %133 = vector.multi_reduction <add>, %132, %cst_48 [1] : vector<16x32xf32> to vector<16xf32>
    %134 = vector.shape_cast %133 : vector<16xf32> to vector<16x1xf32>
    %cst_49 = arith.constant 3.200000e+01 : f32
    %135 = vector.broadcast %cst_49 : f32 to vector<16x1xf32>
    %136 = arith.divf %134, %135 : vector<16x1xf32>
    %137 = vector.broadcast %129 : vector<16x1xf32> to vector<16x32xf32>
    %138 = arith.subf %123, %137 : vector<16x32xf32>
    %cst_50 = arith.constant 9.99999996E-13 : f32
    %139 = vector.broadcast %cst_50 : f32 to vector<16x1xf32>
    %140 = arith.addf %136, %139 : vector<16x1xf32>
    %141 = math.rsqrt %140 : vector<16x1xf32>
    %142 = vector.broadcast %141 : vector<16x1xf32> to vector<16x32xf32>
    %143 = arith.mulf %138, %142 : vector<16x32xf32>
    %144 = vector.broadcast %124 : vector<1x32xf32> to vector<16x32xf32>
    %145 = arith.mulf %144, %143 : vector<16x32xf32>
    %146 = vector.broadcast %125 : vector<1x32xf32> to vector<16x32xf32>
    %147 = arith.addf %145, %146 : vector<16x32xf32>
    %c0_51 = arith.constant 0 : index
    %c0_52 = arith.constant 0 : index
    %148 = vector.load %arg11[%c0_51, %c0_52] : memref<16x32xf32, #tpu.memory_space<vmem>>, vector<16x32xf32>
    tpu.vector_store %arg11[%c0_51, %c0_52], %147 {strides = array<i32>} : memref<16x32xf32, #tpu.memory_space<vmem>>, vector<16x32xf32>,
    %c1_i32 = arith.constant 1 : i32
    %149 = arith.cmpi eq, %arg0, %c1_i32 : i32
    %150 = arith.extui %149 : i1 to i32
    %c0_i32_53 = arith.constant 0 : i32
    %151 = arith.cmpi ne, %150, %c0_i32_53 : i32
    scf.if %151 {
      %c0_54 = arith.constant 0 : index
      %c0_55 = arith.constant 0 : index
      %152 = vector.load %arg10[%c0_54, %c0_55] : memref<16x32xf32, #tpu.memory_space<vmem>>, vector<16x32xf32>
      tpu.vector_store %arg10[%c0_54, %c0_55], %147 {strides = array<i32>} : memref<16x32xf32, #tpu.memory_space<vmem>>, vector<16x32xf32>,
    } else {
    }
    return
  }
  func.func @transform_0(%arg0: i32) -> (i32, i32) {
    %c0_i32 = arith.constant 0 : i32
    %c0_i32_0 = arith.constant 0 : i32
    %c0_i32_1 = arith.constant 0 : i32
    return %c0_i32, %c0_i32_0 : i32, i32
  }
  func.func @transform_1(%arg0: i32) -> (i32, i32, i32) {
    %c0_i32 = arith.constant 0 : i32
    %c0_i32_0 = arith.constant 0 : i32
    %c0_i32_1 = arith.constant 0 : i32
    %c0_i32_2 = arith.constant 0 : i32
    return %c0_i32, %c0_i32_0, %c0_i32_1 : i32, i32, i32
  }
  func.func @transform_2(%arg0: i32) -> (i32, i32, i32, i32) {
    %c0_i32 = arith.constant 0 : i32
    %c0_i32_0 = arith.constant 0 : i32
    %c0_i32_1 = arith.constant 0 : i32
    %c0_i32_2 = arith.constant 0 : i32
    return %arg0, %c0_i32, %c0_i32_0, %c0_i32_1 : i32, i32, i32, i32
  }
  func.func @transform_3(%arg0: i32) -> (i32, i32, i32, i32) {
    %c0_i32 = arith.constant 0 : i32
    %c0_i32_0 = arith.constant 0 : i32
    %c0_i32_1 = arith.constant 0 : i32
    %c0_i32_2 = arith.constant 0 : i32
    return %arg0, %c0_i32, %c0_i32_0, %c0_i32_1 : i32, i32, i32, i32
  }
  func.func @transform_4(%arg0: i32) -> (i32, i32, i32, i32) {
    %c0_i32 = arith.constant 0 : i32
    %c0_i32_0 = arith.constant 0 : i32
    %c0_i32_1 = arith.constant 0 : i32
    %c0_i32_2 = arith.constant 0 : i32
    return %arg0, %c0_i32, %c0_i32_0, %c0_i32_1 : i32, i32, i32, i32
  }
  func.func @transform_5(%arg0: i32) -> (i32, i32, i32) {
    %c0_i32 = arith.constant 0 : i32
    %c0_i32_0 = arith.constant 0 : i32
    %c0_i32_1 = arith.constant 0 : i32
    return %arg0, %c0_i32, %c0_i32_0 : i32, i32, i32
  }
  func.func @transform_6(%arg0: i32) -> (i32, i32, i32) {
    %c0_i32 = arith.constant 0 : i32
    %c0_i32_0 = arith.constant 0 : i32
    %c0_i32_1 = arith.constant 0 : i32
    return %arg0, %c0_i32, %c0_i32_0 : i32, i32, i32
  }
  func.func @transform_7(%arg0: i32) -> (i32, i32, i32) {
    %c0_i32 = arith.constant 0 : i32
    %c0_i32_0 = arith.constant 0 : i32
    %c0_i32_1 = arith.constant 0 : i32
    return %arg0, %c0_i32, %c0_i32_0 : i32, i32, i32
  }
  func.func @transform_8(%arg0: i32) -> (i32, i32, i32) {
    %c0_i32 = arith.constant 0 : i32
    %c0_i32_0 = arith.constant 0 : i32
    %c0_i32_1 = arith.constant 0 : i32
    return %arg0, %c0_i32, %c0_i32_0 : i32, i32, i32
  }
  func.func @transform_9(%arg0: i32) -> (i32, i32) {
    %c0_i32 = arith.constant 0 : i32
    %c0_i32_0 = arith.constant 0 : i32
    %c0_i32_1 = arith.constant 0 : i32
    return %c0_i32, %c0_i32_0 : i32, i32
  }
}

</mosaic_0001>

<llo_original>
// kernel: encoder_multiple_layers.1
$region0: #{encoder_multiple_layers.1}
  #allocation0 [shape = 'u32[]', space=smem, size = 0x4, offset = 0x4, fixed_abs, tag = 'smem constant byte address 0x4 - core index']
  #allocation1 [shape = 'u32[144,128]{1,0:T(1,128)}', space=vmem, size = 0x12000, scoped, tag = 'internal scratch']
  #allocation2 [shape = 'f32[16,32]{1,0:T(8,128)}', space=vmem, size = 0x2000, scoped, tag = 'scratch operand']
  %s0 = inlined_call_operand.vmem [shape: f32[16,32], index: 0, kind: input, shape index: {}]
  %s1 = inlined_call_operand.vmem [shape: f32[8,1,8], index: 1, kind: input, shape index: {}]
  %s2 = inlined_call_operand.vmem [shape: f32[2,12,32,8], index: 2, kind: input, shape index: {}]
  %s3 = inlined_call_operand.vmem [shape: f32[2,12,1,8], index: 3, kind: input, shape index: {}]
  %s4 = inlined_call_operand.vmem [shape: f32[2,4,8,32], index: 4, kind: input, shape index: {}]
  %s5 = inlined_call_operand.vmem [shape: f32[2,6,32], index: 5, kind: input, shape index: {}]
  %s6 = inlined_call_operand.vmem [shape: f32[2,32,64], index: 6, kind: input, shape index: {}]
  %s7 = inlined_call_operand.vmem [shape: f32[2,1,64], index: 7, kind: input, shape index: {}]
  %s8 = inlined_call_operand.vmem [shape: f32[2,64,32], index: 8, kind: input, shape index: {}]
  %s9 = inlined_call_operand.hbm [shape: f32[16,32], index: 9, kind: output, shape index: {}]
  %s10 = sld [smem:[#allocation0]]
  $region77: #{encoder_multiple_layers.1} parent=0
    _
  %s12 = ssub.s32 1, %s10
  %s13 = scalar_select 0, %s12, %s10
  $region1: #{encoder_multiple_layers.1} parent=0
    #allocation3 [shape = 'u8[8192]{0}', space=vmem, size = 0x2000, scoped, tag = 'output window, operand 0, single buffered']
    #allocation4 [shape = 's32[2]{0}', space=sflag, size = 0x8, scoped, tag = 'scoped memory for encoder_multiple_layers.1']
    %14 = vsyncpa [#allocation4], 0
    loop: start=0, step=1, limit=4
    $region2: #{encoder_multiple_layers.1} parent=1 // loop_pre_header
      _
    $region3: #{encoder_multiple_layers.1} parent=1 // loop_header
      %s16 = sphi 0, %s20
      %p17 = scmp.ge.s32.totalorder %s16, 4
      %s24 = sphi 0, %s24
      %s26 = sphi 0, %s24
      %s27 = sphi 0, %s26
      %s41 = sphi 0, %s27
      %s45 = sphi 0, %s45
      %s47 = sphi 0, %s45
      %s48 = sphi 0, %s47
      %s62 = sphi 0, %s48
      %s68 = sphi 0, %s70
      %s71 = sphi 0, %s68
      %s72 = sphi 0, %s71
      %s88 = sphi 0, %s72
      %s94 = sphi 0, %s96
      %s97 = sphi 0, %s94
      %s98 = sphi 0, %s97
      %s114 = sphi 0, %s98
      %s120 = sphi 0, %s122
      %s123 = sphi 0, %s120
      %s124 = sphi 0, %s123
      %s140 = sphi 0, %s124
      %s146 = sphi 0, %s148
      %s149 = sphi 0, %s146
      %s150 = sphi 0, %s149
      %s166 = sphi 0, %s150
      %s172 = sphi 0, %s174
      %s175 = sphi 0, %s172
      %s176 = sphi 0, %s175
      %s192 = sphi 0, %s176
      %s198 = sphi 0, %s200
      %s201 = sphi 0, %s198
      %s202 = sphi 0, %s201
      %s218 = sphi 0, %s202
      %s224 = sphi 0, %s226
      %s227 = sphi 0, %s224
      %s228 = sphi 0, %s227
      %s244 = sphi 0, %s228
      %s248 = sphi 0, %s248
      %s250 = sphi 0, %s248
      %s251 = sphi 0, %s250
      %s265 = sphi 0, %s251
    $region4: #{encoder_multiple_layers.1} parent=1 // loop_header_branch
      %19 = sbr.rel (%p17) target = $region8
    $region5: #{encoder_multiple_layers.1} parent=1 // loop_body
      %s21 = ssub.s32 %s16, 1
      %s22 = ssub.s32 %s16, 2
      %s23 = sadd.s32 %s16, 1
      %s25 = sadd.s32 %s24, 1
      %p28 = scmp.eq.s32.totalorder %s16, 1
      %p29 = scmp.ne.s32.totalorder %s24, %s26
      %p30 = scmp.eq.s32.totalorder %s16, 0
      %p31 = por %p29, %p30
      %p32 = scmp.ne.s32.totalorder %s24, %s26
      %p33 = scmp.eq.s32.totalorder %s21, 1
      %p34 = por %p32, %p33
      %p35 = scmp.ne.s32.totalorder %s26, %s27
      %p36 = scmp.eq.s32.totalorder %s21, 0
      %p37 = por %p35, %p36
      %p38 = scmp.ne.s32.totalorder %s26, %s27
      %p39 = scmp.eq.s32.totalorder %s22, 1
      %p40 = por %p38, %p39
      %p42 = scmp.ne.s32.totalorder %s27, %s41
      %p43 = scmp.eq.s32.totalorder %s22, 0
      %p44 = por %p42, %p43
      %s46 = sadd.s32 %s45, 1
      %p49 = scmp.eq.s32.totalorder %s16, 1
      %p50 = scmp.ne.s32.totalorder %s45, %s47
      %p51 = scmp.eq.s32.totalorder %s16, 0
      %p52 = por %p50, %p51
      %p53 = scmp.ne.s32.totalorder %s45, %s47
      %p54 = scmp.eq.s32.totalorder %s21, 1
      %p55 = por %p53, %p54
      %p56 = scmp.ne.s32.totalorder %s47, %s48
      %p57 = scmp.eq.s32.totalorder %s21, 0
      %p58 = por %p56, %p57
      %p59 = scmp.ne.s32.totalorder %s47, %s48
      %p60 = scmp.eq.s32.totalorder %s22, 1
      %p61 = por %p59, %p60
      %p63 = scmp.ne.s32.totalorder %s48, %s62
      %p64 = scmp.eq.s32.totalorder %s22, 0
      %p65 = por %p63, %p64
      %s66 = ssub.s32 %s16, %s23
      %p67 = scmp.eq.s32.totalorder %s66, 0
      %s69 = sadd.s32 %s68, 1
      %s70 = scalar_select %p67, %s68, %s69
      %p73 = pneg %p67
      %p74 = scmp.eq.s32.totalorder %s16, 1
      %p75 = por %p73, %p74
      %p76 = scmp.ne.s32.totalorder %s68, %s71
      %p77 = scmp.eq.s32.totalorder %s16, 0
      %p78 = por %p76, %p77
      %p79 = scmp.ne.s32.totalorder %s68, %s71
      %p80 = scmp.eq.s32.totalorder %s21, 1
      %p81 = por %p79, %p80
      %p82 = scmp.ne.s32.totalorder %s71, %s72
      %p83 = scmp.eq.s32.totalorder %s21, 0
      %p84 = por %p82, %p83
      %p85 = scmp.ne.s32.totalorder %s71, %s72
      %p86 = scmp.eq.s32.totalorder %s22, 1
      %p87 = por %p85, %p86
      %p89 = scmp.ne.s32.totalorder %s72, %s88
      %p90 = scmp.eq.s32.totalorder %s22, 0
      %p91 = por %p89, %p90
      %s92 = ssub.s32 %s16, %s23
      %p93 = scmp.eq.s32.totalorder %s92, 0
      %s95 = sadd.s32 %s94, 1
      %s96 = scalar_select %p93, %s94, %s95
      %p99 = pneg %p93
      %p100 = scmp.eq.s32.totalorder %s16, 1
      %p101 = por %p99, %p100
      %p102 = scmp.ne.s32.totalorder %s94, %s97
      %p103 = scmp.eq.s32.totalorder %s16, 0
      %p104 = por %p102, %p103
      %p105 = scmp.ne.s32.totalorder %s94, %s97
      %p106 = scmp.eq.s32.totalorder %s21, 1
      %p107 = por %p105, %p106
      %p108 = scmp.ne.s32.totalorder %s97, %s98
      %p109 = scmp.eq.s32.totalorder %s21, 0
      %p110 = por %p108, %p109
      %p111 = scmp.ne.s32.totalorder %s97, %s98
      %p112 = scmp.eq.s32.totalorder %s22, 1
      %p113 = por %p111, %p112
      %p115 = scmp.ne.s32.totalorder %s98, %s114
      %p116 = scmp.eq.s32.totalorder %s22, 0
      %p117 = por %p115, %p116
      %s118 = ssub.s32 %s16, %s23
      %p119 = scmp.eq.s32.totalorder %s118, 0
      %s121 = sadd.s32 %s120, 1
      %s122 = scalar_select %p119, %s120, %s121
      %p125 = pneg %p119
      %p126 = scmp.eq.s32.totalorder %s16, 1
      %p127 = por %p125, %p126
      %p128 = scmp.ne.s32.totalorder %s120, %s123
      %p129 = scmp.eq.s32.totalorder %s16, 0
      %p130 = por %p128, %p129
      %p131 = scmp.ne.s32.totalorder %s120, %s123
      %p132 = scmp.eq.s32.totalorder %s21, 1
      %p133 = por %p131, %p132
      %p134 = scmp.ne.s32.totalorder %s123, %s124
      %p135 = scmp.eq.s32.totalorder %s21, 0
      %p136 = por %p134, %p135
      %p137 = scmp.ne.s32.totalorder %s123, %s124
      %p138 = scmp.eq.s32.totalorder %s22, 1
      %p139 = por %p137, %p138
      %p141 = scmp.ne.s32.totalorder %s124, %s140
      %p142 = scmp.eq.s32.totalorder %s22, 0
      %p143 = por %p141, %p142
      %s144 = ssub.s32 %s16, %s23
      %p145 = scmp.eq.s32.totalorder %s144, 0
      %s147 = sadd.s32 %s146, 1
      %s148 = scalar_select %p145, %s146, %s147
      %p151 = pneg %p145
      %p152 = scmp.eq.s32.totalorder %s16, 1
      %p153 = por %p151, %p152
      %p154 = scmp.ne.s32.totalorder %s146, %s149
      %p155 = scmp.eq.s32.totalorder %s16, 0
      %p156 = por %p154, %p155
      %p157 = scmp.ne.s32.totalorder %s146, %s149
      %p158 = scmp.eq.s32.totalorder %s21, 1
      %p159 = por %p157, %p158
      %p160 = scmp.ne.s32.totalorder %s149, %s150
      %p161 = scmp.eq.s32.totalorder %s21, 0
      %p162 = por %p160, %p161
      %p163 = scmp.ne.s32.totalorder %s149, %s150
      %p164 = scmp.eq.s32.totalorder %s22, 1
      %p165 = por %p163, %p164
      %p167 = scmp.ne.s32.totalorder %s150, %s166
      %p168 = scmp.eq.s32.totalorder %s22, 0
      %p169 = por %p167, %p168
      %s170 = ssub.s32 %s16, %s23
      %p171 = scmp.eq.s32.totalorder %s170, 0
      %s173 = sadd.s32 %s172, 1
      %s174 = scalar_select %p171, %s172, %s173
      %p177 = pneg %p171
      %p178 = scmp.eq.s32.totalorder %s16, 1
      %p179 = por %p177, %p178
      %p180 = scmp.ne.s32.totalorder %s172, %s175
      %p181 = scmp.eq.s32.totalorder %s16, 0
      %p182 = por %p180, %p181
      %p183 = scmp.ne.s32.totalorder %s172, %s175
      %p184 = scmp.eq.s32.totalorder %s21, 1
      %p185 = por %p183, %p184
      %p186 = scmp.ne.s32.totalorder %s175, %s176
      %p187 = scmp.eq.s32.totalorder %s21, 0
      %p188 = por %p186, %p187
      %p189 = scmp.ne.s32.totalorder %s175, %s176
      %p190 = scmp.eq.s32.totalorder %s22, 1
      %p191 = por %p189, %p190
      %p193 = scmp.ne.s32.totalorder %s176, %s192
      %p194 = scmp.eq.s32.totalorder %s22, 0
      %p195 = por %p193, %p194
      %s196 = ssub.s32 %s16, %s23
      %p197 = scmp.eq.s32.totalorder %s196, 0
      %s199 = sadd.s32 %s198, 1
      %s200 = scalar_select %p197, %s198, %s199
      %p203 = pneg %p197
      %p204 = scmp.eq.s32.totalorder %s16, 1
      %p205 = por %p203, %p204
      %p206 = scmp.ne.s32.totalorder %s198, %s201
      %p207 = scmp.eq.s32.totalorder %s16, 0
      %p208 = por %p206, %p207
      %p209 = scmp.ne.s32.totalorder %s198, %s201
      %p210 = scmp.eq.s32.totalorder %s21, 1
      %p211 = por %p209, %p210
      %p212 = scmp.ne.s32.totalorder %s201, %s202
      %p213 = scmp.eq.s32.totalorder %s21, 0
      %p214 = por %p212, %p213
      %p215 = scmp.ne.s32.totalorder %s201, %s202
      %p216 = scmp.eq.s32.totalorder %s22, 1
      %p217 = por %p215, %p216
      %p219 = scmp.ne.s32.totalorder %s202, %s218
      %p220 = scmp.eq.s32.totalorder %s22, 0
      %p221 = por %p219, %p220
      %s222 = ssub.s32 %s16, %s23
      %p223 = scmp.eq.s32.totalorder %s222, 0
      %s225 = sadd.s32 %s224, 1
      %s226 = scalar_select %p223, %s224, %s225
      %p229 = pneg %p223
      %p230 = scmp.eq.s32.totalorder %s16, 1
      %p231 = por %p229, %p230
      %p232 = scmp.ne.s32.totalorder %s224, %s227
      %p233 = scmp.eq.s32.totalorder %s16, 0
      %p234 = por %p232, %p233
      %p235 = scmp.ne.s32.totalorder %s224, %s227
      %p236 = scmp.eq.s32.totalorder %s21, 1
      %p237 = por %p235, %p236
      %p238 = scmp.ne.s32.totalorder %s227, %s228
      %p239 = scmp.eq.s32.totalorder %s21, 0
      %p240 = por %p238, %p239
      %p241 = scmp.ne.s32.totalorder %s227, %s228
      %p242 = scmp.eq.s32.totalorder %s22, 1
      %p243 = por %p241, %p242
      %p245 = scmp.ne.s32.totalorder %s228, %s244
      %p246 = scmp.eq.s32.totalorder %s22, 0
      %p247 = por %p245, %p246
      %s249 = sadd.s32 %s248, 1
      %p252 = scmp.eq.s32.totalorder %s16, 1
      %p253 = scmp.ne.s32.totalorder %s248, %s250
      %p254 = scmp.eq.s32.totalorder %s16, 0
      %p255 = por %p253, %p254
      %p256 = scmp.ne.s32.totalorder %s248, %s250
      %p257 = scmp.eq.s32.totalorder %s21, 1
      %p258 = por %p256, %p257
      %p259 = scmp.ne.s32.totalorder %s250, %s251
      %p260 = scmp.eq.s32.totalorder %s21, 0
      %p261 = por %p259, %p260
      %p262 = scmp.ne.s32.totalorder %s250, %s251
      %p263 = scmp.eq.s32.totalorder %s22, 1
      %p264 = por %p262, %p263
      %p266 = scmp.ne.s32.totalorder %s251, %s265
      %p267 = scmp.eq.s32.totalorder %s22, 0
      %p268 = por %p266, %p267
      %p269 = scmp.le.s32.totalorder 1, %s16
      %p270 = scmp.lt.s32.totalorder %s16, 3
      %p271 = pnand %p269, %p270
      %p272 = pneg %p271
      // Predicated region
      $region9: #{encoder_multiple_layers.1} parent=5 // pred_check
        _
      $region10: #{encoder_multiple_layers.1} parent=5 // pred_check_branch
        %274 = sbr.rel (%p271) target = $region12
      $region11: #{encoder_multiple_layers.1} parent=5 // pred_region
        %s275 = ssub.s32 %s16, 1
        // Predicated region
        $region13: #{encoder_multiple_layers.1} parent=11 // pred_check
          %p276 = pneg %p37
        $region14: #{encoder_multiple_layers.1} parent=11 // pred_check_branch
          %278 = sbr.rel (%p276) target = $region16
        $region15: #{encoder_multiple_layers.1} parent=11 // pred_region
          _
        $region16: #{encoder_multiple_layers.1} parent=11 // pred_fallthru
          _
        // Predicated region
        $region17: #{encoder_multiple_layers.1} parent=11 // pred_check
          %p279 = pneg %p58
        $region18: #{encoder_multiple_layers.1} parent=11 // pred_check_branch
          %281 = sbr.rel (%p279) target = $region20
        $region19: #{encoder_multiple_layers.1} parent=11 // pred_region
          _
        $region20: #{encoder_multiple_layers.1} parent=11 // pred_fallthru
          _
      $region12: #{encoder_multiple_layers.1} parent=5 // pred_fallthru
        _
      %p282 = scmp.lt.s32.totalorder %s16, 2
      // Predicated region
      $region21: #{encoder_multiple_layers.1} parent=5 // pred_check
        %p283 = pneg %p282
      $region22: #{encoder_multiple_layers.1} parent=5 // pred_check_branch
        %285 = sbr.rel (%p283) target = $region24
      $region23: #{encoder_multiple_layers.1} parent=5 // pred_region
        // Predicated region
        $region25: #{encoder_multiple_layers.1} parent=23 // pred_check
          %p286 = pneg %p78
        $region26: #{encoder_multiple_layers.1} parent=23 // pred_check_branch
          %288 = sbr.rel (%p286) target = $region28
        $region27: #{encoder_multiple_layers.1} parent=23 // pred_region
          %p289 = scmp.lt.s32.totalorder %s16, 1
          %s290 = scalar_select %p289, %s16, 1
          %s291 = smul.addr %s290, 48
          %s292 = smul.addr %s291, 8
          %s293 = scalar_lea.vmem %s2, %s292
        $region28: #{encoder_multiple_layers.1} parent=23 // pred_fallthru
          _
        // Predicated region
        $region29: #{encoder_multiple_layers.1} parent=23 // pred_check
          %p294 = pneg %p104
        $region30: #{encoder_multiple_layers.1} parent=23 // pred_check_branch
          %296 = sbr.rel (%p294) target = $region32
        $region31: #{encoder_multiple_layers.1} parent=23 // pred_region
          %p297 = scmp.lt.s32.totalorder %s16, 1
          %s298 = scalar_select %p297, %s16, 1
          %s299 = smul.addr %s298, 12
          %s300 = scalar_lea.vmem %s3, %s299
        $region32: #{encoder_multiple_layers.1} parent=23 // pred_fallthru
          _
        // Predicated region
        $region33: #{encoder_multiple_layers.1} parent=23 // pred_check
          %p301 = pneg %p130
        $region34: #{encoder_multiple_layers.1} parent=23 // pred_check_branch
          %303 = sbr.rel (%p301) target = $region36
        $region35: #{encoder_multiple_layers.1} parent=23 // pred_region
          %p304 = scmp.lt.s32.totalorder %s16, 1
          %s305 = scalar_select %p304, %s16, 1
          %s306 = smul.addr %s305, 4
          %s307 = smul.addr %s306, 8
          %s308 = scalar_lea.vmem %s4, %s307
        $region36: #{encoder_multiple_layers.1} parent=23 // pred_fallthru
          _
        // Predicated region
        $region37: #{encoder_multiple_layers.1} parent=23 // pred_check
          %p309 = pneg %p156
        $region38: #{encoder_multiple_layers.1} parent=23 // pred_check_branch
          %311 = sbr.rel (%p309) target = $region40
        $region39: #{encoder_multiple_layers.1} parent=23 // pred_region
          %p312 = scmp.lt.s32.totalorder %s16, 1
          %s313 = scalar_select %p312, %s16, 1
          %s314 = smul.addr %s313, 8
          %s315 = scalar_lea.vmem %s5, %s314
        $region40: #{encoder_multiple_layers.1} parent=23 // pred_fallthru
          _
        // Predicated region
        $region41: #{encoder_multiple_layers.1} parent=23 // pred_check
          %p316 = pneg %p182
        $region42: #{encoder_multiple_layers.1} parent=23 // pred_check_branch
          %318 = sbr.rel (%p316) target = $region44
        $region43: #{encoder_multiple_layers.1} parent=23 // pred_region
          %p319 = scmp.lt.s32.totalorder %s16, 1
          %s320 = scalar_select %p319, %s16, 1
          %s321 = smul.addr %s320, 4
          %s322 = smul.addr %s321, 8
          %s323 = scalar_lea.vmem %s6, %s322
        $region44: #{encoder_multiple_layers.1} parent=23 // pred_fallthru
          _
        // Predicated region
        $region45: #{encoder_multiple_layers.1} parent=23 // pred_check
          %p324 = pneg %p208
        $region46: #{encoder_multiple_layers.1} parent=23 // pred_check_branch
          %326 = sbr.rel (%p324) target = $region48
        $region47: #{encoder_multiple_layers.1} parent=23 // pred_region
          %p327 = scmp.lt.s32.totalorder %s16, 1
          %s328 = scalar_select %p327, %s16, 1
          %s329 = scalar_lea.vmem %s7, %s328
        $region48: #{encoder_multiple_layers.1} parent=23 // pred_fallthru
          _
        // Predicated region
        $region49: #{encoder_multiple_layers.1} parent=23 // pred_check
          %p330 = pneg %p234
        $region50: #{encoder_multiple_layers.1} parent=23 // pred_check_branch
          %332 = sbr.rel (%p330) target = $region52
        $region51: #{encoder_multiple_layers.1} parent=23 // pred_region
          %p333 = scmp.lt.s32.totalorder %s16, 1
          %s334 = scalar_select %p333, %s16, 1
          %s335 = smul.addr %s334, 8
          %s336 = smul.addr %s335, 8
          %s337 = scalar_lea.vmem %s8, %s336
        $region52: #{encoder_multiple_layers.1} parent=23 // pred_fallthru
          _
      $region24: #{encoder_multiple_layers.1} parent=5 // pred_fallthru
        _
      %p338 = scmp.le.s32.totalorder 1, %s16
      %p339 = scmp.lt.s32.totalorder %s16, 3
      %p340 = pnand %p338, %p339
      %p341 = pneg %p340
      // Predicated region
      $region53: #{encoder_multiple_layers.1} parent=5 // pred_check
        _
      $region54: #{encoder_multiple_layers.1} parent=5 // pred_check_branch
        %343 = sbr.rel (%p340) target = $region56
      $region55: #{encoder_multiple_layers.1} parent=5 // pred_region
        %s344 = ssub.s32 %s16, 1
        %p345 = pneg %p37
        %p346 = pneg %p34
        %p347 = pneg %p58
        %p348 = pneg %p55
        %p349 = scmp.lt.s32.totalorder %s21, 1
        %s350 = scalar_select %p349, %s21, 1
        %s351 = smul.addr %s350, 48
        %s352 = smul.addr %s351, 8
        %s353 = scalar_lea.vmem %s2, %s352
        %p354 = pneg %p84
        %p355 = pneg %p81
        %p356 = scmp.lt.s32.totalorder %s21, 1
        %s357 = scalar_select %p356, %s21, 1
        %s358 = smul.addr %s357, 12
        %s359 = scalar_lea.vmem %s3, %s358
        %p360 = pneg %p110
        %p361 = pneg %p107
        %p362 = scmp.lt.s32.totalorder %s21, 1
        %s363 = scalar_select %p362, %s21, 1
        %s364 = smul.addr %s363, 4
        %s365 = smul.addr %s364, 8
        %s366 = scalar_lea.vmem %s4, %s365
        %p367 = pneg %p136
        %p368 = pneg %p133
        %p369 = scmp.lt.s32.totalorder %s21, 1
        %s370 = scalar_select %p369, %s21, 1
        %s371 = smul.addr %s370, 8
        %s372 = scalar_lea.vmem %s5, %s371
        %p373 = pneg %p162
        %p374 = pneg %p159
        %p375 = scmp.lt.s32.totalorder %s21, 1
        %s376 = scalar_select %p375, %s21, 1
        %s377 = smul.addr %s376, 4
        %s378 = smul.addr %s377, 8
        %s379 = scalar_lea.vmem %s6, %s378
        %p380 = pneg %p188
        %p381 = pneg %p185
        %p382 = scmp.lt.s32.totalorder %s21, 1
        %s383 = scalar_select %p382, %s21, 1
        %s384 = scalar_lea.vmem %s7, %s383
        %p385 = pneg %p214
        %p386 = pneg %p211
        %p387 = scmp.lt.s32.totalorder %s21, 1
        %s388 = scalar_select %p387, %s21, 1
        %s389 = smul.addr %s388, 8
        %s390 = smul.addr %s389, 8
        %s391 = scalar_lea.vmem %s8, %s390
        %p392 = pneg %p240
        %p393 = pneg %p237
        %p394 = pneg %p261
        %p395 = pneg %p258
        %p396 = scmp.lt.s32.totalorder %s21, 1
        %s397 = scalar_select %p396, %s21, 1
        %s398 = smul.addr %s397, 48
        %s399 = smul.addr %s398, 8
        %s400 = scalar_lea.vmem %s2, %s399
        %p401 = scmp.lt.s32.totalorder %s21, 1
        %s402 = scalar_select %p401, %s21, 1
        %s403 = smul.addr %s402, 12
        %s404 = scalar_lea.vmem %s3, %s403
        %p405 = scmp.lt.s32.totalorder %s21, 1
        %s406 = scalar_select %p405, %s21, 1
        %s407 = smul.addr %s406, 4
        %s408 = smul.addr %s407, 8
        %s409 = scalar_lea.vmem %s4, %s408
        %p410 = scmp.lt.s32.totalorder %s21, 1
        %s411 = scalar_select %p410, %s21, 1
        %s412 = smul.addr %s411, 8
        %s413 = scalar_lea.vmem %s5, %s412
        %p414 = scmp.lt.s32.totalorder %s21, 1
        %s415 = scalar_select %p414, %s21, 1
        %s416 = smul.addr %s415, 4
        %s417 = smul.addr %s416, 8
        %s418 = scalar_lea.vmem %s6, %s417
        %p419 = scmp.lt.s32.totalorder %s21, 1
        %s420 = scalar_select %p419, %s21, 1
        %s421 = scalar_lea.vmem %s7, %s420
        %p422 = scmp.lt.s32.totalorder %s21, 1
        %s423 = scalar_select %p422, %s21, 1
        %s424 = smul.addr %s423, 8
        %s425 = smul.addr %s424, 8
        %s426 = scalar_lea.vmem %s8, %s425
        %p427 = scmp.eq.s32.totalorder %s21, 0
        // Predicated region
        $region57: #{encoder_multiple_layers.1} parent=55 // pred_check
          %p428 = pneg %p427
        $region58: #{encoder_multiple_layers.1} parent=55 // pred_check_branch
          %430 = sbr.rel (%p428) target = $region60
        $region59: #{encoder_multiple_layers.1} parent=55 // pred_region
          %v431 = vld [vmem:[%s0] sm:$0xff]
          %v432 = vld [vmem:[%s0 + $0x8] sm:$0xff]
          %vm433 = vcmask 261120
          %434 = vst.msk [vmem:[#allocation2] sm:$0xff] %vm433, %v431
          %435 = vst.msk [vmem:[#allocation2 + $0x8] sm:$0xff] %vm433, %v432
        $region60: #{encoder_multiple_layers.1} parent=55 // pred_fallthru
          _
        %v436 = vld [vmem:[#allocation2] sm:$0xff]
        %v437 = vld [vmem:[#allocation2 + $0x8] sm:$0xff]
        %v438 = vld [vmem:[%s1] sm:$0x1]
        %v439 = vld [vmem:[%s1 + $0x1] sm:$0x1]
        %v440 = vld [vmem:[%s1 + $0x2] sm:$0x1]
        %v441 = vld [vmem:[%s1 + $0x3] sm:$0x1]
        %v442 = vld [vmem:[%s1 + $0x4] sm:$0x1]
        %v443 = vld [vmem:[%s1 + $0x5] sm:$0x1]
        %v444 = vld [vmem:[%s1 + $0x6] sm:$0x1]
        %v445 = vld [vmem:[%s1 + $0x7] sm:$0x1]
        %v446 = vld [vmem:[%s400] sm:$0xff]
        %v447 = vld [vmem:[%s400 + $0x8] sm:$0xff]
        %v448 = vld [vmem:[%s400 + $0x10] sm:$0xff]
        %v449 = vld [vmem:[%s400 + $0x18] sm:$0xff]
        %v450 = vld [vmem:[%s400 + $0x20] sm:$0xff]
        %v451 = vld [vmem:[%s400 + $0x28] sm:$0xff]
        %v452 = vld [vmem:[%s400 + $0x30] sm:$0xff]
        %v453 = vld [vmem:[%s400 + $0x38] sm:$0xff]
        %v454 = vld [vmem:[%s400 + $0x40] sm:$0xff]
        %v455 = vld [vmem:[%s400 + $0x48] sm:$0xff]
        %v456 = vld [vmem:[%s400 + $0x50] sm:$0xff]
        %v457 = vld [vmem:[%s400 + $0x58] sm:$0xff]
        %v458 = vld [vmem:[%s400 + $0x60] sm:$0xff]
        %v459 = vld [vmem:[%s400 + $0x68] sm:$0xff]
        %v460 = vld [vmem:[%s400 + $0x70] sm:$0xff]
        %v461 = vld [vmem:[%s400 + $0x78] sm:$0xff]
        %v462 = vld [vmem:[%s400 + $0x80] sm:$0xff]
        %v463 = vld [vmem:[%s400 + $0x88] sm:$0xff]
        %v464 = vld [vmem:[%s400 + $0x90] sm:$0xff]
        %v465 = vld [vmem:[%s400 + $0x98] sm:$0xff]
        %v466 = vld [vmem:[%s400 + $0xa0] sm:$0xff]
        %v467 = vld [vmem:[%s400 + $0xa8] sm:$0xff]
        %v468 = vld [vmem:[%s400 + $0xb0] sm:$0xff]
        %v469 = vld [vmem:[%s400 + $0xb8] sm:$0xff]
        %v470 = vld [vmem:[%s400 + $0xc0] sm:$0xff]
        %v471 = vld [vmem:[%s400 + $0xc8] sm:$0xff]
        %v472 = vld [vmem:[%s400 + $0xd0] sm:$0xff]
        %v473 = vld [vmem:[%s400 + $0xd8] sm:$0xff]
        %v474 = vld [vmem:[%s400 + $0xe0] sm:$0xff]
        %v475 = vld [vmem:[%s400 + $0xe8] sm:$0xff]
        %v476 = vld [vmem:[%s400 + $0xf0] sm:$0xff]
        %v477 = vld [vmem:[%s400 + $0xf8] sm:$0xff]
        %v478 = vld [vmem:[%s400 + $0x100] sm:$0xff]
        %v479 = vld [vmem:[%s400 + $0x108] sm:$0xff]
        %v480 = vld [vmem:[%s400 + $0x110] sm:$0xff]
        %v481 = vld [vmem:[%s400 + $0x118] sm:$0xff]
        %v482 = vld [vmem:[%s400 + $0x120] sm:$0xff]
        %v483 = vld [vmem:[%s400 + $0x128] sm:$0xff]
        %v484 = vld [vmem:[%s400 + $0x130] sm:$0xff]
        %v485 = vld [vmem:[%s400 + $0x138] sm:$0xff]
        %v486 = vld [vmem:[%s400 + $0x140] sm:$0xff]
        %v487 = vld [vmem:[%s400 + $0x148] sm:$0xff]
        %v488 = vld [vmem:[%s400 + $0x150] sm:$0xff]
        %v489 = vld [vmem:[%s400 + $0x158] sm:$0xff]
        %v490 = vld [vmem:[%s400 + $0x160] sm:$0xff]
        %v491 = vld [vmem:[%s400 + $0x168] sm:$0xff]
        %v492 = vld [vmem:[%s400 + $0x170] sm:$0xff]
        %v493 = vld [vmem:[%s400 + $0x178] sm:$0xff]
        %v494 = vld [vmem:[%s404] sm:$0x1]
        %v495 = vld [vmem:[%s404 + $0x1] sm:$0x1]
        %v496 = vld [vmem:[%s404 + $0x2] sm:$0x1]
        %v497 = vld [vmem:[%s404 + $0x3] sm:$0x1]
        %v498 = vld [vmem:[%s404 + $0x4] sm:$0x1]
        %v499 = vld [vmem:[%s404 + $0x5] sm:$0x1]
        %v500 = vld [vmem:[%s404 + $0x6] sm:$0x1]
        %v501 = vld [vmem:[%s404 + $0x7] sm:$0x1]
        %v502 = vld [vmem:[%s404 + $0x8] sm:$0x1]
        %v503 = vld [vmem:[%s404 + $0x9] sm:$0x1]
        %v504 = vld [vmem:[%s404 + $0xa] sm:$0x1]
        %v505 = vld [vmem:[%s404 + $0xb] sm:$0x1]
        %v506 = vld [vmem:[%s409] sm:$0xff]
        %v507 = vld [vmem:[%s409 + $0x8] sm:$0xff]
        %v508 = vld [vmem:[%s409 + $0x10] sm:$0xff]
        %v509 = vld [vmem:[%s409 + $0x18] sm:$0xff]
        %v510 = vld [vmem:[%s413] sm:$0x3f]
        %v515 = vlaneseq
        %v516 = vshrl.u32 %v515, 7
        %v517 = vsub.s32 0, %v516
        %v518 = vrot.slane %v494, %v517
        %v519 = vlaneseq
        %v520 = vshrl.u32 %v519, 7
        %v521 = vsub.s32 0, %v520
        %v522 = vrot.slane %v495, %v521
        %v523 = vlaneseq
        %v524 = vshrl.u32 %v523, 7
        %v525 = vsub.s32 0, %v524
        %v526 = vrot.slane %v496, %v525
        %v527 = vlaneseq
        %v528 = vshrl.u32 %v527, 7
        %v529 = vsub.s32 0, %v528
        %v530 = vrot.slane %v497, %v529
        %vm535 = vcmask 261120
        %v537 = vsel %vm535, %v436, 0
        %539 = vmatprep.subr.mxu0 0.0
        %540 = vmatpush1.msra.mxu0 %v446
        %541 = vmatprep.subr.mxu0 0.0
        %542 = vmatpush1.msra.mxu0 %v447
        %543 = vmatprep.subr.mxu0 0.0
        %544 = vmatpush1.msra.mxu0 %v448
        %545 = vmatprep.subr.mxu0 0.0
        %546 = vmatpush1.msra.mxu0 %v449
        %547 = vmatprep.subr.mxu0 0.0
        %548 = vmatpush1.msra.mxu0 0.0
        %549 = vmatprep.subr.mxu0 0.0
        %550 = vmatpush1.msra.mxu0 0.0
        %551 = vmatprep.subr.mxu0 0.0
        %552 = vmatpush1.msra.mxu0 0.0
        %553 = vmatprep.subr.mxu0 0.0
        %554 = vmatpush1.msra.mxu0 0.0
        %555 = vmatprep.subr.mxu0 0.0
        %556 = vmatpush1.msra.mxu0 0.0
        %557 = vmatprep.subr.mxu0 0.0
        %558 = vmatpush1.msra.mxu0 0.0
        %559 = vmatprep.subr.mxu0 0.0
        %560 = vmatpush1.msra.mxu0 0.0
        %561 = vmatprep.subr.mxu0 0.0
        %562 = vmatpush1.msra.mxu0 0.0
        %563 = vmatprep.subr.mxu0 0.0
        %564 = vmatpush1.msra.mxu0 0.0
        %565 = vmatprep.subr.mxu0 0.0
        %566 = vmatpush1.msra.mxu0 0.0
        %567 = vmatprep.subr.mxu0 0.0
        %568 = vmatpush1.msra.mxu0 0.0
        %569 = vmatprep.subr.mxu0 0.0
        %570 = vmatpush1.msra.mxu0 0.0
        %571 = vmatprep.subr.mxu0 0.0
        %572 = vmatpush1.msra.mxu0 0.0
        %573 = vmatprep.subr.mxu0 0.0
        %574 = vmatpush1.msra.mxu0 0.0
        %575 = vmatprep.subr.mxu0 0.0
        %576 = vmatpush1.msra.mxu0 0.0
        %577 = vmatprep.subr.mxu0 0.0
        %578 = vmatpush1.msra.mxu0 0.0
        %579 = vmatprep.subr.mxu0 0.0
        %580 = vmatpush1.msra.mxu0 0.0
        %581 = vmatprep.subr.mxu0 0.0
        %582 = vmatpush1.msra.mxu0 0.0
        %583 = vmatprep.subr.mxu0 0.0
        %584 = vmatpush1.msra.mxu0 0.0
        %585 = vmatprep.subr.mxu0 0.0
        %586 = vmatpush1.msra.mxu0 0.0
        %587 = vmatprep.subr.mxu0 0.0
        %588 = vmatpush1.msra.mxu0 0.0
        %589 = vmatprep.subr.mxu0 0.0
        %590 = vmatpush1.msra.mxu0 0.0
        %591 = vmatprep.subr.mxu0 0.0
        %592 = vmatpush1.msra.mxu0 0.0
        %593 = vmatprep.subr.mxu0 0.0
        %594 = vmatpush1.msra.mxu0 0.0
        %595 = vmatprep.subr.mxu0 0.0
        %596 = vmatpush1.msra.mxu0 0.0
        %597 = vmatprep.subr.mxu0 0.0
        %598 = vmatpush1.msra.mxu0 0.0
        %599 = vmatprep.subr.mxu0 0.0
        %600 = vmatpush1.msra.mxu0 0.0
        %601 = vmatprep.subr.mxu0 0.0
        %602 = vmatpush1.msra.mxu0 0.0
        %603 = vmatprep.mubr.f32.mxu0 0.0
        %604 = vmatmul.mubr.f32.gmra.mrb[0].mxu0 %v537
        %v605 = vpop.f32.mrb[0].mxu0
        %v606 = vadd.f32 %v518, %v605
        %v607 = vpop.f32.mrb[0].mxu0
        %608 = vdwg.mxu0
        %609 = vmatprep.subr.mxu0 0.0
        %610 = vmatpush1.msra.mxu0 %v450
        %611 = vmatprep.subr.mxu0 0.0
        %612 = vmatpush1.msra.mxu0 %v451
        %613 = vmatprep.subr.mxu0 0.0
        %614 = vmatpush1.msra.mxu0 %v452
        %615 = vmatprep.subr.mxu0 0.0
        %616 = vmatpush1.msra.mxu0 %v453
        %617 = vmatprep.subr.mxu0 0.0
        %618 = vmatpush1.msra.mxu0 0.0
        %619 = vmatprep.subr.mxu0 0.0
        %620 = vmatpush1.msra.mxu0 0.0
        %621 = vmatprep.subr.mxu0 0.0
        %622 = vmatpush1.msra.mxu0 0.0
        %623 = vmatprep.subr.mxu0 0.0
        %624 = vmatpush1.msra.mxu0 0.0
        %625 = vmatprep.subr.mxu0 0.0
        %626 = vmatpush1.msra.mxu0 0.0
        %627 = vmatprep.subr.mxu0 0.0
        %628 = vmatpush1.msra.mxu0 0.0
        %629 = vmatprep.subr.mxu0 0.0
        %630 = vmatpush1.msra.mxu0 0.0
        %631 = vmatprep.subr.mxu0 0.0
        %632 = vmatpush1.msra.mxu0 0.0
        %633 = vmatprep.subr.mxu0 0.0
        %634 = vmatpush1.msra.mxu0 0.0
        %635 = vmatprep.subr.mxu0 0.0
        %636 = vmatpush1.msra.mxu0 0.0
        %637 = vmatprep.subr.mxu0 0.0
        %638 = vmatpush1.msra.mxu0 0.0
        %639 = vmatprep.subr.mxu0 0.0
        %640 = vmatpush1.msra.mxu0 0.0
        %641 = vmatprep.subr.mxu0 0.0
        %642 = vmatpush1.msra.mxu0 0.0
        %643 = vmatprep.subr.mxu0 0.0
        %644 = vmatpush1.msra.mxu0 0.0
        %645 = vmatprep.subr.mxu0 0.0
        %646 = vmatpush1.msra.mxu0 0.0
        %647 = vmatprep.subr.mxu0 0.0
        %648 = vmatpush1.msra.mxu0 0.0
        %649 = vmatprep.subr.mxu0 0.0
        %650 = vmatpush1.msra.mxu0 0.0
        %651 = vmatprep.subr.mxu0 0.0
        %652 = vmatpush1.msra.mxu0 0.0
        %653 = vmatprep.subr.mxu0 0.0
        %654 = vmatpush1.msra.mxu0 0.0
        %655 = vmatprep.subr.mxu0 0.0
        %656 = vmatpush1.msra.mxu0 0.0
        %657 = vmatprep.subr.mxu0 0.0
        %658 = vmatpush1.msra.mxu0 0.0
        %659 = vmatprep.subr.mxu0 0.0
        %660 = vmatpush1.msra.mxu0 0.0
        %661 = vmatprep.subr.mxu0 0.0
        %662 = vmatpush1.msra.mxu0 0.0
        %663 = vmatprep.subr.mxu0 0.0
        %664 = vmatpush1.msra.mxu0 0.0
        %665 = vmatprep.subr.mxu0 0.0
        %666 = vmatpush1.msra.mxu0 0.0
        %667 = vmatprep.subr.mxu0 0.0
        %668 = vmatpush1.msra.mxu0 0.0
        %669 = vmatprep.subr.mxu0 0.0
        %670 = vmatpush1.msra.mxu0 0.0
        %671 = vmatprep.subr.mxu0 0.0
        %672 = vmatpush1.msra.mxu0 0.0
        %673 = vmatprep.mubr.f32.mxu0 0.0
        %674 = vmatmul.mubr.f32.gmra.mrb[0].mxu0 %v537
        %v675 = vpop.f32.mrb[0].mxu0
        %v676 = vadd.f32 %v522, %v675
        %v677 = vpop.f32.mrb[0].mxu0
        %678 = vdwg.mxu0
        %679 = vmatprep.subr.mxu0 0.0
        %680 = vmatpush1.msra.mxu0 %v454
        %681 = vmatprep.subr.mxu0 0.0
        %682 = vmatpush1.msra.mxu0 %v455
        %683 = vmatprep.subr.mxu0 0.0
        %684 = vmatpush1.msra.mxu0 %v456
        %685 = vmatprep.subr.mxu0 0.0
        %686 = vmatpush1.msra.mxu0 %v457
        %687 = vmatprep.subr.mxu0 0.0
        %688 = vmatpush1.msra.mxu0 0.0
        %689 = vmatprep.subr.mxu0 0.0
        %690 = vmatpush1.msra.mxu0 0.0
        %691 = vmatprep.subr.mxu0 0.0
        %692 = vmatpush1.msra.mxu0 0.0
        %693 = vmatprep.subr.mxu0 0.0
        %694 = vmatpush1.msra.mxu0 0.0
        %695 = vmatprep.subr.mxu0 0.0
        %696 = vmatpush1.msra.mxu0 0.0
        %697 = vmatprep.subr.mxu0 0.0
        %698 = vmatpush1.msra.mxu0 0.0
        %699 = vmatprep.subr.mxu0 0.0
        %700 = vmatpush1.msra.mxu0 0.0
        %701 = vmatprep.subr.mxu0 0.0
        %702 = vmatpush1.msra.mxu0 0.0
        %703 = vmatprep.subr.mxu0 0.0
        %704 = vmatpush1.msra.mxu0 0.0
        %705 = vmatprep.subr.mxu0 0.0
        %706 = vmatpush1.msra.mxu0 0.0
        %707 = vmatprep.subr.mxu0 0.0
        %708 = vmatpush1.msra.mxu0 0.0
        %709 = vmatprep.subr.mxu0 0.0
        %710 = vmatpush1.msra.mxu0 0.0
        %711 = vmatprep.subr.mxu0 0.0
        %712 = vmatpush1.msra.mxu0 0.0
        %713 = vmatprep.subr.mxu0 0.0
        %714 = vmatpush1.msra.mxu0 0.0
        %715 = vmatprep.subr.mxu0 0.0
        %716 = vmatpush1.msra.mxu0 0.0
        %717 = vmatprep.subr.mxu0 0.0
        %718 = vmatpush1.msra.mxu0 0.0
        %719 = vmatprep.subr.mxu0 0.0
        %720 = vmatpush1.msra.mxu0 0.0
        %721 = vmatprep.subr.mxu0 0.0
        %722 = vmatpush1.msra.mxu0 0.0
        %723 = vmatprep.subr.mxu0 0.0
        %724 = vmatpush1.msra.mxu0 0.0
        %725 = vmatprep.subr.mxu0 0.0
        %726 = vmatpush1.msra.mxu0 0.0
        %727 = vmatprep.subr.mxu0 0.0
        %728 = vmatpush1.msra.mxu0 0.0
        %729 = vmatprep.subr.mxu0 0.0
        %730 = vmatpush1.msra.mxu0 0.0
        %731 = vmatprep.subr.mxu0 0.0
        %732 = vmatpush1.msra.mxu0 0.0
        %733 = vmatprep.subr.mxu0 0.0
        %734 = vmatpush1.msra.mxu0 0.0
        %735 = vmatprep.subr.mxu0 0.0
        %736 = vmatpush1.msra.mxu0 0.0
        %737 = vmatprep.subr.mxu0 0.0
        %738 = vmatpush1.msra.mxu0 0.0
        %739 = vmatprep.subr.mxu0 0.0
        %740 = vmatpush1.msra.mxu0 0.0
        %741 = vmatprep.subr.mxu0 0.0
        %742 = vmatpush1.msra.mxu0 0.0
        %743 = vmatprep.mubr.f32.mxu0 0.0
        %744 = vmatmul.mubr.f32.gmra.mrb[0].mxu0 %v537
        %v745 = vpop.f32.mrb[0].mxu0
        %v746 = vadd.f32 %v526, %v745
        %v747 = vpop.f32.mrb[0].mxu0
        %748 = vdwg.mxu0
        %749 = vmatprep.subr.mxu0 0.0
        %750 = vmatpush1.msra.mxu0 %v458
        %751 = vmatprep.subr.mxu0 0.0
        %752 = vmatpush1.msra.mxu0 %v459
        %753 = vmatprep.subr.mxu0 0.0
        %754 = vmatpush1.msra.mxu0 %v460
        %755 = vmatprep.subr.mxu0 0.0
        %756 = vmatpush1.msra.mxu0 %v461
        %757 = vmatprep.subr.mxu0 0.0
        %758 = vmatpush1.msra.mxu0 0.0
        %759 = vmatprep.subr.mxu0 0.0
        %760 = vmatpush1.msra.mxu0 0.0
        %761 = vmatprep.subr.mxu0 0.0
        %762 = vmatpush1.msra.mxu0 0.0
        %763 = vmatprep.subr.mxu0 0.0
        %764 = vmatpush1.msra.mxu0 0.0
        %765 = vmatprep.subr.mxu0 0.0
        %766 = vmatpush1.msra.mxu0 0.0
        %767 = vmatprep.subr.mxu0 0.0
        %768 = vmatpush1.msra.mxu0 0.0
        %769 = vmatprep.subr.mxu0 0.0
        %770 = vmatpush1.msra.mxu0 0.0
        %771 = vmatprep.subr.mxu0 0.0
        %772 = vmatpush1.msra.mxu0 0.0
        %773 = vmatprep.subr.mxu0 0.0
        %774 = vmatpush1.msra.mxu0 0.0
        %775 = vmatprep.subr.mxu0 0.0
        %776 = vmatpush1.msra.mxu0 0.0
        %777 = vmatprep.subr.mxu0 0.0
        %778 = vmatpush1.msra.mxu0 0.0
        %779 = vmatprep.subr.mxu0 0.0
        %780 = vmatpush1.msra.mxu0 0.0
        %781 = vmatprep.subr.mxu0 0.0
        %782 = vmatpush1.msra.mxu0 0.0
        %783 = vmatprep.subr.mxu0 0.0
        %784 = vmatpush1.msra.mxu0 0.0
        %785 = vmatprep.subr.mxu0 0.0
        %786 = vmatpush1.msra.mxu0 0.0
        %787 = vmatprep.subr.mxu0 0.0
        %788 = vmatpush1.msra.mxu0 0.0
        %789 = vmatprep.subr.mxu0 0.0
        %790 = vmatpush1.msra.mxu0 0.0
        %791 = vmatprep.subr.mxu0 0.0
        %792 = vmatpush1.msra.mxu0 0.0
        %793 = vmatprep.subr.mxu0 0.0
        %794 = vmatpush1.msra.mxu0 0.0
        %795 = vmatprep.subr.mxu0 0.0
        %796 = vmatpush1.msra.mxu0 0.0
        %797 = vmatprep.subr.mxu0 0.0
        %798 = vmatpush1.msra.mxu0 0.0
        %799 = vmatprep.subr.mxu0 0.0
        %800 = vmatpush1.msra.mxu0 0.0
        %801 = vmatprep.subr.mxu0 0.0
        %802 = vmatpush1.msra.mxu0 0.0
        %803 = vmatprep.subr.mxu0 0.0
        %804 = vmatpush1.msra.mxu0 0.0
        %805 = vmatprep.subr.mxu0 0.0
        %806 = vmatpush1.msra.mxu0 0.0
        %807 = vmatprep.subr.mxu0 0.0
        %808 = vmatpush1.msra.mxu0 0.0
        %809 = vmatprep.subr.mxu0 0.0
        %810 = vmatpush1.msra.mxu0 0.0
        %811 = vmatprep.subr.mxu0 0.0
        %812 = vmatpush1.msra.mxu0 0.0
        %813 = vmatprep.mubr.f32.mxu0 0.0
        %814 = vmatmul.mubr.f32.gmra.mrb[0].mxu0 %v537
        %v815 = vpop.f32.mrb[0].mxu0
        %v816 = vadd.f32 %v530, %v815
        %v817 = vpop.f32.mrb[0].mxu0
        %818 = vdwg.mxu0
        %v820 = vsel %vm535, %v437, 0
        %822 = vmatprep.subr.mxu0 0.0
        %823 = vmatpush1.msra.mxu0 %v446
        %824 = vmatprep.subr.mxu0 0.0
        %825 = vmatpush1.msra.mxu0 %v447
        %826 = vmatprep.subr.mxu0 0.0
        %827 = vmatpush1.msra.mxu0 %v448
        %828 = vmatprep.subr.mxu0 0.0
        %829 = vmatpush1.msra.mxu0 %v449
        %830 = vmatprep.subr.mxu0 0.0
        %831 = vmatpush1.msra.mxu0 0.0
        %832 = vmatprep.subr.mxu0 0.0
        %833 = vmatpush1.msra.mxu0 0.0
        %834 = vmatprep.subr.mxu0 0.0
        %835 = vmatpush1.msra.mxu0 0.0
        %836 = vmatprep.subr.mxu0 0.0
        %837 = vmatpush1.msra.mxu0 0.0
        %838 = vmatprep.subr.mxu0 0.0
        %839 = vmatpush1.msra.mxu0 0.0
        %840 = vmatprep.subr.mxu0 0.0
        %841 = vmatpush1.msra.mxu0 0.0
        %842 = vmatprep.subr.mxu0 0.0
        %843 = vmatpush1.msra.mxu0 0.0
        %844 = vmatprep.subr.mxu0 0.0
        %845 = vmatpush1.msra.mxu0 0.0
        %846 = vmatprep.subr.mxu0 0.0
        %847 = vmatpush1.msra.mxu0 0.0
        %848 = vmatprep.subr.mxu0 0.0
        %849 = vmatpush1.msra.mxu0 0.0
        %850 = vmatprep.subr.mxu0 0.0
        %851 = vmatpush1.msra.mxu0 0.0
        %852 = vmatprep.subr.mxu0 0.0
        %853 = vmatpush1.msra.mxu0 0.0
        %854 = vmatprep.subr.mxu0 0.0
        %855 = vmatpush1.msra.mxu0 0.0
        %856 = vmatprep.subr.mxu0 0.0
        %857 = vmatpush1.msra.mxu0 0.0
        %858 = vmatprep.subr.mxu0 0.0
        %859 = vmatpush1.msra.mxu0 0.0
        %860 = vmatprep.subr.mxu0 0.0
        %861 = vmatpush1.msra.mxu0 0.0
        %862 = vmatprep.subr.mxu0 0.0
        %863 = vmatpush1.msra.mxu0 0.0
        %864 = vmatprep.subr.mxu0 0.0
        %865 = vmatpush1.msra.mxu0 0.0
        %866 = vmatprep.subr.mxu0 0.0
        %867 = vmatpush1.msra.mxu0 0.0
        %868 = vmatprep.subr.mxu0 0.0
        %869 = vmatpush1.msra.mxu0 0.0
        %870 = vmatprep.subr.mxu0 0.0
        %871 = vmatpush1.msra.mxu0 0.0
        %872 = vmatprep.subr.mxu0 0.0
        %873 = vmatpush1.msra.mxu0 0.0
        %874 = vmatprep.subr.mxu0 0.0
        %875 = vmatpush1.msra.mxu0 0.0
        %876 = vmatprep.subr.mxu0 0.0
        %877 = vmatpush1.msra.mxu0 0.0
        %878 = vmatprep.subr.mxu0 0.0
        %879 = vmatpush1.msra.mxu0 0.0
        %880 = vmatprep.subr.mxu0 0.0
        %881 = vmatpush1.msra.mxu0 0.0
        %882 = vmatprep.subr.mxu0 0.0
        %883 = vmatpush1.msra.mxu0 0.0
        %884 = vmatprep.subr.mxu0 0.0
        %885 = vmatpush1.msra.mxu0 0.0
        %886 = vmatprep.mubr.f32.mxu0 0.0
        %887 = vmatmul.mubr.f32.gmra.mrb[0].mxu0 %v820
        %v888 = vpop.f32.mrb[0].mxu0
        %v889 = vadd.f32 %v518, %v888
        %v890 = vpop.f32.mrb[0].mxu0
        %891 = vdwg.mxu0
        %892 = vmatprep.subr.mxu0 0.0
        %893 = vmatpush1.msra.mxu0 %v450
        %894 = vmatprep.subr.mxu0 0.0
        %895 = vmatpush1.msra.mxu0 %v451
        %896 = vmatprep.subr.mxu0 0.0
        %897 = vmatpush1.msra.mxu0 %v452
        %898 = vmatprep.subr.mxu0 0.0
        %899 = vmatpush1.msra.mxu0 %v453
        %900 = vmatprep.subr.mxu0 0.0
        %901 = vmatpush1.msra.mxu0 0.0
        %902 = vmatprep.subr.mxu0 0.0
        %903 = vmatpush1.msra.mxu0 0.0
        %904 = vmatprep.subr.mxu0 0.0
        %905 = vmatpush1.msra.mxu0 0.0
        %906 = vmatprep.subr.mxu0 0.0
        %907 = vmatpush1.msra.mxu0 0.0
        %908 = vmatprep.subr.mxu0 0.0
        %909 = vmatpush1.msra.mxu0 0.0
        %910 = vmatprep.subr.mxu0 0.0
        %911 = vmatpush1.msra.mxu0 0.0
        %912 = vmatprep.subr.mxu0 0.0
        %913 = vmatpush1.msra.mxu0 0.0
        %914 = vmatprep.subr.mxu0 0.0
        %915 = vmatpush1.msra.mxu0 0.0
        %916 = vmatprep.subr.mxu0 0.0
        %917 = vmatpush1.msra.mxu0 0.0
        %918 = vmatprep.subr.mxu0 0.0
        %919 = vmatpush1.msra.mxu0 0.0
        %920 = vmatprep.subr.mxu0 0.0
        %921 = vmatpush1.msra.mxu0 0.0
        %922 = vmatprep.subr.mxu0 0.0
        %923 = vmatpush1.msra.mxu0 0.0
        %924 = vmatprep.subr.mxu0 0.0
        %925 = vmatpush1.msra.mxu0 0.0
        %926 = vmatprep.subr.mxu0 0.0
        %927 = vmatpush1.msra.mxu0 0.0
        %928 = vmatprep.subr.mxu0 0.0
        %929 = vmatpush1.msra.mxu0 0.0
        %930 = vmatprep.subr.mxu0 0.0
        %931 = vmatpush1.msra.mxu0 0.0
        %932 = vmatprep.subr.mxu0 0.0
        %933 = vmatpush1.msra.mxu0 0.0
        %934 = vmatprep.subr.mxu0 0.0
        %935 = vmatpush1.msra.mxu0 0.0
        %936 = vmatprep.subr.mxu0 0.0
        %937 = vmatpush1.msra.mxu0 0.0
        %938 = vmatprep.subr.mxu0 0.0
        %939 = vmatpush1.msra.mxu0 0.0
        %940 = vmatprep.subr.mxu0 0.0
        %941 = vmatpush1.msra.mxu0 0.0
        %942 = vmatprep.subr.mxu0 0.0
        %943 = vmatpush1.msra.mxu0 0.0
        %944 = vmatprep.subr.mxu0 0.0
        %945 = vmatpush1.msra.mxu0 0.0
        %946 = vmatprep.subr.mxu0 0.0
        %947 = vmatpush1.msra.mxu0 0.0
        %948 = vmatprep.subr.mxu0 0.0
        %949 = vmatpush1.msra.mxu0 0.0
        %950 = vmatprep.subr.mxu0 0.0
        %951 = vmatpush1.msra.mxu0 0.0
        %952 = vmatprep.subr.mxu0 0.0
        %953 = vmatpush1.msra.mxu0 0.0
        %954 = vmatprep.subr.mxu0 0.0
        %955 = vmatpush1.msra.mxu0 0.0
        %956 = vmatprep.mubr.f32.mxu0 0.0
        %957 = vmatmul.mubr.f32.gmra.mrb[0].mxu0 %v820
        %v958 = vpop.f32.mrb[0].mxu0
        %v959 = vadd.f32 %v522, %v958
        %v960 = vpop.f32.mrb[0].mxu0
        %961 = vdwg.mxu0
        %962 = vmatprep.subr.mxu0 0.0
        %963 = vmatpush1.msra.mxu0 %v454
        %964 = vmatprep.subr.mxu0 0.0
        %965 = vmatpush1.msra.mxu0 %v455
        %966 = vmatprep.subr.mxu0 0.0
        %967 = vmatpush1.msra.mxu0 %v456
        %968 = vmatprep.subr.mxu0 0.0
        %969 = vmatpush1.msra.mxu0 %v457
        %970 = vmatprep.subr.mxu0 0.0
        %971 = vmatpush1.msra.mxu0 0.0
        %972 = vmatprep.subr.mxu0 0.0
        %973 = vmatpush1.msra.mxu0 0.0
        %974 = vmatprep.subr.mxu0 0.0
        %975 = vmatpush1.msra.mxu0 0.0
        %976 = vmatprep.subr.mxu0 0.0
        %977 = vmatpush1.msra.mxu0 0.0
        %978 = vmatprep.subr.mxu0 0.0
        %979 = vmatpush1.msra.mxu0 0.0
        %980 = vmatprep.subr.mxu0 0.0
        %981 = vmatpush1.msra.mxu0 0.0
        %982 = vmatprep.subr.mxu0 0.0
        %983 = vmatpush1.msra.mxu0 0.0
        %984 = vmatprep.subr.mxu0 0.0
        %985 = vmatpush1.msra.mxu0 0.0
        %986 = vmatprep.subr.mxu0 0.0
        %987 = vmatpush1.msra.mxu0 0.0
        %988 = vmatprep.subr.mxu0 0.0
        %989 = vmatpush1.msra.mxu0 0.0
        %990 = vmatprep.subr.mxu0 0.0
        %991 = vmatpush1.msra.mxu0 0.0
        %992 = vmatprep.subr.mxu0 0.0
        %993 = vmatpush1.msra.mxu0 0.0
        %994 = vmatprep.subr.mxu0 0.0
        %995 = vmatpush1.msra.mxu0 0.0
        %996 = vmatprep.subr.mxu0 0.0
        %997 = vmatpush1.msra.mxu0 0.0
        %998 = vmatprep.subr.mxu0 0.0
        %999 = vmatpush1.msra.mxu0 0.0
        %1000 = vmatprep.subr.mxu0 0.0
        %1001 = vmatpush1.msra.mxu0 0.0
        %1002 = vmatprep.subr.mxu0 0.0
        %1003 = vmatpush1.msra.mxu0 0.0
        %1004 = vmatprep.subr.mxu0 0.0
        %1005 = vmatpush1.msra.mxu0 0.0
        %1006 = vmatprep.subr.mxu0 0.0
        %1007 = vmatpush1.msra.mxu0 0.0
        %1008 = vmatprep.subr.mxu0 0.0
        %1009 = vmatpush1.msra.mxu0 0.0
        %1010 = vmatprep.subr.mxu0 0.0
        %1011 = vmatpush1.msra.mxu0 0.0
        %1012 = vmatprep.subr.mxu0 0.0
        %1013 = vmatpush1.msra.mxu0 0.0
        %1014 = vmatprep.subr.mxu0 0.0
        %1015 = vmatpush1.msra.mxu0 0.0
        %1016 = vmatprep.subr.mxu0 0.0
        %1017 = vmatpush1.msra.mxu0 0.0
        %1018 = vmatprep.subr.mxu0 0.0
        %1019 = vmatpush1.msra.mxu0 0.0
        %1020 = vmatprep.subr.mxu0 0.0
        %1021 = vmatpush1.msra.mxu0 0.0
        %1022 = vmatprep.subr.mxu0 0.0
        %1023 = vmatpush1.msra.mxu0 0.0
        %1024 = vmatprep.subr.mxu0 0.0
        %1025 = vmatpush1.msra.mxu0 0.0
        %1026 = vmatprep.mubr.f32.mxu0 0.0
        %1027 = vmatmul.mubr.f32.gmra.mrb[0].mxu0 %v820
        %v1028 = vpop.f32.mrb[0].mxu0
        %v1029 = vadd.f32 %v526, %v1028
        %v1030 = vpop.f32.mrb[0].mxu0
        %1031 = vdwg.mxu0
        %1032 = vmatprep.subr.mxu0 0.0
        %1033 = vmatpush1.msra.mxu0 %v458
        %1034 = vmatprep.subr.mxu0 0.0
        %1035 = vmatpush1.msra.mxu0 %v459
        %1036 = vmatprep.subr.mxu0 0.0
        %1037 = vmatpush1.msra.mxu0 %v460
        %1038 = vmatprep.subr.mxu0 0.0
        %1039 = vmatpush1.msra.mxu0 %v461
        %1040 = vmatprep.subr.mxu0 0.0
        %1041 = vmatpush1.msra.mxu0 0.0
        %1042 = vmatprep.subr.mxu0 0.0
        %1043 = vmatpush1.msra.mxu0 0.0
        %1044 = vmatprep.subr.mxu0 0.0
        %1045 = vmatpush1.msra.mxu0 0.0
        %1046 = vmatprep.subr.mxu0 0.0
        %1047 = vmatpush1.msra.mxu0 0.0
        %1048 = vmatprep.subr.mxu0 0.0
        %1049 = vmatpush1.msra.mxu0 0.0
        %1050 = vmatprep.subr.mxu0 0.0
        %1051 = vmatpush1.msra.mxu0 0.0
        %1052 = vmatprep.subr.mxu0 0.0
        %1053 = vmatpush1.msra.mxu0 0.0
        %1054 = vmatprep.subr.mxu0 0.0
        %1055 = vmatpush1.msra.mxu0 0.0
        %1056 = vmatprep.subr.mxu0 0.0
        %1057 = vmatpush1.msra.mxu0 0.0
        %1058 = vmatprep.subr.mxu0 0.0
        %1059 = vmatpush1.msra.mxu0 0.0
        %1060 = vmatprep.subr.mxu0 0.0
        %1061 = vmatpush1.msra.mxu0 0.0
        %1062 = vmatprep.subr.mxu0 0.0
        %1063 = vmatpush1.msra.mxu0 0.0
        %1064 = vmatprep.subr.mxu0 0.0
        %1065 = vmatpush1.msra.mxu0 0.0
        %1066 = vmatprep.subr.mxu0 0.0
        %1067 = vmatpush1.msra.mxu0 0.0
        %1068 = vmatprep.subr.mxu0 0.0
        %1069 = vmatpush1.msra.mxu0 0.0
        %1070 = vmatprep.subr.mxu0 0.0
        %1071 = vmatpush1.msra.mxu0 0.0
        %1072 = vmatprep.subr.mxu0 0.0
        %1073 = vmatpush1.msra.mxu0 0.0
        %1074 = vmatprep.subr.mxu0 0.0
        %1075 = vmatpush1.msra.mxu0 0.0
        %1076 = vmatprep.subr.mxu0 0.0
        %1077 = vmatpush1.msra.mxu0 0.0
        %1078 = vmatprep.subr.mxu0 0.0
        %1079 = vmatpush1.msra.mxu0 0.0
        %1080 = vmatprep.subr.mxu0 0.0
        %1081 = vmatpush1.msra.mxu0 0.0
        %1082 = vmatprep.subr.mxu0 0.0
        %1083 = vmatpush1.msra.mxu0 0.0
        %1084 = vmatprep.subr.mxu0 0.0
        %1085 = vmatpush1.msra.mxu0 0.0
        %1086 = vmatprep.subr.mxu0 0.0
        %1087 = vmatpush1.msra.mxu0 0.0
        %1088 = vmatprep.subr.mxu0 0.0
        %1089 = vmatpush1.msra.mxu0 0.0
        %1090 = vmatprep.subr.mxu0 0.0
        %1091 = vmatpush1.msra.mxu0 0.0
        %1092 = vmatprep.subr.mxu0 0.0
        %1093 = vmatpush1.msra.mxu0 0.0
        %1094 = vmatprep.subr.mxu0 0.0
        %1095 = vmatpush1.msra.mxu0 0.0
        %1096 = vmatprep.mubr.f32.mxu0 0.0
        %1097 = vmatmul.mubr.f32.gmra.mrb[0].mxu0 %v820
        %v1098 = vpop.f32.mrb[0].mxu0
        %v1099 = vadd.f32 %v530, %v1098
        %v1100 = vpop.f32.mrb[0].mxu0
        %1101 = vdwg.mxu0
        %v1106 = vlaneseq
        %v1107 = vshrl.u32 %v1106, 7
        %v1108 = vsub.s32 0, %v1107
        %v1109 = vrot.slane %v498, %v1108
        %v1110 = vlaneseq
        %v1111 = vshrl.u32 %v1110, 7
        %v1112 = vsub.s32 0, %v1111
        %v1113 = vrot.slane %v499, %v1112
        %v1114 = vlaneseq
        %v1115 = vshrl.u32 %v1114, 7
        %v1116 = vsub.s32 0, %v1115
        %v1117 = vrot.slane %v500, %v1116
        %v1118 = vlaneseq
        %v1119 = vshrl.u32 %v1118, 7
        %v1120 = vsub.s32 0, %v1119
        %v1121 = vrot.slane %v501, %v1120
        %1126 = vmatprep.subr.mxu0 0.0
        %1127 = vmatpush1.msra.mxu0 %v462
        %1128 = vmatprep.subr.mxu0 0.0
        %1129 = vmatpush1.msra.mxu0 %v463
        %1130 = vmatprep.subr.mxu0 0.0
        %1131 = vmatpush1.msra.mxu0 %v464
        %1132 = vmatprep.subr.mxu0 0.0
        %1133 = vmatpush1.msra.mxu0 %v465
        %1134 = vmatprep.subr.mxu0 0.0
        %1135 = vmatpush1.msra.mxu0 0.0
        %1136 = vmatprep.subr.mxu0 0.0
        %1137 = vmatpush1.msra.mxu0 0.0
        %1138 = vmatprep.subr.mxu0 0.0
        %1139 = vmatpush1.msra.mxu0 0.0
        %1140 = vmatprep.subr.mxu0 0.0
        %1141 = vmatpush1.msra.mxu0 0.0
        %1142 = vmatprep.subr.mxu0 0.0
        %1143 = vmatpush1.msra.mxu0 0.0
        %1144 = vmatprep.subr.mxu0 0.0
        %1145 = vmatpush1.msra.mxu0 0.0
        %1146 = vmatprep.subr.mxu0 0.0
        %1147 = vmatpush1.msra.mxu0 0.0
        %1148 = vmatprep.subr.mxu0 0.0
        %1149 = vmatpush1.msra.mxu0 0.0
        %1150 = vmatprep.subr.mxu0 0.0
        %1151 = vmatpush1.msra.mxu0 0.0
        %1152 = vmatprep.subr.mxu0 0.0
        %1153 = vmatpush1.msra.mxu0 0.0
        %1154 = vmatprep.subr.mxu0 0.0
        %1155 = vmatpush1.msra.mxu0 0.0
        %1156 = vmatprep.subr.mxu0 0.0
        %1157 = vmatpush1.msra.mxu0 0.0
        %1158 = vmatprep.subr.mxu0 0.0
        %1159 = vmatpush1.msra.mxu0 0.0
        %1160 = vmatprep.subr.mxu0 0.0
        %1161 = vmatpush1.msra.mxu0 0.0
        %1162 = vmatprep.subr.mxu0 0.0
        %1163 = vmatpush1.msra.mxu0 0.0
        %1164 = vmatprep.subr.mxu0 0.0
        %1165 = vmatpush1.msra.mxu0 0.0
        %1166 = vmatprep.subr.mxu0 0.0
        %1167 = vmatpush1.msra.mxu0 0.0
        %1168 = vmatprep.subr.mxu0 0.0
        %1169 = vmatpush1.msra.mxu0 0.0
        %1170 = vmatprep.subr.mxu0 0.0
        %1171 = vmatpush1.msra.mxu0 0.0
        %1172 = vmatprep.subr.mxu0 0.0
        %1173 = vmatpush1.msra.mxu0 0.0
        %1174 = vmatprep.subr.mxu0 0.0
        %1175 = vmatpush1.msra.mxu0 0.0
        %1176 = vmatprep.subr.mxu0 0.0
        %1177 = vmatpush1.msra.mxu0 0.0
        %1178 = vmatprep.subr.mxu0 0.0
        %1179 = vmatpush1.msra.mxu0 0.0
        %1180 = vmatprep.subr.mxu0 0.0
        %1181 = vmatpush1.msra.mxu0 0.0
        %1182 = vmatprep.subr.mxu0 0.0
        %1183 = vmatpush1.msra.mxu0 0.0
        %1184 = vmatprep.subr.mxu0 0.0
        %1185 = vmatpush1.msra.mxu0 0.0
        %1186 = vmatprep.subr.mxu0 0.0
        %1187 = vmatpush1.msra.mxu0 0.0
        %1188 = vmatprep.subr.mxu0 0.0
        %1189 = vmatpush1.msra.mxu0 0.0
        %1190 = vmatprep.mubr.f32.mxu0 0.0
        %1191 = vmatmul.mubr.f32.gmra.mrb[0].mxu0 %v537
        %v1192 = vpop.f32.mrb[0].mxu0
        %v1193 = vadd.f32 %v1109, %v1192
        %v1194 = vpop.f32.mrb[0].mxu0
        %1195 = vdwg.mxu0
        %1196 = vmatprep.subr.mxu0 0.0
        %1197 = vmatpush1.msra.mxu0 %v466
        %1198 = vmatprep.subr.mxu0 0.0
        %1199 = vmatpush1.msra.mxu0 %v467
        %1200 = vmatprep.subr.mxu0 0.0
        %1201 = vmatpush1.msra.mxu0 %v468
        %1202 = vmatprep.subr.mxu0 0.0
        %1203 = vmatpush1.msra.mxu0 %v469
        %1204 = vmatprep.subr.mxu0 0.0
        %1205 = vmatpush1.msra.mxu0 0.0
        %1206 = vmatprep.subr.mxu0 0.0
        %1207 = vmatpush1.msra.mxu0 0.0
        %1208 = vmatprep.subr.mxu0 0.0
        %1209 = vmatpush1.msra.mxu0 0.0
        %1210 = vmatprep.subr.mxu0 0.0
        %1211 = vmatpush1.msra.mxu0 0.0
        %1212 = vmatprep.subr.mxu0 0.0
        %1213 = vmatpush1.msra.mxu0 0.0
        %1214 = vmatprep.subr.mxu0 0.0
        %1215 = vmatpush1.msra.mxu0 0.0
        %1216 = vmatprep.subr.mxu0 0.0
        %1217 = vmatpush1.msra.mxu0 0.0
        %1218 = vmatprep.subr.mxu0 0.0
        %1219 = vmatpush1.msra.mxu0 0.0
        %1220 = vmatprep.subr.mxu0 0.0
        %1221 = vmatpush1.msra.mxu0 0.0
        %1222 = vmatprep.subr.mxu0 0.0
        %1223 = vmatpush1.msra.mxu0 0.0
        %1224 = vmatprep.subr.mxu0 0.0
        %1225 = vmatpush1.msra.mxu0 0.0
        %1226 = vmatprep.subr.mxu0 0.0
        %1227 = vmatpush1.msra.mxu0 0.0
        %1228 = vmatprep.subr.mxu0 0.0
        %1229 = vmatpush1.msra.mxu0 0.0
        %1230 = vmatprep.subr.mxu0 0.0
        %1231 = vmatpush1.msra.mxu0 0.0
        %1232 = vmatprep.subr.mxu0 0.0
        %1233 = vmatpush1.msra.mxu0 0.0
        %1234 = vmatprep.subr.mxu0 0.0
        %1235 = vmatpush1.msra.mxu0 0.0
        %1236 = vmatprep.subr.mxu0 0.0
        %1237 = vmatpush1.msra.mxu0 0.0
        %1238 = vmatprep.subr.mxu0 0.0
        %1239 = vmatpush1.msra.mxu0 0.0
        %1240 = vmatprep.subr.mxu0 0.0
        %1241 = vmatpush1.msra.mxu0 0.0
        %1242 = vmatprep.subr.mxu0 0.0
        %1243 = vmatpush1.msra.mxu0 0.0
        %1244 = vmatprep.subr.mxu0 0.0
        %1245 = vmatpush1.msra.mxu0 0.0
        %1246 = vmatprep.subr.mxu0 0.0
        %1247 = vmatpush1.msra.mxu0 0.0
        %1248 = vmatprep.subr.mxu0 0.0
        %1249 = vmatpush1.msra.mxu0 0.0
        %1250 = vmatprep.subr.mxu0 0.0
        %1251 = vmatpush1.msra.mxu0 0.0
        %1252 = vmatprep.subr.mxu0 0.0
        %1253 = vmatpush1.msra.mxu0 0.0
        %1254 = vmatprep.subr.mxu0 0.0
        %1255 = vmatpush1.msra.mxu0 0.0
        %1256 = vmatprep.subr.mxu0 0.0
        %1257 = vmatpush1.msra.mxu0 0.0
        %1258 = vmatprep.subr.mxu0 0.0
        %1259 = vmatpush1.msra.mxu0 0.0
        %1260 = vmatprep.mubr.f32.mxu0 0.0
        %1261 = vmatmul.mubr.f32.gmra.mrb[0].mxu0 %v537
        %v1262 = vpop.f32.mrb[0].mxu0
        %v1263 = vadd.f32 %v1113, %v1262
        %v1264 = vpop.f32.mrb[0].mxu0
        %1265 = vdwg.mxu0
        %1266 = vmatprep.subr.mxu0 0.0
        %1267 = vmatpush1.msra.mxu0 %v470
        %1268 = vmatprep.subr.mxu0 0.0
        %1269 = vmatpush1.msra.mxu0 %v471
        %1270 = vmatprep.subr.mxu0 0.0
        %1271 = vmatpush1.msra.mxu0 %v472
        %1272 = vmatprep.subr.mxu0 0.0
        %1273 = vmatpush1.msra.mxu0 %v473
        %1274 = vmatprep.subr.mxu0 0.0
        %1275 = vmatpush1.msra.mxu0 0.0
        %1276 = vmatprep.subr.mxu0 0.0
        %1277 = vmatpush1.msra.mxu0 0.0
        %1278 = vmatprep.subr.mxu0 0.0
        %1279 = vmatpush1.msra.mxu0 0.0
        %1280 = vmatprep.subr.mxu0 0.0
        %1281 = vmatpush1.msra.mxu0 0.0
        %1282 = vmatprep.subr.mxu0 0.0
        %1283 = vmatpush1.msra.mxu0 0.0
        %1284 = vmatprep.subr.mxu0 0.0
        %1285 = vmatpush1.msra.mxu0 0.0
        %1286 = vmatprep.subr.mxu0 0.0
        %1287 = vmatpush1.msra.mxu0 0.0
        %1288 = vmatprep.subr.mxu0 0.0
        %1289 = vmatpush1.msra.mxu0 0.0
        %1290 = vmatprep.subr.mxu0 0.0
        %1291 = vmatpush1.msra.mxu0 0.0
        %1292 = vmatprep.subr.mxu0 0.0
        %1293 = vmatpush1.msra.mxu0 0.0
        %1294 = vmatprep.subr.mxu0 0.0
        %1295 = vmatpush1.msra.mxu0 0.0
        %1296 = vmatprep.subr.mxu0 0.0
        %1297 = vmatpush1.msra.mxu0 0.0
        %1298 = vmatprep.subr.mxu0 0.0
        %1299 = vmatpush1.msra.mxu0 0.0
        %1300 = vmatprep.subr.mxu0 0.0
        %1301 = vmatpush1.msra.mxu0 0.0
        %1302 = vmatprep.subr.mxu0 0.0
        %1303 = vmatpush1.msra.mxu0 0.0
        %1304 = vmatprep.subr.mxu0 0.0
        %1305 = vmatpush1.msra.mxu0 0.0
        %1306 = vmatprep.subr.mxu0 0.0
        %1307 = vmatpush1.msra.mxu0 0.0
        %1308 = vmatprep.subr.mxu0 0.0
        %1309 = vmatpush1.msra.mxu0 0.0
        %1310 = vmatprep.subr.mxu0 0.0
        %1311 = vmatpush1.msra.mxu0 0.0
        %1312 = vmatprep.subr.mxu0 0.0
        %1313 = vmatpush1.msra.mxu0 0.0
        %1314 = vmatprep.subr.mxu0 0.0
        %1315 = vmatpush1.msra.mxu0 0.0
        %1316 = vmatprep.subr.mxu0 0.0
        %1317 = vmatpush1.msra.mxu0 0.0
        %1318 = vmatprep.subr.mxu0 0.0
        %1319 = vmatpush1.msra.mxu0 0.0
        %1320 = vmatprep.subr.mxu0 0.0
        %1321 = vmatpush1.msra.mxu0 0.0
        %1322 = vmatprep.subr.mxu0 0.0
        %1323 = vmatpush1.msra.mxu0 0.0
        %1324 = vmatprep.subr.mxu0 0.0
        %1325 = vmatpush1.msra.mxu0 0.0
        %1326 = vmatprep.subr.mxu0 0.0
        %1327 = vmatpush1.msra.mxu0 0.0
        %1328 = vmatprep.subr.mxu0 0.0
        %1329 = vmatpush1.msra.mxu0 0.0
        %1330 = vmatprep.mubr.f32.mxu0 0.0
        %1331 = vmatmul.mubr.f32.gmra.mrb[0].mxu0 %v537
        %v1332 = vpop.f32.mrb[0].mxu0
        %v1333 = vadd.f32 %v1117, %v1332
        %v1334 = vpop.f32.mrb[0].mxu0
        %1335 = vdwg.mxu0
        %1336 = vmatprep.subr.mxu0 0.0
        %1337 = vmatpush1.msra.mxu0 %v474
        %1338 = vmatprep.subr.mxu0 0.0
        %1339 = vmatpush1.msra.mxu0 %v475
        %1340 = vmatprep.subr.mxu0 0.0
        %1341 = vmatpush1.msra.mxu0 %v476
        %1342 = vmatprep.subr.mxu0 0.0
        %1343 = vmatpush1.msra.mxu0 %v477
        %1344 = vmatprep.subr.mxu0 0.0
        %1345 = vmatpush1.msra.mxu0 0.0
        %1346 = vmatprep.subr.mxu0 0.0
        %1347 = vmatpush1.msra.mxu0 0.0
        %1348 = vmatprep.subr.mxu0 0.0
        %1349 = vmatpush1.msra.mxu0 0.0
        %1350 = vmatprep.subr.mxu0 0.0
        %1351 = vmatpush1.msra.mxu0 0.0
        %1352 = vmatprep.subr.mxu0 0.0
        %1353 = vmatpush1.msra.mxu0 0.0
        %1354 = vmatprep.subr.mxu0 0.0
        %1355 = vmatpush1.msra.mxu0 0.0
        %1356 = vmatprep.subr.mxu0 0.0
        %1357 = vmatpush1.msra.mxu0 0.0
        %1358 = vmatprep.subr.mxu0 0.0
        %1359 = vmatpush1.msra.mxu0 0.0
        %1360 = vmatprep.subr.mxu0 0.0
        %1361 = vmatpush1.msra.mxu0 0.0
        %1362 = vmatprep.subr.mxu0 0.0
        %1363 = vmatpush1.msra.mxu0 0.0
        %1364 = vmatprep.subr.mxu0 0.0
        %1365 = vmatpush1.msra.mxu0 0.0
        %1366 = vmatprep.subr.mxu0 0.0
        %1367 = vmatpush1.msra.mxu0 0.0
        %1368 = vmatprep.subr.mxu0 0.0
        %1369 = vmatpush1.msra.mxu0 0.0
        %1370 = vmatprep.subr.mxu0 0.0
        %1371 = vmatpush1.msra.mxu0 0.0
        %1372 = vmatprep.subr.mxu0 0.0
        %1373 = vmatpush1.msra.mxu0 0.0
        %1374 = vmatprep.subr.mxu0 0.0
        %1375 = vmatpush1.msra.mxu0 0.0
        %1376 = vmatprep.subr.mxu0 0.0
        %1377 = vmatpush1.msra.mxu0 0.0
        %1378 = vmatprep.subr.mxu0 0.0
        %1379 = vmatpush1.msra.mxu0 0.0
        %1380 = vmatprep.subr.mxu0 0.0
        %1381 = vmatpush1.msra.mxu0 0.0
        %1382 = vmatprep.subr.mxu0 0.0
        %1383 = vmatpush1.msra.mxu0 0.0
        %1384 = vmatprep.subr.mxu0 0.0
        %1385 = vmatpush1.msra.mxu0 0.0
        %1386 = vmatprep.subr.mxu0 0.0
        %1387 = vmatpush1.msra.mxu0 0.0
        %1388 = vmatprep.subr.mxu0 0.0
        %1389 = vmatpush1.msra.mxu0 0.0
        %1390 = vmatprep.subr.mxu0 0.0
        %1391 = vmatpush1.msra.mxu0 0.0
        %1392 = vmatprep.subr.mxu0 0.0
        %1393 = vmatpush1.msra.mxu0 0.0
        %1394 = vmatprep.subr.mxu0 0.0
        %1395 = vmatpush1.msra.mxu0 0.0
        %1396 = vmatprep.subr.mxu0 0.0
        %1397 = vmatpush1.msra.mxu0 0.0
        %1398 = vmatprep.subr.mxu0 0.0
        %1399 = vmatpush1.msra.mxu0 0.0
        %1400 = vmatprep.mubr.f32.mxu0 0.0
        %1401 = vmatmul.mubr.f32.gmra.mrb[0].mxu0 %v537
        %v1402 = vpop.f32.mrb[0].mxu0
        %v1403 = vadd.f32 %v1121, %v1402
        %v1404 = vpop.f32.mrb[0].mxu0
        %1405 = vdwg.mxu0
        %1406 = vmatprep.subr.mxu0 0.0
        %1407 = vmatpush1.msra.mxu0 %v462
        %1408 = vmatprep.subr.mxu0 0.0
        %1409 = vmatpush1.msra.mxu0 %v463
        %1410 = vmatprep.subr.mxu0 0.0
        %1411 = vmatpush1.msra.mxu0 %v464
        %1412 = vmatprep.subr.mxu0 0.0
        %1413 = vmatpush1.msra.mxu0 %v465
        %1414 = vmatprep.subr.mxu0 0.0
        %1415 = vmatpush1.msra.mxu0 0.0
        %1416 = vmatprep.subr.mxu0 0.0
        %1417 = vmatpush1.msra.mxu0 0.0
        %1418 = vmatprep.subr.mxu0 0.0
        %1419 = vmatpush1.msra.mxu0 0.0
        %1420 = vmatprep.subr.mxu0 0.0
        %1421 = vmatpush1.msra.mxu0 0.0
        %1422 = vmatprep.subr.mxu0 0.0
        %1423 = vmatpush1.msra.mxu0 0.0
        %1424 = vmatprep.subr.mxu0 0.0
        %1425 = vmatpush1.msra.mxu0 0.0
        %1426 = vmatprep.subr.mxu0 0.0
        %1427 = vmatpush1.msra.mxu0 0.0
        %1428 = vmatprep.subr.mxu0 0.0
        %1429 = vmatpush1.msra.mxu0 0.0
        %1430 = vmatprep.subr.mxu0 0.0
        %1431 = vmatpush1.msra.mxu0 0.0
        %1432 = vmatprep.subr.mxu0 0.0
        %1433 = vmatpush1.msra.mxu0 0.0
        %1434 = vmatprep.subr.mxu0 0.0
        %1435 = vmatpush1.msra.mxu0 0.0
        %1436 = vmatprep.subr.mxu0 0.0
        %1437 = vmatpush1.msra.mxu0 0.0
        %1438 = vmatprep.subr.mxu0 0.0
        %1439 = vmatpush1.msra.mxu0 0.0
        %1440 = vmatprep.subr.mxu0 0.0
        %1441 = vmatpush1.msra.mxu0 0.0
        %1442 = vmatprep.subr.mxu0 0.0
        %1443 = vmatpush1.msra.mxu0 0.0
        %1444 = vmatprep.subr.mxu0 0.0
        %1445 = vmatpush1.msra.mxu0 0.0
        %1446 = vmatprep.subr.mxu0 0.0
        %1447 = vmatpush1.msra.mxu0 0.0
        %1448 = vmatprep.subr.mxu0 0.0
        %1449 = vmatpush1.msra.mxu0 0.0
        %1450 = vmatprep.subr.mxu0 0.0
        %1451 = vmatpush1.msra.mxu0 0.0
        %1452 = vmatprep.subr.mxu0 0.0
        %1453 = vmatpush1.msra.mxu0 0.0
        %1454 = vmatprep.subr.mxu0 0.0
        %1455 = vmatpush1.msra.mxu0 0.0
        %1456 = vmatprep.subr.mxu0 0.0
        %1457 = vmatpush1.msra.mxu0 0.0
        %1458 = vmatprep.subr.mxu0 0.0
        %1459 = vmatpush1.msra.mxu0 0.0
        %1460 = vmatprep.subr.mxu0 0.0
        %1461 = vmatpush1.msra.mxu0 0.0
        %1462 = vmatprep.subr.mxu0 0.0
        %1463 = vmatpush1.msra.mxu0 0.0
        %1464 = vmatprep.subr.mxu0 0.0
        %1465 = vmatpush1.msra.mxu0 0.0
        %1466 = vmatprep.subr.mxu0 0.0
        %1467 = vmatpush1.msra.mxu0 0.0
        %1468 = vmatprep.subr.mxu0 0.0
        %1469 = vmatpush1.msra.mxu0 0.0
        %1470 = vmatprep.mubr.f32.mxu0 0.0
        %1471 = vmatmul.mubr.f32.gmra.mrb[0].mxu0 %v820
        %v1472 = vpop.f32.mrb[0].mxu0
        %v1473 = vadd.f32 %v1109, %v1472
        %v1474 = vpop.f32.mrb[0].mxu0
        %1475 = vdwg.mxu0
        %1476 = vmatprep.subr.mxu0 0.0
        %1477 = vmatpush1.msra.mxu0 %v466
        %1478 = vmatprep.subr.mxu0 0.0
        %1479 = vmatpush1.msra.mxu0 %v467
        %1480 = vmatprep.subr.mxu0 0.0
        %1481 = vmatpush1.msra.mxu0 %v468
        %1482 = vmatprep.subr.mxu0 0.0
        %1483 = vmatpush1.msra.mxu0 %v469
        %1484 = vmatprep.subr.mxu0 0.0
        %1485 = vmatpush1.msra.mxu0 0.0
        %1486 = vmatprep.subr.mxu0 0.0
        %1487 = vmatpush1.msra.mxu0 0.0
        %1488 = vmatprep.subr.mxu0 0.0
        %1489 = vmatpush1.msra.mxu0 0.0
        %1490 = vmatprep.subr.mxu0 0.0
        %1491 = vmatpush1.msra.mxu0 0.0
        %1492 = vmatprep.subr.mxu0 0.0
        %1493 = vmatpush1.msra.mxu0 0.0
        %1494 = vmatprep.subr.mxu0 0.0
        %1495 = vmatpush1.msra.mxu0 0.0
        %1496 = vmatprep.subr.mxu0 0.0
        %1497 = vmatpush1.msra.mxu0 0.0
        %1498 = vmatprep.subr.mxu0 0.0
        %1499 = vmatpush1.msra.mxu0 0.0
        %1500 = vmatprep.subr.mxu0 0.0
        %1501 = vmatpush1.msra.mxu0 0.0
        %1502 = vmatprep.subr.mxu0 0.0
        %1503 = vmatpush1.msra.mxu0 0.0
        %1504 = vmatprep.subr.mxu0 0.0
        %1505 = vmatpush1.msra.mxu0 0.0
        %1506 = vmatprep.subr.mxu0 0.0
        %1507 = vmatpush1.msra.mxu0 0.0
        %1508 = vmatprep.subr.mxu0 0.0
        %1509 = vmatpush1.msra.mxu0 0.0
        %1510 = vmatprep.subr.mxu0 0.0
        %1511 = vmatpush1.msra.mxu0 0.0
        %1512 = vmatprep.subr.mxu0 0.0
        %1513 = vmatpush1.msra.mxu0 0.0
        %1514 = vmatprep.subr.mxu0 0.0
        %1515 = vmatpush1.msra.mxu0 0.0
        %1516 = vmatprep.subr.mxu0 0.0
        %1517 = vmatpush1.msra.mxu0 0.0
        %1518 = vmatprep.subr.mxu0 0.0
        %1519 = vmatpush1.msra.mxu0 0.0
        %1520 = vmatprep.subr.mxu0 0.0
        %1521 = vmatpush1.msra.mxu0 0.0
        %1522 = vmatprep.subr.mxu0 0.0
        %1523 = vmatpush1.msra.mxu0 0.0
        %1524 = vmatprep.subr.mxu0 0.0
        %1525 = vmatpush1.msra.mxu0 0.0
        %1526 = vmatprep.subr.mxu0 0.0
        %1527 = vmatpush1.msra.mxu0 0.0
        %1528 = vmatprep.subr.mxu0 0.0
        %1529 = vmatpush1.msra.mxu0 0.0
        %1530 = vmatprep.subr.mxu0 0.0
        %1531 = vmatpush1.msra.mxu0 0.0
        %1532 = vmatprep.subr.mxu0 0.0
        %1533 = vmatpush1.msra.mxu0 0.0
        %1534 = vmatprep.subr.mxu0 0.0
        %1535 = vmatpush1.msra.mxu0 0.0
        %1536 = vmatprep.subr.mxu0 0.0
        %1537 = vmatpush1.msra.mxu0 0.0
        %1538 = vmatprep.subr.mxu0 0.0
        %1539 = vmatpush1.msra.mxu0 0.0
        %1540 = vmatprep.mubr.f32.mxu0 0.0
        %1541 = vmatmul.mubr.f32.gmra.mrb[0].mxu0 %v820
        %v1542 = vpop.f32.mrb[0].mxu0
        %v1543 = vadd.f32 %v1113, %v1542
        %v1544 = vpop.f32.mrb[0].mxu0
        %1545 = vdwg.mxu0
        %1546 = vmatprep.subr.mxu0 0.0
        %1547 = vmatpush1.msra.mxu0 %v470
        %1548 = vmatprep.subr.mxu0 0.0
        %1549 = vmatpush1.msra.mxu0 %v471
        %1550 = vmatprep.subr.mxu0 0.0
        %1551 = vmatpush1.msra.mxu0 %v472
        %1552 = vmatprep.subr.mxu0 0.0
        %1553 = vmatpush1.msra.mxu0 %v473
        %1554 = vmatprep.subr.mxu0 0.0
        %1555 = vmatpush1.msra.mxu0 0.0
        %1556 = vmatprep.subr.mxu0 0.0
        %1557 = vmatpush1.msra.mxu0 0.0
        %1558 = vmatprep.subr.mxu0 0.0
        %1559 = vmatpush1.msra.mxu0 0.0
        %1560 = vmatprep.subr.mxu0 0.0
        %1561 = vmatpush1.msra.mxu0 0.0
        %1562 = vmatprep.subr.mxu0 0.0
        %1563 = vmatpush1.msra.mxu0 0.0
        %1564 = vmatprep.subr.mxu0 0.0
        %1565 = vmatpush1.msra.mxu0 0.0
        %1566 = vmatprep.subr.mxu0 0.0
        %1567 = vmatpush1.msra.mxu0 0.0
        %1568 = vmatprep.subr.mxu0 0.0
        %1569 = vmatpush1.msra.mxu0 0.0
        %1570 = vmatprep.subr.mxu0 0.0
        %1571 = vmatpush1.msra.mxu0 0.0
        %1572 = vmatprep.subr.mxu0 0.0
        %1573 = vmatpush1.msra.mxu0 0.0
        %1574 = vmatprep.subr.mxu0 0.0
        %1575 = vmatpush1.msra.mxu0 0.0
        %1576 = vmatprep.subr.mxu0 0.0
        %1577 = vmatpush1.msra.mxu0 0.0
        %1578 = vmatprep.subr.mxu0 0.0
        %1579 = vmatpush1.msra.mxu0 0.0
        %1580 = vmatprep.subr.mxu0 0.0
        %1581 = vmatpush1.msra.mxu0 0.0
        %1582 = vmatprep.subr.mxu0 0.0
        %1583 = vmatpush1.msra.mxu0 0.0
        %1584 = vmatprep.subr.mxu0 0.0
        %1585 = vmatpush1.msra.mxu0 0.0
        %1586 = vmatprep.subr.mxu0 0.0
        %1587 = vmatpush1.msra.mxu0 0.0
        %1588 = vmatprep.subr.mxu0 0.0
        %1589 = vmatpush1.msra.mxu0 0.0
        %1590 = vmatprep.subr.mxu0 0.0
        %1591 = vmatpush1.msra.mxu0 0.0
        %1592 = vmatprep.subr.mxu0 0.0
        %1593 = vmatpush1.msra.mxu0 0.0
        %1594 = vmatprep.subr.mxu0 0.0
        %1595 = vmatpush1.msra.mxu0 0.0
        %1596 = vmatprep.subr.mxu0 0.0
        %1597 = vmatpush1.msra.mxu0 0.0
        %1598 = vmatprep.subr.mxu0 0.0
        %1599 = vmatpush1.msra.mxu0 0.0
        %1600 = vmatprep.subr.mxu0 0.0
        %1601 = vmatpush1.msra.mxu0 0.0
        %1602 = vmatprep.subr.mxu0 0.0
        %1603 = vmatpush1.msra.mxu0 0.0
        %1604 = vmatprep.subr.mxu0 0.0
        %1605 = vmatpush1.msra.mxu0 0.0
        %1606 = vmatprep.subr.mxu0 0.0
        %1607 = vmatpush1.msra.mxu0 0.0
        %1608 = vmatprep.subr.mxu0 0.0
        %1609 = vmatpush1.msra.mxu0 0.0
        %1610 = vmatprep.mubr.f32.mxu0 0.0
        %1611 = vmatmul.mubr.f32.gmra.mrb[0].mxu0 %v820
        %v1612 = vpop.f32.mrb[0].mxu0
        %v1613 = vadd.f32 %v1117, %v1612
        %v1614 = vpop.f32.mrb[0].mxu0
        %1615 = vdwg.mxu0
        %1616 = vmatprep.subr.mxu0 0.0
        %1617 = vmatpush1.msra.mxu0 %v474
        %1618 = vmatprep.subr.mxu0 0.0
        %1619 = vmatpush1.msra.mxu0 %v475
        %1620 = vmatprep.subr.mxu0 0.0
        %1621 = vmatpush1.msra.mxu0 %v476
        %1622 = vmatprep.subr.mxu0 0.0
        %1623 = vmatpush1.msra.mxu0 %v477
        %1624 = vmatprep.subr.mxu0 0.0
        %1625 = vmatpush1.msra.mxu0 0.0
        %1626 = vmatprep.subr.mxu0 0.0
        %1627 = vmatpush1.msra.mxu0 0.0
        %1628 = vmatprep.subr.mxu0 0.0
        %1629 = vmatpush1.msra.mxu0 0.0
        %1630 = vmatprep.subr.mxu0 0.0
        %1631 = vmatpush1.msra.mxu0 0.0
        %1632 = vmatprep.subr.mxu0 0.0
        %1633 = vmatpush1.msra.mxu0 0.0
        %1634 = vmatprep.subr.mxu0 0.0
        %1635 = vmatpush1.msra.mxu0 0.0
        %1636 = vmatprep.subr.mxu0 0.0
        %1637 = vmatpush1.msra.mxu0 0.0
        %1638 = vmatprep.subr.mxu0 0.0
        %1639 = vmatpush1.msra.mxu0 0.0
        %1640 = vmatprep.subr.mxu0 0.0
        %1641 = vmatpush1.msra.mxu0 0.0
        %1642 = vmatprep.subr.mxu0 0.0
        %1643 = vmatpush1.msra.mxu0 0.0
        %1644 = vmatprep.subr.mxu0 0.0
        %1645 = vmatpush1.msra.mxu0 0.0
        %1646 = vmatprep.subr.mxu0 0.0
        %1647 = vmatpush1.msra.mxu0 0.0
        %1648 = vmatprep.subr.mxu0 0.0
        %1649 = vmatpush1.msra.mxu0 0.0
        %1650 = vmatprep.subr.mxu0 0.0
        %1651 = vmatpush1.msra.mxu0 0.0
        %1652 = vmatprep.subr.mxu0 0.0
        %1653 = vmatpush1.msra.mxu0 0.0
        %1654 = vmatprep.subr.mxu0 0.0
        %1655 = vmatpush1.msra.mxu0 0.0
        %1656 = vmatprep.subr.mxu0 0.0
        %1657 = vmatpush1.msra.mxu0 0.0
        %1658 = vmatprep.subr.mxu0 0.0
        %1659 = vmatpush1.msra.mxu0 0.0
        %1660 = vmatprep.subr.mxu0 0.0
        %1661 = vmatpush1.msra.mxu0 0.0
        %1662 = vmatprep.subr.mxu0 0.0
        %1663 = vmatpush1.msra.mxu0 0.0
        %1664 = vmatprep.subr.mxu0 0.0
        %1665 = vmatpush1.msra.mxu0 0.0
        %1666 = vmatprep.subr.mxu0 0.0
        %1667 = vmatpush1.msra.mxu0 0.0
        %1668 = vmatprep.subr.mxu0 0.0
        %1669 = vmatpush1.msra.mxu0 0.0
        %1670 = vmatprep.subr.mxu0 0.0
        %1671 = vmatpush1.msra.mxu0 0.0
        %1672 = vmatprep.subr.mxu0 0.0
        %1673 = vmatpush1.msra.mxu0 0.0
        %1674 = vmatprep.subr.mxu0 0.0
        %1675 = vmatpush1.msra.mxu0 0.0
        %1676 = vmatprep.subr.mxu0 0.0
        %1677 = vmatpush1.msra.mxu0 0.0
        %1678 = vmatprep.subr.mxu0 0.0
        %1679 = vmatpush1.msra.mxu0 0.0
        %1680 = vmatprep.mubr.f32.mxu0 0.0
        %1681 = vmatmul.mubr.f32.gmra.mrb[0].mxu0 %v820
        %v1682 = vpop.f32.mrb[0].mxu0
        %v1683 = vadd.f32 %v1121, %v1682
        %v1684 = vpop.f32.mrb[0].mxu0
        %1685 = vdwg.mxu0
        %v1690 = vlaneseq
        %v1691 = vshrl.u32 %v1690, 7
        %v1692 = vsub.s32 0, %v1691
        %v1693 = vrot.slane %v502, %v1692
        %v1694 = vlaneseq
        %v1695 = vshrl.u32 %v1694, 7
        %v1696 = vsub.s32 0, %v1695
        %v1697 = vrot.slane %v503, %v1696
        %v1698 = vlaneseq
        %v1699 = vshrl.u32 %v1698, 7
        %v1700 = vsub.s32 0, %v1699
        %v1701 = vrot.slane %v504, %v1700
        %v1702 = vlaneseq
        %v1703 = vshrl.u32 %v1702, 7
        %v1704 = vsub.s32 0, %v1703
        %v1705 = vrot.slane %v505, %v1704
        %1710 = vmatprep.subr.mxu0 0.0
        %1711 = vmatpush1.msra.mxu0 %v478
        %1712 = vmatprep.subr.mxu0 0.0
        %1713 = vmatpush1.msra.mxu0 %v479
        %1714 = vmatprep.subr.mxu0 0.0
        %1715 = vmatpush1.msra.mxu0 %v480
        %1716 = vmatprep.subr.mxu0 0.0
        %1717 = vmatpush1.msra.mxu0 %v481
        %1718 = vmatprep.subr.mxu0 0.0
        %1719 = vmatpush1.msra.mxu0 0.0
        %1720 = vmatprep.subr.mxu0 0.0
        %1721 = vmatpush1.msra.mxu0 0.0
        %1722 = vmatprep.subr.mxu0 0.0
        %1723 = vmatpush1.msra.mxu0 0.0
        %1724 = vmatprep.subr.mxu0 0.0
        %1725 = vmatpush1.msra.mxu0 0.0
        %1726 = vmatprep.subr.mxu0 0.0
        %1727 = vmatpush1.msra.mxu0 0.0
        %1728 = vmatprep.subr.mxu0 0.0
        %1729 = vmatpush1.msra.mxu0 0.0
        %1730 = vmatprep.subr.mxu0 0.0
        %1731 = vmatpush1.msra.mxu0 0.0
        %1732 = vmatprep.subr.mxu0 0.0
        %1733 = vmatpush1.msra.mxu0 0.0
        %1734 = vmatprep.subr.mxu0 0.0
        %1735 = vmatpush1.msra.mxu0 0.0
        %1736 = vmatprep.subr.mxu0 0.0
        %1737 = vmatpush1.msra.mxu0 0.0
        %1738 = vmatprep.subr.mxu0 0.0
        %1739 = vmatpush1.msra.mxu0 0.0
        %1740 = vmatprep.subr.mxu0 0.0
        %1741 = vmatpush1.msra.mxu0 0.0
        %1742 = vmatprep.subr.mxu0 0.0
        %1743 = vmatpush1.msra.mxu0 0.0
        %1744 = vmatprep.subr.mxu0 0.0
        %1745 = vmatpush1.msra.mxu0 0.0
        %1746 = vmatprep.subr.mxu0 0.0
        %1747 = vmatpush1.msra.mxu0 0.0
        %1748 = vmatprep.subr.mxu0 0.0
        %1749 = vmatpush1.msra.mxu0 0.0
        %1750 = vmatprep.subr.mxu0 0.0
        %1751 = vmatpush1.msra.mxu0 0.0
        %1752 = vmatprep.subr.mxu0 0.0
        %1753 = vmatpush1.msra.mxu0 0.0
        %1754 = vmatprep.subr.mxu0 0.0
        %1755 = vmatpush1.msra.mxu0 0.0
        %1756 = vmatprep.subr.mxu0 0.0
        %1757 = vmatpush1.msra.mxu0 0.0
        %1758 = vmatprep.subr.mxu0 0.0
        %1759 = vmatpush1.msra.mxu0 0.0
        %1760 = vmatprep.subr.mxu0 0.0
        %1761 = vmatpush1.msra.mxu0 0.0
        %1762 = vmatprep.subr.mxu0 0.0
        %1763 = vmatpush1.msra.mxu0 0.0
        %1764 = vmatprep.subr.mxu0 0.0
        %1765 = vmatpush1.msra.mxu0 0.0
        %1766 = vmatprep.subr.mxu0 0.0
        %1767 = vmatpush1.msra.mxu0 0.0
        %1768 = vmatprep.subr.mxu0 0.0
        %1769 = vmatpush1.msra.mxu0 0.0
        %1770 = vmatprep.subr.mxu0 0.0
        %1771 = vmatpush1.msra.mxu0 0.0
        %1772 = vmatprep.subr.mxu0 0.0
        %1773 = vmatpush1.msra.mxu0 0.0
        %1774 = vmatprep.mubr.f32.mxu0 0.0
        %1775 = vmatmul.mubr.f32.gmra.mrb[0].mxu0 %v537
        %v1776 = vpop.f32.mrb[0].mxu0
        %v1777 = vadd.f32 %v1693, %v1776
        %v1778 = vpop.f32.mrb[0].mxu0
        %1779 = vdwg.mxu0
        %1780 = vmatprep.subr.mxu0 0.0
        %1781 = vmatpush1.msra.mxu0 %v482
        %1782 = vmatprep.subr.mxu0 0.0
        %1783 = vmatpush1.msra.mxu0 %v483
        %1784 = vmatprep.subr.mxu0 0.0
        %1785 = vmatpush1.msra.mxu0 %v484
        %1786 = vmatprep.subr.mxu0 0.0
        %1787 = vmatpush1.msra.mxu0 %v485
        %1788 = vmatprep.subr.mxu0 0.0
        %1789 = vmatpush1.msra.mxu0 0.0
        %1790 = vmatprep.subr.mxu0 0.0
        %1791 = vmatpush1.msra.mxu0 0.0
        %1792 = vmatprep.subr.mxu0 0.0
        %1793 = vmatpush1.msra.mxu0 0.0
        %1794 = vmatprep.subr.mxu0 0.0
        %1795 = vmatpush1.msra.mxu0 0.0
        %1796 = vmatprep.subr.mxu0 0.0
        %1797 = vmatpush1.msra.mxu0 0.0
        %1798 = vmatprep.subr.mxu0 0.0
        %1799 = vmatpush1.msra.mxu0 0.0
        %1800 = vmatprep.subr.mxu0 0.0
        %1801 = vmatpush1.msra.mxu0 0.0
        %1802 = vmatprep.subr.mxu0 0.0
        %1803 = vmatpush1.msra.mxu0 0.0
        %1804 = vmatprep.subr.mxu0 0.0
        %1805 = vmatpush1.msra.mxu0 0.0
        %1806 = vmatprep.subr.mxu0 0.0
        %1807 = vmatpush1.msra.mxu0 0.0
        %1808 = vmatprep.subr.mxu0 0.0
        %1809 = vmatpush1.msra.mxu0 0.0
        %1810 = vmatprep.subr.mxu0 0.0
        %1811 = vmatpush1.msra.mxu0 0.0
        %1812 = vmatprep.subr.mxu0 0.0
        %1813 = vmatpush1.msra.mxu0 0.0
        %1814 = vmatprep.subr.mxu0 0.0
        %1815 = vmatpush1.msra.mxu0 0.0
        %1816 = vmatprep.subr.mxu0 0.0
        %1817 = vmatpush1.msra.mxu0 0.0
        %1818 = vmatprep.subr.mxu0 0.0
        %1819 = vmatpush1.msra.mxu0 0.0
        %1820 = vmatprep.subr.mxu0 0.0
        %1821 = vmatpush1.msra.mxu0 0.0
        %1822 = vmatprep.subr.mxu0 0.0
        %1823 = vmatpush1.msra.mxu0 0.0
        %1824 = vmatprep.subr.mxu0 0.0
        %1825 = vmatpush1.msra.mxu0 0.0
        %1826 = vmatprep.subr.mxu0 0.0
        %1827 = vmatpush1.msra.mxu0 0.0
        %1828 = vmatprep.subr.mxu0 0.0
        %1829 = vmatpush1.msra.mxu0 0.0
        %1830 = vmatprep.subr.mxu0 0.0
        %1831 = vmatpush1.msra.mxu0 0.0
        %1832 = vmatprep.subr.mxu0 0.0
        %1833 = vmatpush1.msra.mxu0 0.0
        %1834 = vmatprep.subr.mxu0 0.0
        %1835 = vmatpush1.msra.mxu0 0.0
        %1836 = vmatprep.subr.mxu0 0.0
        %1837 = vmatpush1.msra.mxu0 0.0
        %1838 = vmatprep.subr.mxu0 0.0
        %1839 = vmatpush1.msra.mxu0 0.0
        %1840 = vmatprep.subr.mxu0 0.0
        %1841 = vmatpush1.msra.mxu0 0.0
        %1842 = vmatprep.subr.mxu0 0.0
        %1843 = vmatpush1.msra.mxu0 0.0
        %1844 = vmatprep.mubr.f32.mxu0 0.0
        %1845 = vmatmul.mubr.f32.gmra.mrb[0].mxu0 %v537
        %v1846 = vpop.f32.mrb[0].mxu0
        %v1847 = vadd.f32 %v1697, %v1846
        %v1848 = vpop.f32.mrb[0].mxu0
        %1849 = vdwg.mxu0
        %1850 = vmatprep.subr.mxu0 0.0
        %1851 = vmatpush1.msra.mxu0 %v486
        %1852 = vmatprep.subr.mxu0 0.0
        %1853 = vmatpush1.msra.mxu0 %v487
        %1854 = vmatprep.subr.mxu0 0.0
        %1855 = vmatpush1.msra.mxu0 %v488
        %1856 = vmatprep.subr.mxu0 0.0
        %1857 = vmatpush1.msra.mxu0 %v489
        %1858 = vmatprep.subr.mxu0 0.0
        %1859 = vmatpush1.msra.mxu0 0.0
        %1860 = vmatprep.subr.mxu0 0.0
        %1861 = vmatpush1.msra.mxu0 0.0
        %1862 = vmatprep.subr.mxu0 0.0
        %1863 = vmatpush1.msra.mxu0 0.0
        %1864 = vmatprep.subr.mxu0 0.0
        %1865 = vmatpush1.msra.mxu0 0.0
        %1866 = vmatprep.subr.mxu0 0.0
        %1867 = vmatpush1.msra.mxu0 0.0
        %1868 = vmatprep.subr.mxu0 0.0
        %1869 = vmatpush1.msra.mxu0 0.0
        %1870 = vmatprep.subr.mxu0 0.0
        %1871 = vmatpush1.msra.mxu0 0.0
        %1872 = vmatprep.subr.mxu0 0.0
        %1873 = vmatpush1.msra.mxu0 0.0
        %1874 = vmatprep.subr.mxu0 0.0
        %1875 = vmatpush1.msra.mxu0 0.0
        %1876 = vmatprep.subr.mxu0 0.0
        %1877 = vmatpush1.msra.mxu0 0.0
        %1878 = vmatprep.subr.mxu0 0.0
        %1879 = vmatpush1.msra.mxu0 0.0
        %1880 = vmatprep.subr.mxu0 0.0
        %1881 = vmatpush1.msra.mxu0 0.0
        %1882 = vmatprep.subr.mxu0 0.0
        %1883 = vmatpush1.msra.mxu0 0.0
        %1884 = vmatprep.subr.mxu0 0.0
        %1885 = vmatpush1.msra.mxu0 0.0
        %1886 = vmatprep.subr.mxu0 0.0
        %1887 = vmatpush1.msra.mxu0 0.0
        %1888 = vmatprep.subr.mxu0 0.0
        %1889 = vmatpush1.msra.mxu0 0.0
        %1890 = vmatprep.subr.mxu0 0.0
        %1891 = vmatpush1.msra.mxu0 0.0
        %1892 = vmatprep.subr.mxu0 0.0
        %1893 = vmatpush1.msra.mxu0 0.0
        %1894 = vmatprep.subr.mxu0 0.0
        %1895 = vmatpush1.msra.mxu0 0.0
        %1896 = vmatprep.subr.mxu0 0.0
        %1897 = vmatpush1.msra.mxu0 0.0
        %1898 = vmatprep.subr.mxu0 0.0
        %1899 = vmatpush1.msra.mxu0 0.0
        %1900 = vmatprep.subr.mxu0 0.0
        %1901 = vmatpush1.msra.mxu0 0.0
        %1902 = vmatprep.subr.mxu0 0.0
        %1903 = vmatpush1.msra.mxu0 0.0
        %1904 = vmatprep.subr.mxu0 0.0
        %1905 = vmatpush1.msra.mxu0 0.0
        %1906 = vmatprep.subr.mxu0 0.0
        %1907 = vmatpush1.msra.mxu0 0.0
        %1908 = vmatprep.subr.mxu0 0.0
        %1909 = vmatpush1.msra.mxu0 0.0
        %1910 = vmatprep.subr.mxu0 0.0
        %1911 = vmatpush1.msra.mxu0 0.0
        %1912 = vmatprep.subr.mxu0 0.0
        %1913 = vmatpush1.msra.mxu0 0.0
        %1914 = vmatprep.mubr.f32.mxu0 0.0
        %1915 = vmatmul.mubr.f32.gmra.mrb[0].mxu0 %v537
        %v1916 = vpop.f32.mrb[0].mxu0
        %v1917 = vadd.f32 %v1701, %v1916
        %v1918 = vpop.f32.mrb[0].mxu0
        %1919 = vdwg.mxu0
        %1920 = vmatprep.subr.mxu0 0.0
        %1921 = vmatpush1.msra.mxu0 %v490
        %1922 = vmatprep.subr.mxu0 0.0
        %1923 = vmatpush1.msra.mxu0 %v491
        %1924 = vmatprep.subr.mxu0 0.0
        %1925 = vmatpush1.msra.mxu0 %v492
        %1926 = vmatprep.subr.mxu0 0.0
        %1927 = vmatpush1.msra.mxu0 %v493
        %1928 = vmatprep.subr.mxu0 0.0
        %1929 = vmatpush1.msra.mxu0 0.0
        %1930 = vmatprep.subr.mxu0 0.0
        %1931 = vmatpush1.msra.mxu0 0.0
        %1932 = vmatprep.subr.mxu0 0.0
        %1933 = vmatpush1.msra.mxu0 0.0
        %1934 = vmatprep.subr.mxu0 0.0
        %1935 = vmatpush1.msra.mxu0 0.0
        %1936 = vmatprep.subr.mxu0 0.0
        %1937 = vmatpush1.msra.mxu0 0.0
        %1938 = vmatprep.subr.mxu0 0.0
        %1939 = vmatpush1.msra.mxu0 0.0
        %1940 = vmatprep.subr.mxu0 0.0
        %1941 = vmatpush1.msra.mxu0 0.0
        %1942 = vmatprep.subr.mxu0 0.0
        %1943 = vmatpush1.msra.mxu0 0.0
        %1944 = vmatprep.subr.mxu0 0.0
        %1945 = vmatpush1.msra.mxu0 0.0
        %1946 = vmatprep.subr.mxu0 0.0
        %1947 = vmatpush1.msra.mxu0 0.0
        %1948 = vmatprep.subr.mxu0 0.0
        %1949 = vmatpush1.msra.mxu0 0.0
        %1950 = vmatprep.subr.mxu0 0.0
        %1951 = vmatpush1.msra.mxu0 0.0
        %1952 = vmatprep.subr.mxu0 0.0
        %1953 = vmatpush1.msra.mxu0 0.0
        %1954 = vmatprep.subr.mxu0 0.0
        %1955 = vmatpush1.msra.mxu0 0.0
        %1956 = vmatprep.subr.mxu0 0.0
        %1957 = vmatpush1.msra.mxu0 0.0
        %1958 = vmatprep.subr.mxu0 0.0
        %1959 = vmatpush1.msra.mxu0 0.0
        %1960 = vmatprep.subr.mxu0 0.0
        %1961 = vmatpush1.msra.mxu0 0.0
        %1962 = vmatprep.subr.mxu0 0.0
        %1963 = vmatpush1.msra.mxu0 0.0
        %1964 = vmatprep.subr.mxu0 0.0
        %1965 = vmatpush1.msra.mxu0 0.0
        %1966 = vmatprep.subr.mxu0 0.0
        %1967 = vmatpush1.msra.mxu0 0.0
        %1968 = vmatprep.subr.mxu0 0.0
        %1969 = vmatpush1.msra.mxu0 0.0
        %1970 = vmatprep.subr.mxu0 0.0
        %1971 = vmatpush1.msra.mxu0 0.0
        %1972 = vmatprep.subr.mxu0 0.0
        %1973 = vmatpush1.msra.mxu0 0.0
        %1974 = vmatprep.subr.mxu0 0.0
        %1975 = vmatpush1.msra.mxu0 0.0
        %1976 = vmatprep.subr.mxu0 0.0
        %1977 = vmatpush1.msra.mxu0 0.0
        %1978 = vmatprep.subr.mxu0 0.0
        %1979 = vmatpush1.msra.mxu0 0.0
        %1980 = vmatprep.subr.mxu0 0.0
        %1981 = vmatpush1.msra.mxu0 0.0
        %1982 = vmatprep.subr.mxu0 0.0
        %1983 = vmatpush1.msra.mxu0 0.0
        %1984 = vmatprep.mubr.f32.mxu0 0.0
        %1985 = vmatmul.mubr.f32.gmra.mrb[0].mxu0 %v537
        %v1986 = vpop.f32.mrb[0].mxu0
        %v1987 = vadd.f32 %v1705, %v1986
        %v1988 = vpop.f32.mrb[0].mxu0
        %1989 = vdwg.mxu0
        %1990 = vmatprep.subr.mxu0 0.0
        %1991 = vmatpush1.msra.mxu0 %v478
        %1992 = vmatprep.subr.mxu0 0.0
        %1993 = vmatpush1.msra.mxu0 %v479
        %1994 = vmatprep.subr.mxu0 0.0
        %1995 = vmatpush1.msra.mxu0 %v480
        %1996 = vmatprep.subr.mxu0 0.0
        %1997 = vmatpush1.msra.mxu0 %v481
        %1998 = vmatprep.subr.mxu0 0.0
        %1999 = vmatpush1.msra.mxu0 0.0
        %2000 = vmatprep.subr.mxu0 0.0
        %2001 = vmatpush1.msra.mxu0 0.0
        %2002 = vmatprep.subr.mxu0 0.0
        %2003 = vmatpush1.msra.mxu0 0.0
        %2004 = vmatprep.subr.mxu0 0.0
        %2005 = vmatpush1.msra.mxu0 0.0
        %2006 = vmatprep.subr.mxu0 0.0
        %2007 = vmatpush1.msra.mxu0 0.0
        %2008 = vmatprep.subr.mxu0 0.0
        %2009 = vmatpush1.msra.mxu0 0.0
        %2010 = vmatprep.subr.mxu0 0.0
        %2011 = vmatpush1.msra.mxu0 0.0
        %2012 = vmatprep.subr.mxu0 0.0
        %2013 = vmatpush1.msra.mxu0 0.0
        %2014 = vmatprep.subr.mxu0 0.0
        %2015 = vmatpush1.msra.mxu0 0.0
        %2016 = vmatprep.subr.mxu0 0.0
        %2017 = vmatpush1.msra.mxu0 0.0
        %2018 = vmatprep.subr.mxu0 0.0
        %2019 = vmatpush1.msra.mxu0 0.0
        %2020 = vmatprep.subr.mxu0 0.0
        %2021 = vmatpush1.msra.mxu0 0.0
        %2022 = vmatprep.subr.mxu0 0.0
        %2023 = vmatpush1.msra.mxu0 0.0
        %2024 = vmatprep.subr.mxu0 0.0
        %2025 = vmatpush1.msra.mxu0 0.0
        %2026 = vmatprep.subr.mxu0 0.0
        %2027 = vmatpush1.msra.mxu0 0.0
        %2028 = vmatprep.subr.mxu0 0.0
        %2029 = vmatpush1.msra.mxu0 0.0
        %2030 = vmatprep.subr.mxu0 0.0
        %2031 = vmatpush1.msra.mxu0 0.0
        %2032 = vmatprep.subr.mxu0 0.0
        %2033 = vmatpush1.msra.mxu0 0.0
        %2034 = vmatprep.subr.mxu0 0.0
        %2035 = vmatpush1.msra.mxu0 0.0
        %2036 = vmatprep.subr.mxu0 0.0
        %2037 = vmatpush1.msra.mxu0 0.0
        %2038 = vmatprep.subr.mxu0 0.0
        %2039 = vmatpush1.msra.mxu0 0.0
        %2040 = vmatprep.subr.mxu0 0.0
        %2041 = vmatpush1.msra.mxu0 0.0
        %2042 = vmatprep.subr.mxu0 0.0
        %2043 = vmatpush1.msra.mxu0 0.0
        %2044 = vmatprep.subr.mxu0 0.0
        %2045 = vmatpush1.msra.mxu0 0.0
        %2046 = vmatprep.subr.mxu0 0.0
        %2047 = vmatpush1.msra.mxu0 0.0
        %2048 = vmatprep.subr.mxu0 0.0
        %2049 = vmatpush1.msra.mxu0 0.0
        %2050 = vmatprep.subr.mxu0 0.0
        %2051 = vmatpush1.msra.mxu0 0.0
        %2052 = vmatprep.subr.mxu0 0.0
        %2053 = vmatpush1.msra.mxu0 0.0
        %2054 = vmatprep.mubr.f32.mxu0 0.0
        %2055 = vmatmul.mubr.f32.gmra.mrb[0].mxu0 %v820
        %v2056 = vpop.f32.mrb[0].mxu0
        %v2057 = vadd.f32 %v1693, %v2056
        %v2058 = vpop.f32.mrb[0].mxu0
        %2059 = vdwg.mxu0
        %2060 = vmatprep.subr.mxu0 0.0
        %2061 = vmatpush1.msra.mxu0 %v482
        %2062 = vmatprep.subr.mxu0 0.0
        %2063 = vmatpush1.msra.mxu0 %v483
        %2064 = vmatprep.subr.mxu0 0.0
        %2065 = vmatpush1.msra.mxu0 %v484
        %2066 = vmatprep.subr.mxu0 0.0
        %2067 = vmatpush1.msra.mxu0 %v485
        %2068 = vmatprep.subr.mxu0 0.0
        %2069 = vmatpush1.msra.mxu0 0.0
        %2070 = vmatprep.subr.mxu0 0.0
        %2071 = vmatpush1.msra.mxu0 0.0
        %2072 = vmatprep.subr.mxu0 0.0
        %2073 = vmatpush1.msra.mxu0 0.0
        %2074 = vmatprep.subr.mxu0 0.0
        %2075 = vmatpush1.msra.mxu0 0.0
        %2076 = vmatprep.subr.mxu0 0.0
        %2077 = vmatpush1.msra.mxu0 0.0
        %2078 = vmatprep.subr.mxu0 0.0
        %2079 = vmatpush1.msra.mxu0 0.0
        %2080 = vmatprep.subr.mxu0 0.0
        %2081 = vmatpush1.msra.mxu0 0.0
        %2082 = vmatprep.subr.mxu0 0.0
        %2083 = vmatpush1.msra.mxu0 0.0
        %2084 = vmatprep.subr.mxu0 0.0
        %2085 = vmatpush1.msra.mxu0 0.0
        %2086 = vmatprep.subr.mxu0 0.0
        %2087 = vmatpush1.msra.mxu0 0.0
        %2088 = vmatprep.subr.mxu0 0.0
        %2089 = vmatpush1.msra.mxu0 0.0
        %2090 = vmatprep.subr.mxu0 0.0
        %2091 = vmatpush1.msra.mxu0 0.0
        %2092 = vmatprep.subr.mxu0 0.0
        %2093 = vmatpush1.msra.mxu0 0.0
        %2094 = vmatprep.subr.mxu0 0.0
        %2095 = vmatpush1.msra.mxu0 0.0
        %2096 = vmatprep.subr.mxu0 0.0
        %2097 = vmatpush1.msra.mxu0 0.0
        %2098 = vmatprep.subr.mxu0 0.0
        %2099 = vmatpush1.msra.mxu0 0.0
        %2100 = vmatprep.subr.mxu0 0.0
        %2101 = vmatpush1.msra.mxu0 0.0
        %2102 = vmatprep.subr.mxu0 0.0
        %2103 = vmatpush1.msra.mxu0 0.0
        %2104 = vmatprep.subr.mxu0 0.0
        %2105 = vmatpush1.msra.mxu0 0.0
        %2106 = vmatprep.subr.mxu0 0.0
        %2107 = vmatpush1.msra.mxu0 0.0
        %2108 = vmatprep.subr.mxu0 0.0
        %2109 = vmatpush1.msra.mxu0 0.0
        %2110 = vmatprep.subr.mxu0 0.0
        %2111 = vmatpush1.msra.mxu0 0.0
        %2112 = vmatprep.subr.mxu0 0.0
        %2113 = vmatpush1.msra.mxu0 0.0
        %2114 = vmatprep.subr.mxu0 0.0
        %2115 = vmatpush1.msra.mxu0 0.0
        %2116 = vmatprep.subr.mxu0 0.0
        %2117 = vmatpush1.msra.mxu0 0.0
        %2118 = vmatprep.subr.mxu0 0.0
        %2119 = vmatpush1.msra.mxu0 0.0
        %2120 = vmatprep.subr.mxu0 0.0
        %2121 = vmatpush1.msra.mxu0 0.0
        %2122 = vmatprep.subr.mxu0 0.0
        %2123 = vmatpush1.msra.mxu0 0.0
        %2124 = vmatprep.mubr.f32.mxu0 0.0
        %2125 = vmatmul.mubr.f32.gmra.mrb[0].mxu0 %v820
        %v2126 = vpop.f32.mrb[0].mxu0
        %v2127 = vadd.f32 %v1697, %v2126
        %v2128 = vpop.f32.mrb[0].mxu0
        %2129 = vdwg.mxu0
        %2130 = vmatprep.subr.mxu0 0.0
        %2131 = vmatpush1.msra.mxu0 %v486
        %2132 = vmatprep.subr.mxu0 0.0
        %2133 = vmatpush1.msra.mxu0 %v487
        %2134 = vmatprep.subr.mxu0 0.0
        %2135 = vmatpush1.msra.mxu0 %v488
        %2136 = vmatprep.subr.mxu0 0.0
        %2137 = vmatpush1.msra.mxu0 %v489
        %2138 = vmatprep.subr.mxu0 0.0
        %2139 = vmatpush1.msra.mxu0 0.0
        %2140 = vmatprep.subr.mxu0 0.0
        %2141 = vmatpush1.msra.mxu0 0.0
        %2142 = vmatprep.subr.mxu0 0.0
        %2143 = vmatpush1.msra.mxu0 0.0
        %2144 = vmatprep.subr.mxu0 0.0
        %2145 = vmatpush1.msra.mxu0 0.0
        %2146 = vmatprep.subr.mxu0 0.0
        %2147 = vmatpush1.msra.mxu0 0.0
        %2148 = vmatprep.subr.mxu0 0.0
        %2149 = vmatpush1.msra.mxu0 0.0
        %2150 = vmatprep.subr.mxu0 0.0
        %2151 = vmatpush1.msra.mxu0 0.0
        %2152 = vmatprep.subr.mxu0 0.0
        %2153 = vmatpush1.msra.mxu0 0.0
        %2154 = vmatprep.subr.mxu0 0.0
        %2155 = vmatpush1.msra.mxu0 0.0
        %2156 = vmatprep.subr.mxu0 0.0
        %2157 = vmatpush1.msra.mxu0 0.0
        %2158 = vmatprep.subr.mxu0 0.0
        %2159 = vmatpush1.msra.mxu0 0.0
        %2160 = vmatprep.subr.mxu0 0.0
        %2161 = vmatpush1.msra.mxu0 0.0
        %2162 = vmatprep.subr.mxu0 0.0
        %2163 = vmatpush1.msra.mxu0 0.0
        %2164 = vmatprep.subr.mxu0 0.0
        %2165 = vmatpush1.msra.mxu0 0.0
        %2166 = vmatprep.subr.mxu0 0.0
        %2167 = vmatpush1.msra.mxu0 0.0
        %2168 = vmatprep.subr.mxu0 0.0
        %2169 = vmatpush1.msra.mxu0 0.0
        %2170 = vmatprep.subr.mxu0 0.0
        %2171 = vmatpush1.msra.mxu0 0.0
        %2172 = vmatprep.subr.mxu0 0.0
        %2173 = vmatpush1.msra.mxu0 0.0
        %2174 = vmatprep.subr.mxu0 0.0
        %2175 = vmatpush1.msra.mxu0 0.0
        %2176 = vmatprep.subr.mxu0 0.0
        %2177 = vmatpush1.msra.mxu0 0.0
        %2178 = vmatprep.subr.mxu0 0.0
        %2179 = vmatpush1.msra.mxu0 0.0
        %2180 = vmatprep.subr.mxu0 0.0
        %2181 = vmatpush1.msra.mxu0 0.0
        %2182 = vmatprep.subr.mxu0 0.0
        %2183 = vmatpush1.msra.mxu0 0.0
        %2184 = vmatprep.subr.mxu0 0.0
        %2185 = vmatpush1.msra.mxu0 0.0
        %2186 = vmatprep.subr.mxu0 0.0
        %2187 = vmatpush1.msra.mxu0 0.0
        %2188 = vmatprep.subr.mxu0 0.0
        %2189 = vmatpush1.msra.mxu0 0.0
        %2190 = vmatprep.subr.mxu0 0.0
        %2191 = vmatpush1.msra.mxu0 0.0
        %2192 = vmatprep.subr.mxu0 0.0
        %2193 = vmatpush1.msra.mxu0 0.0
        %2194 = vmatprep.mubr.f32.mxu0 0.0
        %2195 = vmatmul.mubr.f32.gmra.mrb[0].mxu0 %v820
        %v2196 = vpop.f32.mrb[0].mxu0
        %v2197 = vadd.f32 %v1701, %v2196
        %v2198 = vpop.f32.mrb[0].mxu0
        %2199 = vdwg.mxu0
        %2200 = vmatprep.subr.mxu0 0.0
        %2201 = vmatpush1.msra.mxu0 %v490
        %2202 = vmatprep.subr.mxu0 0.0
        %2203 = vmatpush1.msra.mxu0 %v491
        %2204 = vmatprep.subr.mxu0 0.0
        %2205 = vmatpush1.msra.mxu0 %v492
        %2206 = vmatprep.subr.mxu0 0.0
        %2207 = vmatpush1.msra.mxu0 %v493
        %2208 = vmatprep.subr.mxu0 0.0
        %2209 = vmatpush1.msra.mxu0 0.0
        %2210 = vmatprep.subr.mxu0 0.0
        %2211 = vmatpush1.msra.mxu0 0.0
        %2212 = vmatprep.subr.mxu0 0.0
        %2213 = vmatpush1.msra.mxu0 0.0
        %2214 = vmatprep.subr.mxu0 0.0
        %2215 = vmatpush1.msra.mxu0 0.0
        %2216 = vmatprep.subr.mxu0 0.0
        %2217 = vmatpush1.msra.mxu0 0.0
        %2218 = vmatprep.subr.mxu0 0.0
        %2219 = vmatpush1.msra.mxu0 0.0
        %2220 = vmatprep.subr.mxu0 0.0
        %2221 = vmatpush1.msra.mxu0 0.0
        %2222 = vmatprep.subr.mxu0 0.0
        %2223 = vmatpush1.msra.mxu0 0.0
        %2224 = vmatprep.subr.mxu0 0.0
        %2225 = vmatpush1.msra.mxu0 0.0
        %2226 = vmatprep.subr.mxu0 0.0
        %2227 = vmatpush1.msra.mxu0 0.0
        %2228 = vmatprep.subr.mxu0 0.0
        %2229 = vmatpush1.msra.mxu0 0.0
        %2230 = vmatprep.subr.mxu0 0.0
        %2231 = vmatpush1.msra.mxu0 0.0
        %2232 = vmatprep.subr.mxu0 0.0
        %2233 = vmatpush1.msra.mxu0 0.0
        %2234 = vmatprep.subr.mxu0 0.0
        %2235 = vmatpush1.msra.mxu0 0.0
        %2236 = vmatprep.subr.mxu0 0.0
        %2237 = vmatpush1.msra.mxu0 0.0
        %2238 = vmatprep.subr.mxu0 0.0
        %2239 = vmatpush1.msra.mxu0 0.0
        %2240 = vmatprep.subr.mxu0 0.0
        %2241 = vmatpush1.msra.mxu0 0.0
        %2242 = vmatprep.subr.mxu0 0.0
        %2243 = vmatpush1.msra.mxu0 0.0
        %2244 = vmatprep.subr.mxu0 0.0
        %2245 = vmatpush1.msra.mxu0 0.0
        %2246 = vmatprep.subr.mxu0 0.0
        %2247 = vmatpush1.msra.mxu0 0.0
        %2248 = vmatprep.subr.mxu0 0.0
        %2249 = vmatpush1.msra.mxu0 0.0
        %2250 = vmatprep.subr.mxu0 0.0
        %2251 = vmatpush1.msra.mxu0 0.0
        %2252 = vmatprep.subr.mxu0 0.0
        %2253 = vmatpush1.msra.mxu0 0.0
        %2254 = vmatprep.subr.mxu0 0.0
        %2255 = vmatpush1.msra.mxu0 0.0
        %2256 = vmatprep.subr.mxu0 0.0
        %2257 = vmatpush1.msra.mxu0 0.0
        %2258 = vmatprep.subr.mxu0 0.0
        %2259 = vmatpush1.msra.mxu0 0.0
        %2260 = vmatprep.subr.mxu0 0.0
        %2261 = vmatpush1.msra.mxu0 0.0
        %2262 = vmatprep.subr.mxu0 0.0
        %2263 = vmatpush1.msra.mxu0 0.0
        %2264 = vmatprep.mubr.f32.mxu0 0.0
        %2265 = vmatmul.mubr.f32.gmra.mrb[0].mxu0 %v820
        %v2266 = vpop.f32.mrb[0].mxu0
        %v2267 = vadd.f32 %v1705, %v2266
        %v2268 = vpop.f32.mrb[0].mxu0
        %2269 = vdwg.mxu0
        %vm2270 = vcmask 64512
        %v2272 = vsel %vm2270, %v606, 0
        %v2275 = vsel %vm2270, %v1193, 0
        %2277 = vmatprep.subr.mxu0 0.0
        %2278 = vmatpush1.xpose.msra.mxu0 %v2275
        %2279 = vmatprep.subr.mxu0 0.0
        %2280 = vmatpush1.xpose.msra.mxu0 0.0
        %2281 = vmatprep.subr.mxu0 0.0
        %2282 = vmatpush1.xpose.msra.mxu0 0.0
        %2283 = vmatprep.subr.mxu0 0.0
        %2284 = vmatpush1.xpose.msra.mxu0 0.0
        %2285 = vmatprep.subr.mxu0 0.0
        %2286 = vmatpush1.xpose.msra.mxu0 0.0
        %2287 = vmatprep.subr.mxu0 0.0
        %2288 = vmatpush1.xpose.msra.mxu0 0.0
        %2289 = vmatprep.subr.mxu0 0.0
        %2290 = vmatpush1.xpose.msra.mxu0 0.0
        %2291 = vmatprep.subr.mxu0 0.0
        %2292 = vmatpush1.xpose.msra.mxu0 0.0
        %2293 = vmatprep.subr.mxu0 0.0
        %2294 = vmatpush1.xpose.msra.mxu0 0.0
        %2295 = vmatprep.subr.mxu0 0.0
        %2296 = vmatpush1.xpose.msra.mxu0 0.0
        %2297 = vmatprep.subr.mxu0 0.0
        %2298 = vmatpush1.xpose.msra.mxu0 0.0
        %2299 = vmatprep.subr.mxu0 0.0
        %2300 = vmatpush1.xpose.msra.mxu0 0.0
        %2301 = vmatprep.subr.mxu0 0.0
        %2302 = vmatpush1.xpose.msra.mxu0 0.0
        %2303 = vmatprep.subr.mxu0 0.0
        %2304 = vmatpush1.xpose.msra.mxu0 0.0
        %2305 = vmatprep.subr.mxu0 0.0
        %2306 = vmatpush1.xpose.msra.mxu0 0.0
        %2307 = vmatprep.subr.mxu0 0.0
        %2308 = vmatpush1.xpose.msra.mxu0 0.0
        %2309 = vmatprep.subr.mxu0 0.0
        %2310 = vmatpush1.xpose.msra.mxu0 0.0
        %2311 = vmatprep.subr.mxu0 0.0
        %2312 = vmatpush1.xpose.msra.mxu0 0.0
        %2313 = vmatprep.subr.mxu0 0.0
        %2314 = vmatpush1.xpose.msra.mxu0 0.0
        %2315 = vmatprep.subr.mxu0 0.0
        %2316 = vmatpush1.xpose.msra.mxu0 0.0
        %2317 = vmatprep.subr.mxu0 0.0
        %2318 = vmatpush1.xpose.msra.mxu0 0.0
        %2319 = vmatprep.subr.mxu0 0.0
        %2320 = vmatpush1.xpose.msra.mxu0 0.0
        %2321 = vmatprep.subr.mxu0 0.0
        %2322 = vmatpush1.xpose.msra.mxu0 0.0
        %2323 = vmatprep.subr.mxu0 0.0
        %2324 = vmatpush1.xpose.msra.mxu0 0.0
        %2325 = vmatprep.subr.mxu0 0.0
        %2326 = vmatpush1.xpose.msra.mxu0 0.0
        %2327 = vmatprep.subr.mxu0 0.0
        %2328 = vmatpush1.xpose.msra.mxu0 0.0
        %2329 = vmatprep.subr.mxu0 0.0
        %2330 = vmatpush1.xpose.msra.mxu0 0.0
        %2331 = vmatprep.subr.mxu0 0.0
        %2332 = vmatpush1.xpose.msra.mxu0 0.0
        %2333 = vmatprep.subr.mxu0 0.0
        %2334 = vmatpush1.xpose.msra.mxu0 0.0
        %2335 = vmatprep.subr.mxu0 0.0
        %2336 = vmatpush1.xpose.msra.mxu0 0.0
        %2337 = vmatprep.subr.mxu0 0.0
        %2338 = vmatpush1.xpose.msra.mxu0 0.0
        %2339 = vmatprep.subr.mxu0 0.0
        %2340 = vmatpush1.xpose.msra.mxu0 0.0
        %2341 = vmatprep.mubr.f32.mxu0 0.0
        %2342 = vmatmul.mubr.f32.gmra.mrb[0].mxu0 %v2272
        %v2343 = vpop.f32.mrb[0].mxu0
        %v2344 = vadd.f32 0.0, %v2343
        %v2345 = vpop.f32.mrb[0].mxu0
        %2346 = vdwg.mxu0
        %v2348 = vsel %vm2270, %v676, 0
        %v2351 = vsel %vm2270, %v1263, 0
        %2353 = vmatprep.subr.mxu0 0.0
        %2354 = vmatpush1.xpose.msra.mxu0 %v2351
        %2355 = vmatprep.subr.mxu0 0.0
        %2356 = vmatpush1.xpose.msra.mxu0 0.0
        %2357 = vmatprep.subr.mxu0 0.0
        %2358 = vmatpush1.xpose.msra.mxu0 0.0
        %2359 = vmatprep.subr.mxu0 0.0
        %2360 = vmatpush1.xpose.msra.mxu0 0.0
        %2361 = vmatprep.subr.mxu0 0.0
        %2362 = vmatpush1.xpose.msra.mxu0 0.0
        %2363 = vmatprep.subr.mxu0 0.0
        %2364 = vmatpush1.xpose.msra.mxu0 0.0
        %2365 = vmatprep.subr.mxu0 0.0
        %2366 = vmatpush1.xpose.msra.mxu0 0.0
        %2367 = vmatprep.subr.mxu0 0.0
        %2368 = vmatpush1.xpose.msra.mxu0 0.0
        %2369 = vmatprep.subr.mxu0 0.0
        %2370 = vmatpush1.xpose.msra.mxu0 0.0
        %2371 = vmatprep.subr.mxu0 0.0
        %2372 = vmatpush1.xpose.msra.mxu0 0.0
        %2373 = vmatprep.subr.mxu0 0.0
        %2374 = vmatpush1.xpose.msra.mxu0 0.0
        %2375 = vmatprep.subr.mxu0 0.0
        %2376 = vmatpush1.xpose.msra.mxu0 0.0
        %2377 = vmatprep.subr.mxu0 0.0
        %2378 = vmatpush1.xpose.msra.mxu0 0.0
        %2379 = vmatprep.subr.mxu0 0.0
        %2380 = vmatpush1.xpose.msra.mxu0 0.0
        %2381 = vmatprep.subr.mxu0 0.0
        %2382 = vmatpush1.xpose.msra.mxu0 0.0
        %2383 = vmatprep.subr.mxu0 0.0
        %2384 = vmatpush1.xpose.msra.mxu0 0.0
        %2385 = vmatprep.subr.mxu0 0.0
        %2386 = vmatpush1.xpose.msra.mxu0 0.0
        %2387 = vmatprep.subr.mxu0 0.0
        %2388 = vmatpush1.xpose.msra.mxu0 0.0
        %2389 = vmatprep.subr.mxu0 0.0
        %2390 = vmatpush1.xpose.msra.mxu0 0.0
        %2391 = vmatprep.subr.mxu0 0.0
        %2392 = vmatpush1.xpose.msra.mxu0 0.0
        %2393 = vmatprep.subr.mxu0 0.0
        %2394 = vmatpush1.xpose.msra.mxu0 0.0
        %2395 = vmatprep.subr.mxu0 0.0
        %2396 = vmatpush1.xpose.msra.mxu0 0.0
        %2397 = vmatprep.subr.mxu0 0.0
        %2398 = vmatpush1.xpose.msra.mxu0 0.0
        %2399 = vmatprep.subr.mxu0 0.0
        %2400 = vmatpush1.xpose.msra.mxu0 0.0
        %2401 = vmatprep.subr.mxu0 0.0
        %2402 = vmatpush1.xpose.msra.mxu0 0.0
        %2403 = vmatprep.subr.mxu0 0.0
        %2404 = vmatpush1.xpose.msra.mxu0 0.0
        %2405 = vmatprep.subr.mxu0 0.0
        %2406 = vmatpush1.xpose.msra.mxu0 0.0
        %2407 = vmatprep.subr.mxu0 0.0
        %2408 = vmatpush1.xpose.msra.mxu0 0.0
        %2409 = vmatprep.subr.mxu0 0.0
        %2410 = vmatpush1.xpose.msra.mxu0 0.0
        %2411 = vmatprep.subr.mxu0 0.0
        %2412 = vmatpush1.xpose.msra.mxu0 0.0
        %2413 = vmatprep.subr.mxu0 0.0
        %2414 = vmatpush1.xpose.msra.mxu0 0.0
        %2415 = vmatprep.subr.mxu0 0.0
        %2416 = vmatpush1.xpose.msra.mxu0 0.0
        %2417 = vmatprep.mubr.f32.mxu0 0.0
        %2418 = vmatmul.mubr.f32.gmra.mrb[0].mxu0 %v2348
        %v2419 = vpop.f32.mrb[0].mxu0
        %v2420 = vadd.f32 0.0, %v2419
        %v2421 = vpop.f32.mrb[0].mxu0
        %2422 = vdwg.mxu0
        %v2424 = vsel %vm2270, %v746, 0
        %v2427 = vsel %vm2270, %v1333, 0
        %2429 = vmatprep.subr.mxu0 0.0
        %2430 = vmatpush1.xpose.msra.mxu0 %v2427
        %2431 = vmatprep.subr.mxu0 0.0
        %2432 = vmatpush1.xpose.msra.mxu0 0.0
        %2433 = vmatprep.subr.mxu0 0.0
        %2434 = vmatpush1.xpose.msra.mxu0 0.0
        %2435 = vmatprep.subr.mxu0 0.0
        %2436 = vmatpush1.xpose.msra.mxu0 0.0
        %2437 = vmatprep.subr.mxu0 0.0
        %2438 = vmatpush1.xpose.msra.mxu0 0.0
        %2439 = vmatprep.subr.mxu0 0.0
        %2440 = vmatpush1.xpose.msra.mxu0 0.0
        %2441 = vmatprep.subr.mxu0 0.0
        %2442 = vmatpush1.xpose.msra.mxu0 0.0
        %2443 = vmatprep.subr.mxu0 0.0
        %2444 = vmatpush1.xpose.msra.mxu0 0.0
        %2445 = vmatprep.subr.mxu0 0.0
        %2446 = vmatpush1.xpose.msra.mxu0 0.0
        %2447 = vmatprep.subr.mxu0 0.0
        %2448 = vmatpush1.xpose.msra.mxu0 0.0
        %2449 = vmatprep.subr.mxu0 0.0
        %2450 = vmatpush1.xpose.msra.mxu0 0.0
        %2451 = vmatprep.subr.mxu0 0.0
        %2452 = vmatpush1.xpose.msra.mxu0 0.0
        %2453 = vmatprep.subr.mxu0 0.0
        %2454 = vmatpush1.xpose.msra.mxu0 0.0
        %2455 = vmatprep.subr.mxu0 0.0
        %2456 = vmatpush1.xpose.msra.mxu0 0.0
        %2457 = vmatprep.subr.mxu0 0.0
        %2458 = vmatpush1.xpose.msra.mxu0 0.0
        %2459 = vmatprep.subr.mxu0 0.0
        %2460 = vmatpush1.xpose.msra.mxu0 0.0
        %2461 = vmatprep.subr.mxu0 0.0
        %2462 = vmatpush1.xpose.msra.mxu0 0.0
        %2463 = vmatprep.subr.mxu0 0.0
        %2464 = vmatpush1.xpose.msra.mxu0 0.0
        %2465 = vmatprep.subr.mxu0 0.0
        %2466 = vmatpush1.xpose.msra.mxu0 0.0
        %2467 = vmatprep.subr.mxu0 0.0
        %2468 = vmatpush1.xpose.msra.mxu0 0.0
        %2469 = vmatprep.subr.mxu0 0.0
        %2470 = vmatpush1.xpose.msra.mxu0 0.0
        %2471 = vmatprep.subr.mxu0 0.0
        %2472 = vmatpush1.xpose.msra.mxu0 0.0
        %2473 = vmatprep.subr.mxu0 0.0
        %2474 = vmatpush1.xpose.msra.mxu0 0.0
        %2475 = vmatprep.subr.mxu0 0.0
        %2476 = vmatpush1.xpose.msra.mxu0 0.0
        %2477 = vmatprep.subr.mxu0 0.0
        %2478 = vmatpush1.xpose.msra.mxu0 0.0
        %2479 = vmatprep.subr.mxu0 0.0
        %2480 = vmatpush1.xpose.msra.mxu0 0.0
        %2481 = vmatprep.subr.mxu0 0.0
        %2482 = vmatpush1.xpose.msra.mxu0 0.0
        %2483 = vmatprep.subr.mxu0 0.0
        %2484 = vmatpush1.xpose.msra.mxu0 0.0
        %2485 = vmatprep.subr.mxu0 0.0
        %2486 = vmatpush1.xpose.msra.mxu0 0.0
        %2487 = vmatprep.subr.mxu0 0.0
        %2488 = vmatpush1.xpose.msra.mxu0 0.0
        %2489 = vmatprep.subr.mxu0 0.0
        %2490 = vmatpush1.xpose.msra.mxu0 0.0
        %2491 = vmatprep.subr.mxu0 0.0
        %2492 = vmatpush1.xpose.msra.mxu0 0.0
        %2493 = vmatprep.mubr.f32.mxu0 0.0
        %2494 = vmatmul.mubr.f32.gmra.mrb[0].mxu0 %v2424
        %v2495 = vpop.f32.mrb[0].mxu0
        %v2496 = vadd.f32 0.0, %v2495
        %v2497 = vpop.f32.mrb[0].mxu0
        %2498 = vdwg.mxu0
        %v2500 = vsel %vm2270, %v816, 0
        %v2503 = vsel %vm2270, %v1403, 0
        %2505 = vmatprep.subr.mxu0 0.0
        %2506 = vmatpush1.xpose.msra.mxu0 %v2503
        %2507 = vmatprep.subr.mxu0 0.0
        %2508 = vmatpush1.xpose.msra.mxu0 0.0
        %2509 = vmatprep.subr.mxu0 0.0
        %2510 = vmatpush1.xpose.msra.mxu0 0.0
        %2511 = vmatprep.subr.mxu0 0.0
        %2512 = vmatpush1.xpose.msra.mxu0 0.0
        %2513 = vmatprep.subr.mxu0 0.0
        %2514 = vmatpush1.xpose.msra.mxu0 0.0
        %2515 = vmatprep.subr.mxu0 0.0
        %2516 = vmatpush1.xpose.msra.mxu0 0.0
        %2517 = vmatprep.subr.mxu0 0.0
        %2518 = vmatpush1.xpose.msra.mxu0 0.0
        %2519 = vmatprep.subr.mxu0 0.0
        %2520 = vmatpush1.xpose.msra.mxu0 0.0
        %2521 = vmatprep.subr.mxu0 0.0
        %2522 = vmatpush1.xpose.msra.mxu0 0.0
        %2523 = vmatprep.subr.mxu0 0.0
        %2524 = vmatpush1.xpose.msra.mxu0 0.0
        %2525 = vmatprep.subr.mxu0 0.0
        %2526 = vmatpush1.xpose.msra.mxu0 0.0
        %2527 = vmatprep.subr.mxu0 0.0
        %2528 = vmatpush1.xpose.msra.mxu0 0.0
        %2529 = vmatprep.subr.mxu0 0.0
        %2530 = vmatpush1.xpose.msra.mxu0 0.0
        %2531 = vmatprep.subr.mxu0 0.0
        %2532 = vmatpush1.xpose.msra.mxu0 0.0
        %2533 = vmatprep.subr.mxu0 0.0
        %2534 = vmatpush1.xpose.msra.mxu0 0.0
        %2535 = vmatprep.subr.mxu0 0.0
        %2536 = vmatpush1.xpose.msra.mxu0 0.0
        %2537 = vmatprep.subr.mxu0 0.0
        %2538 = vmatpush1.xpose.msra.mxu0 0.0
        %2539 = vmatprep.subr.mxu0 0.0
        %2540 = vmatpush1.xpose.msra.mxu0 0.0
        %2541 = vmatprep.subr.mxu0 0.0
        %2542 = vmatpush1.xpose.msra.mxu0 0.0
        %2543 = vmatprep.subr.mxu0 0.0
        %2544 = vmatpush1.xpose.msra.mxu0 0.0
        %2545 = vmatprep.subr.mxu0 0.0
        %2546 = vmatpush1.xpose.msra.mxu0 0.0
        %2547 = vmatprep.subr.mxu0 0.0
        %2548 = vmatpush1.xpose.msra.mxu0 0.0
        %2549 = vmatprep.subr.mxu0 0.0
        %2550 = vmatpush1.xpose.msra.mxu0 0.0
        %2551 = vmatprep.subr.mxu0 0.0
        %2552 = vmatpush1.xpose.msra.mxu0 0.0
        %2553 = vmatprep.subr.mxu0 0.0
        %2554 = vmatpush1.xpose.msra.mxu0 0.0
        %2555 = vmatprep.subr.mxu0 0.0
        %2556 = vmatpush1.xpose.msra.mxu0 0.0
        %2557 = vmatprep.subr.mxu0 0.0
        %2558 = vmatpush1.xpose.msra.mxu0 0.0
        %2559 = vmatprep.subr.mxu0 0.0
        %2560 = vmatpush1.xpose.msra.mxu0 0.0
        %2561 = vmatprep.subr.mxu0 0.0
        %2562 = vmatpush1.xpose.msra.mxu0 0.0
        %2563 = vmatprep.subr.mxu0 0.0
        %2564 = vmatpush1.xpose.msra.mxu0 0.0
        %2565 = vmatprep.subr.mxu0 0.0
        %2566 = vmatpush1.xpose.msra.mxu0 0.0
        %2567 = vmatprep.subr.mxu0 0.0
        %2568 = vmatpush1.xpose.msra.mxu0 0.0
        %2569 = vmatprep.mubr.f32.mxu0 0.0
        %2570 = vmatmul.mubr.f32.gmra.mrb[0].mxu0 %v2500
        %v2571 = vpop.f32.mrb[0].mxu0
        %v2572 = vadd.f32 0.0, %v2571
        %v2573 = vpop.f32.mrb[0].mxu0
        %2574 = vdwg.mxu0
        %v2576 = vsel %vm2270, %v889, 0
        %v2579 = vsel %vm2270, %v1473, 0
        %2581 = vmatprep.subr.mxu0 0.0
        %2582 = vmatpush1.xpose.msra.mxu0 %v2579
        %2583 = vmatprep.subr.mxu0 0.0
        %2584 = vmatpush1.xpose.msra.mxu0 0.0
        %2585 = vmatprep.subr.mxu0 0.0
        %2586 = vmatpush1.xpose.msra.mxu0 0.0
        %2587 = vmatprep.subr.mxu0 0.0
        %2588 = vmatpush1.xpose.msra.mxu0 0.0
        %2589 = vmatprep.subr.mxu0 0.0
        %2590 = vmatpush1.xpose.msra.mxu0 0.0
        %2591 = vmatprep.subr.mxu0 0.0
        %2592 = vmatpush1.xpose.msra.mxu0 0.0
        %2593 = vmatprep.subr.mxu0 0.0
        %2594 = vmatpush1.xpose.msra.mxu0 0.0
        %2595 = vmatprep.subr.mxu0 0.0
        %2596 = vmatpush1.xpose.msra.mxu0 0.0
        %2597 = vmatprep.subr.mxu0 0.0
        %2598 = vmatpush1.xpose.msra.mxu0 0.0
        %2599 = vmatprep.subr.mxu0 0.0
        %2600 = vmatpush1.xpose.msra.mxu0 0.0
        %2601 = vmatprep.subr.mxu0 0.0
        %2602 = vmatpush1.xpose.msra.mxu0 0.0
        %2603 = vmatprep.subr.mxu0 0.0
        %2604 = vmatpush1.xpose.msra.mxu0 0.0
        %2605 = vmatprep.subr.mxu0 0.0
        %2606 = vmatpush1.xpose.msra.mxu0 0.0
        %2607 = vmatprep.subr.mxu0 0.0
        %2608 = vmatpush1.xpose.msra.mxu0 0.0
        %2609 = vmatprep.subr.mxu0 0.0
        %2610 = vmatpush1.xpose.msra.mxu0 0.0
        %2611 = vmatprep.subr.mxu0 0.0
        %2612 = vmatpush1.xpose.msra.mxu0 0.0
        %2613 = vmatprep.subr.mxu0 0.0
        %2614 = vmatpush1.xpose.msra.mxu0 0.0
        %2615 = vmatprep.subr.mxu0 0.0
        %2616 = vmatpush1.xpose.msra.mxu0 0.0
        %2617 = vmatprep.subr.mxu0 0.0
        %2618 = vmatpush1.xpose.msra.mxu0 0.0
        %2619 = vmatprep.subr.mxu0 0.0
        %2620 = vmatpush1.xpose.msra.mxu0 0.0
        %2621 = vmatprep.subr.mxu0 0.0
        %2622 = vmatpush1.xpose.msra.mxu0 0.0
        %2623 = vmatprep.subr.mxu0 0.0
        %2624 = vmatpush1.xpose.msra.mxu0 0.0
        %2625 = vmatprep.subr.mxu0 0.0
        %2626 = vmatpush1.xpose.msra.mxu0 0.0
        %2627 = vmatprep.subr.mxu0 0.0
        %2628 = vmatpush1.xpose.msra.mxu0 0.0
        %2629 = vmatprep.subr.mxu0 0.0
        %2630 = vmatpush1.xpose.msra.mxu0 0.0
        %2631 = vmatprep.subr.mxu0 0.0
        %2632 = vmatpush1.xpose.msra.mxu0 0.0
        %2633 = vmatprep.subr.mxu0 0.0
        %2634 = vmatpush1.xpose.msra.mxu0 0.0
        %2635 = vmatprep.subr.mxu0 0.0
        %2636 = vmatpush1.xpose.msra.mxu0 0.0
        %2637 = vmatprep.subr.mxu0 0.0
        %2638 = vmatpush1.xpose.msra.mxu0 0.0
        %2639 = vmatprep.subr.mxu0 0.0
        %2640 = vmatpush1.xpose.msra.mxu0 0.0
        %2641 = vmatprep.subr.mxu0 0.0
        %2642 = vmatpush1.xpose.msra.mxu0 0.0
        %2643 = vmatprep.subr.mxu0 0.0
        %2644 = vmatpush1.xpose.msra.mxu0 0.0
        %2645 = vmatprep.mubr.f32.mxu0 0.0
        %2646 = vmatmul.mubr.f32.gmra.mrb[0].mxu0 %v2576
        %v2647 = vpop.f32.mrb[0].mxu0
        %v2648 = vadd.f32 0.0, %v2647
        %v2649 = vpop.f32.mrb[0].mxu0
        %2650 = vdwg.mxu0
        %v2652 = vsel %vm2270, %v959, 0
        %v2655 = vsel %vm2270, %v1543, 0
        %2657 = vmatprep.subr.mxu0 0.0
        %2658 = vmatpush1.xpose.msra.mxu0 %v2655
        %2659 = vmatprep.subr.mxu0 0.0
        %2660 = vmatpush1.xpose.msra.mxu0 0.0
        %2661 = vmatprep.subr.mxu0 0.0
        %2662 = vmatpush1.xpose.msra.mxu0 0.0
        %2663 = vmatprep.subr.mxu0 0.0
        %2664 = vmatpush1.xpose.msra.mxu0 0.0
        %2665 = vmatprep.subr.mxu0 0.0
        %2666 = vmatpush1.xpose.msra.mxu0 0.0
        %2667 = vmatprep.subr.mxu0 0.0
        %2668 = vmatpush1.xpose.msra.mxu0 0.0
        %2669 = vmatprep.subr.mxu0 0.0
        %2670 = vmatpush1.xpose.msra.mxu0 0.0
        %2671 = vmatprep.subr.mxu0 0.0
        %2672 = vmatpush1.xpose.msra.mxu0 0.0
        %2673 = vmatprep.subr.mxu0 0.0
        %2674 = vmatpush1.xpose.msra.mxu0 0.0
        %2675 = vmatprep.subr.mxu0 0.0
        %2676 = vmatpush1.xpose.msra.mxu0 0.0
        %2677 = vmatprep.subr.mxu0 0.0
        %2678 = vmatpush1.xpose.msra.mxu0 0.0
        %2679 = vmatprep.subr.mxu0 0.0
        %2680 = vmatpush1.xpose.msra.mxu0 0.0
        %2681 = vmatprep.subr.mxu0 0.0
        %2682 = vmatpush1.xpose.msra.mxu0 0.0
        %2683 = vmatprep.subr.mxu0 0.0
        %2684 = vmatpush1.xpose.msra.mxu0 0.0
        %2685 = vmatprep.subr.mxu0 0.0
        %2686 = vmatpush1.xpose.msra.mxu0 0.0
        %2687 = vmatprep.subr.mxu0 0.0
        %2688 = vmatpush1.xpose.msra.mxu0 0.0
        %2689 = vmatprep.subr.mxu0 0.0
        %2690 = vmatpush1.xpose.msra.mxu0 0.0
        %2691 = vmatprep.subr.mxu0 0.0
        %2692 = vmatpush1.xpose.msra.mxu0 0.0
        %2693 = vmatprep.subr.mxu0 0.0
        %2694 = vmatpush1.xpose.msra.mxu0 0.0
        %2695 = vmatprep.subr.mxu0 0.0
        %2696 = vmatpush1.xpose.msra.mxu0 0.0
        %2697 = vmatprep.subr.mxu0 0.0
        %2698 = vmatpush1.xpose.msra.mxu0 0.0
        %2699 = vmatprep.subr.mxu0 0.0
        %2700 = vmatpush1.xpose.msra.mxu0 0.0
        %2701 = vmatprep.subr.mxu0 0.0
        %2702 = vmatpush1.xpose.msra.mxu0 0.0
        %2703 = vmatprep.subr.mxu0 0.0
        %2704 = vmatpush1.xpose.msra.mxu0 0.0
        %2705 = vmatprep.subr.mxu0 0.0
        %2706 = vmatpush1.xpose.msra.mxu0 0.0
        %2707 = vmatprep.subr.mxu0 0.0
        %2708 = vmatpush1.xpose.msra.mxu0 0.0
        %2709 = vmatprep.subr.mxu0 0.0
        %2710 = vmatpush1.xpose.msra.mxu0 0.0
        %2711 = vmatprep.subr.mxu0 0.0
        %2712 = vmatpush1.xpose.msra.mxu0 0.0
        %2713 = vmatprep.subr.mxu0 0.0
        %2714 = vmatpush1.xpose.msra.mxu0 0.0
        %2715 = vmatprep.subr.mxu0 0.0
        %2716 = vmatpush1.xpose.msra.mxu0 0.0
        %2717 = vmatprep.subr.mxu0 0.0
        %2718 = vmatpush1.xpose.msra.mxu0 0.0
        %2719 = vmatprep.subr.mxu0 0.0
        %2720 = vmatpush1.xpose.msra.mxu0 0.0
        %2721 = vmatprep.mubr.f32.mxu0 0.0
        %2722 = vmatmul.mubr.f32.gmra.mrb[0].mxu0 %v2652
        %v2723 = vpop.f32.mrb[0].mxu0
        %v2724 = vadd.f32 0.0, %v2723
        %v2725 = vpop.f32.mrb[0].mxu0
        %2726 = vdwg.mxu0
        %v2728 = vsel %vm2270, %v1029, 0
        %v2731 = vsel %vm2270, %v1613, 0
        %2733 = vmatprep.subr.mxu0 0.0
        %2734 = vmatpush1.xpose.msra.mxu0 %v2731
        %2735 = vmatprep.subr.mxu0 0.0
        %2736 = vmatpush1.xpose.msra.mxu0 0.0
        %2737 = vmatprep.subr.mxu0 0.0
        %2738 = vmatpush1.xpose.msra.mxu0 0.0
        %2739 = vmatprep.subr.mxu0 0.0
        %2740 = vmatpush1.xpose.msra.mxu0 0.0
        %2741 = vmatprep.subr.mxu0 0.0
        %2742 = vmatpush1.xpose.msra.mxu0 0.0
        %2743 = vmatprep.subr.mxu0 0.0
        %2744 = vmatpush1.xpose.msra.mxu0 0.0
        %2745 = vmatprep.subr.mxu0 0.0
        %2746 = vmatpush1.xpose.msra.mxu0 0.0
        %2747 = vmatprep.subr.mxu0 0.0
        %2748 = vmatpush1.xpose.msra.mxu0 0.0
        %2749 = vmatprep.subr.mxu0 0.0
        %2750 = vmatpush1.xpose.msra.mxu0 0.0
        %2751 = vmatprep.subr.mxu0 0.0
        %2752 = vmatpush1.xpose.msra.mxu0 0.0
        %2753 = vmatprep.subr.mxu0 0.0
        %2754 = vmatpush1.xpose.msra.mxu0 0.0
        %2755 = vmatprep.subr.mxu0 0.0
        %2756 = vmatpush1.xpose.msra.mxu0 0.0
        %2757 = vmatprep.subr.mxu0 0.0
        %2758 = vmatpush1.xpose.msra.mxu0 0.0
        %2759 = vmatprep.subr.mxu0 0.0
        %2760 = vmatpush1.xpose.msra.mxu0 0.0
        %2761 = vmatprep.subr.mxu0 0.0
        %2762 = vmatpush1.xpose.msra.mxu0 0.0
        %2763 = vmatprep.subr.mxu0 0.0
        %2764 = vmatpush1.xpose.msra.mxu0 0.0
        %2765 = vmatprep.subr.mxu0 0.0
        %2766 = vmatpush1.xpose.msra.mxu0 0.0
        %2767 = vmatprep.subr.mxu0 0.0
        %2768 = vmatpush1.xpose.msra.mxu0 0.0
        %2769 = vmatprep.subr.mxu0 0.0
        %2770 = vmatpush1.xpose.msra.mxu0 0.0
        %2771 = vmatprep.subr.mxu0 0.0
        %2772 = vmatpush1.xpose.msra.mxu0 0.0
        %2773 = vmatprep.subr.mxu0 0.0
        %2774 = vmatpush1.xpose.msra.mxu0 0.0
        %2775 = vmatprep.subr.mxu0 0.0
        %2776 = vmatpush1.xpose.msra.mxu0 0.0
        %2777 = vmatprep.subr.mxu0 0.0
        %2778 = vmatpush1.xpose.msra.mxu0 0.0
        %2779 = vmatprep.subr.mxu0 0.0
        %2780 = vmatpush1.xpose.msra.mxu0 0.0
        %2781 = vmatprep.subr.mxu0 0.0
        %2782 = vmatpush1.xpose.msra.mxu0 0.0
        %2783 = vmatprep.subr.mxu0 0.0
        %2784 = vmatpush1.xpose.msra.mxu0 0.0
        %2785 = vmatprep.subr.mxu0 0.0
        %2786 = vmatpush1.xpose.msra.mxu0 0.0
        %2787 = vmatprep.subr.mxu0 0.0
        %2788 = vmatpush1.xpose.msra.mxu0 0.0
        %2789 = vmatprep.subr.mxu0 0.0
        %2790 = vmatpush1.xpose.msra.mxu0 0.0
        %2791 = vmatprep.subr.mxu0 0.0
        %2792 = vmatpush1.xpose.msra.mxu0 0.0
        %2793 = vmatprep.subr.mxu0 0.0
        %2794 = vmatpush1.xpose.msra.mxu0 0.0
        %2795 = vmatprep.subr.mxu0 0.0
        %2796 = vmatpush1.xpose.msra.mxu0 0.0
        %2797 = vmatprep.mubr.f32.mxu0 0.0
        %2798 = vmatmul.mubr.f32.gmra.mrb[0].mxu0 %v2728
        %v2799 = vpop.f32.mrb[0].mxu0
        %v2800 = vadd.f32 0.0, %v2799
        %v2801 = vpop.f32.mrb[0].mxu0
        %2802 = vdwg.mxu0
        %v2804 = vsel %vm2270, %v1099, 0
        %v2807 = vsel %vm2270, %v1683, 0
        %2809 = vmatprep.subr.mxu0 0.0
        %2810 = vmatpush1.xpose.msra.mxu0 %v2807
        %2811 = vmatprep.subr.mxu0 0.0
        %2812 = vmatpush1.xpose.msra.mxu0 0.0
        %2813 = vmatprep.subr.mxu0 0.0
        %2814 = vmatpush1.xpose.msra.mxu0 0.0
        %2815 = vmatprep.subr.mxu0 0.0
        %2816 = vmatpush1.xpose.msra.mxu0 0.0
        %2817 = vmatprep.subr.mxu0 0.0
        %2818 = vmatpush1.xpose.msra.mxu0 0.0
        %2819 = vmatprep.subr.mxu0 0.0
        %2820 = vmatpush1.xpose.msra.mxu0 0.0
        %2821 = vmatprep.subr.mxu0 0.0
        %2822 = vmatpush1.xpose.msra.mxu0 0.0
        %2823 = vmatprep.subr.mxu0 0.0
        %2824 = vmatpush1.xpose.msra.mxu0 0.0
        %2825 = vmatprep.subr.mxu0 0.0
        %2826 = vmatpush1.xpose.msra.mxu0 0.0
        %2827 = vmatprep.subr.mxu0 0.0
        %2828 = vmatpush1.xpose.msra.mxu0 0.0
        %2829 = vmatprep.subr.mxu0 0.0
        %2830 = vmatpush1.xpose.msra.mxu0 0.0
        %2831 = vmatprep.subr.mxu0 0.0
        %2832 = vmatpush1.xpose.msra.mxu0 0.0
        %2833 = vmatprep.subr.mxu0 0.0
        %2834 = vmatpush1.xpose.msra.mxu0 0.0
        %2835 = vmatprep.subr.mxu0 0.0
        %2836 = vmatpush1.xpose.msra.mxu0 0.0
        %2837 = vmatprep.subr.mxu0 0.0
        %2838 = vmatpush1.xpose.msra.mxu0 0.0
        %2839 = vmatprep.subr.mxu0 0.0
        %2840 = vmatpush1.xpose.msra.mxu0 0.0
        %2841 = vmatprep.subr.mxu0 0.0
        %2842 = vmatpush1.xpose.msra.mxu0 0.0
        %2843 = vmatprep.subr.mxu0 0.0
        %2844 = vmatpush1.xpose.msra.mxu0 0.0
        %2845 = vmatprep.subr.mxu0 0.0
        %2846 = vmatpush1.xpose.msra.mxu0 0.0
        %2847 = vmatprep.subr.mxu0 0.0
        %2848 = vmatpush1.xpose.msra.mxu0 0.0
        %2849 = vmatprep.subr.mxu0 0.0
        %2850 = vmatpush1.xpose.msra.mxu0 0.0
        %2851 = vmatprep.subr.mxu0 0.0
        %2852 = vmatpush1.xpose.msra.mxu0 0.0
        %2853 = vmatprep.subr.mxu0 0.0
        %2854 = vmatpush1.xpose.msra.mxu0 0.0
        %2855 = vmatprep.subr.mxu0 0.0
        %2856 = vmatpush1.xpose.msra.mxu0 0.0
        %2857 = vmatprep.subr.mxu0 0.0
        %2858 = vmatpush1.xpose.msra.mxu0 0.0
        %2859 = vmatprep.subr.mxu0 0.0
        %2860 = vmatpush1.xpose.msra.mxu0 0.0
        %2861 = vmatprep.subr.mxu0 0.0
        %2862 = vmatpush1.xpose.msra.mxu0 0.0
        %2863 = vmatprep.subr.mxu0 0.0
        %2864 = vmatpush1.xpose.msra.mxu0 0.0
        %2865 = vmatprep.subr.mxu0 0.0
        %2866 = vmatpush1.xpose.msra.mxu0 0.0
        %2867 = vmatprep.subr.mxu0 0.0
        %2868 = vmatpush1.xpose.msra.mxu0 0.0
        %2869 = vmatprep.subr.mxu0 0.0
        %2870 = vmatpush1.xpose.msra.mxu0 0.0
        %2871 = vmatprep.subr.mxu0 0.0
        %2872 = vmatpush1.xpose.msra.mxu0 0.0
        %2873 = vmatprep.mubr.f32.mxu0 0.0
        %2874 = vmatmul.mubr.f32.gmra.mrb[0].mxu0 %v2804
        %v2875 = vpop.f32.mrb[0].mxu0
        %v2876 = vadd.f32 0.0, %v2875
        %v2877 = vpop.f32.mrb[0].mxu0
        %2878 = vdwg.mxu0
        %v2879 = vmul.f32 %v2344, 0.35355338
        %v2880 = vmul.f32 %v2420, 0.35355338
        %v2881 = vmul.f32 %v2496, 0.35355338
        %v2882 = vmul.f32 %v2572, 0.35355338
        %v2883 = vmul.f32 %v2648, 0.35355338
        %v2884 = vmul.f32 %v2724, 0.35355338
        %v2885 = vmul.f32 %v2800, 0.35355338
        %v2886 = vmul.f32 %v2876, 0.35355338
        %v2895 = vlaneseq
        %v2896 = vshrl.u32 %v2895, 7
        %v2897 = vsub.s32 0, %v2896
        %v2898 = vrot.slane %v438, %v2897
        %v2899 = vlaneseq
        %v2900 = vshrl.u32 %v2899, 7
        %v2901 = vsub.s32 0, %v2900
        %v2902 = vrot.slane %v439, %v2901
        %v2903 = vlaneseq
        %v2904 = vshrl.u32 %v2903, 7
        %v2905 = vsub.s32 0, %v2904
        %v2906 = vrot.slane %v440, %v2905
        %v2907 = vlaneseq
        %v2908 = vshrl.u32 %v2907, 7
        %v2909 = vsub.s32 0, %v2908
        %v2910 = vrot.slane %v441, %v2909
        %v2911 = vlaneseq
        %v2912 = vshrl.u32 %v2911, 7
        %v2913 = vsub.s32 0, %v2912
        %v2914 = vrot.slane %v442, %v2913
        %v2915 = vlaneseq
        %v2916 = vshrl.u32 %v2915, 7
        %v2917 = vsub.s32 0, %v2916
        %v2918 = vrot.slane %v443, %v2917
        %v2919 = vlaneseq
        %v2920 = vshrl.u32 %v2919, 7
        %v2921 = vsub.s32 0, %v2920
        %v2922 = vrot.slane %v444, %v2921
        %v2923 = vlaneseq
        %v2924 = vshrl.u32 %v2923, 7
        %v2925 = vsub.s32 0, %v2924
        %v2926 = vrot.slane %v445, %v2925
        %v2935 = vadd.f32 %v2879, %v2898
        %v2936 = vadd.f32 %v2880, %v2902
        %v2937 = vadd.f32 %v2881, %v2906
        %v2938 = vadd.f32 %v2882, %v2910
        %v2939 = vadd.f32 %v2883, %v2914
        %v2940 = vadd.f32 %v2884, %v2918
        %v2941 = vadd.f32 %v2885, %v2922
        %v2942 = vadd.f32 %v2886, %v2926
        %v2943 = vsel %vm2270, %v2935, -inf
        %2944 = vmax.xlane.f32.xlu0 %v2943
        %v2945 = vpop.xlane.xlu0 %2944
        %v2946 = vsel %vm2270, %v2936, -inf
        %2947 = vmax.xlane.f32.xlu0 %v2946
        %v2948 = vpop.xlane.xlu0 %2947
        %v2949 = vsel %vm2270, %v2937, -inf
        %2950 = vmax.xlane.f32.xlu0 %v2949
        %v2951 = vpop.xlane.xlu0 %2950
        %v2952 = vsel %vm2270, %v2938, -inf
        %2953 = vmax.xlane.f32.xlu0 %v2952
        %v2954 = vpop.xlane.xlu0 %2953
        %v2955 = vsel %vm2270, %v2939, -inf
        %2956 = vmax.xlane.f32.xlu0 %v2955
        %v2957 = vpop.xlane.xlu0 %2956
        %v2958 = vsel %vm2270, %v2940, -inf
        %2959 = vmax.xlane.f32.xlu0 %v2958
        %v2960 = vpop.xlane.xlu0 %2959
        %v2961 = vsel %vm2270, %v2941, -inf
        %2962 = vmax.xlane.f32.xlu0 %v2961
        %v2963 = vpop.xlane.xlu0 %2962
        %v2964 = vsel %vm2270, %v2942, -inf
        %2965 = vmax.xlane.f32.xlu0 %v2964
        %v2966 = vpop.xlane.xlu0 %2965
        %v2967 = vsub.f32 %v2935, %v2945
        %v2968 = vsub.f32 %v2936, %v2948
        %v2969 = vsub.f32 %v2937, %v2951
        %v2970 = vsub.f32 %v2938, %v2954
        %v2971 = vsub.f32 %v2939, %v2957
        %v2972 = vsub.f32 %v2940, %v2960
        %v2973 = vsub.f32 %v2941, %v2963
        %v2974 = vsub.f32 %v2942, %v2966
        %v2975 = vmul.f32 %v2967, 1.442695
        %v2976 = vpow.pop %v2975
        %v2977 = vmul.f32 %v2968, 1.442695
        %v2978 = vpow.pop %v2977
        %v2979 = vmul.f32 %v2969, 1.442695
        %v2980 = vpow.pop %v2979
        %v2981 = vmul.f32 %v2970, 1.442695
        %v2982 = vpow.pop %v2981
        %v2983 = vmul.f32 %v2971, 1.442695
        %v2984 = vpow.pop %v2983
        %v2985 = vmul.f32 %v2972, 1.442695
        %v2986 = vpow.pop %v2985
        %v2987 = vmul.f32 %v2973, 1.442695
        %v2988 = vpow.pop %v2987
        %v2989 = vmul.f32 %v2974, 1.442695
        %v2990 = vpow.pop %v2989
        %v2991 = vsel %vm2270, %v2976, 0.0
        %2992 = vadd.xlane.f32.xlu0 %v2991
        %v2993 = vpop.xlane.xlu0 %2992
        %v2994 = vsel %vm2270, %v2978, 0.0
        %2995 = vadd.xlane.f32.xlu0 %v2994
        %v2996 = vpop.xlane.xlu0 %2995
        %v2997 = vsel %vm2270, %v2980, 0.0
        %2998 = vadd.xlane.f32.xlu0 %v2997
        %v2999 = vpop.xlane.xlu0 %2998
        %v3000 = vsel %vm2270, %v2982, 0.0
        %3001 = vadd.xlane.f32.xlu0 %v3000
        %v3002 = vpop.xlane.xlu0 %3001
        %v3003 = vsel %vm2270, %v2984, 0.0
        %3004 = vadd.xlane.f32.xlu0 %v3003
        %v3005 = vpop.xlane.xlu0 %3004
        %v3006 = vsel %vm2270, %v2986, 0.0
        %3007 = vadd.xlane.f32.xlu0 %v3006
        %v3008 = vpop.xlane.xlu0 %3007
        %v3009 = vsel %vm2270, %v2988, 0.0
        %3010 = vadd.xlane.f32.xlu0 %v3009
        %v3011 = vpop.xlane.xlu0 %3010
        %v3012 = vsel %vm2270, %v2990, 0.0
        %3013 = vadd.xlane.f32.xlu0 %v3012
        %v3014 = vpop.xlane.xlu0 %3013
        %v3015 = vrcp.pop %v2993
        %v3016 = vrcp.pop %v2996
        %v3017 = vrcp.pop %v2999
        %v3018 = vrcp.pop %v3002
        %v3019 = vrcp.pop %v3005
        %v3020 = vrcp.pop %v3008
        %v3021 = vrcp.pop %v3011
        %v3022 = vrcp.pop %v3014
        %v3023 = vmul.f32 %v2976, %v3015
        %v3024 = vmul.f32 %v2978, %v3016
        %v3025 = vmul.f32 %v2980, %v3017
        %v3026 = vmul.f32 %v2982, %v3018
        %v3027 = vmul.f32 %v2984, %v3019
        %v3028 = vmul.f32 %v2986, %v3020
        %v3029 = vmul.f32 %v2988, %v3021
        %v3030 = vmul.f32 %v2990, %v3022
        %v3032 = vsel %vm2270, %v3023, 0
        %3034 = vmatprep.subr.mxu0 0.0
        %3035 = vmatpush1.msra.mxu0 %v1777
        %3036 = vmatprep.subr.mxu0 0.0
        %3037 = vmatpush1.msra.mxu0 0.0
        %3038 = vmatprep.subr.mxu0 0.0
        %3039 = vmatpush1.msra.mxu0 0.0
        %3040 = vmatprep.subr.mxu0 0.0
        %3041 = vmatpush1.msra.mxu0 0.0
        %3042 = vmatprep.subr.mxu0 0.0
        %3043 = vmatpush1.msra.mxu0 0.0
        %3044 = vmatprep.subr.mxu0 0.0
        %3045 = vmatpush1.msra.mxu0 0.0
        %3046 = vmatprep.subr.mxu0 0.0
        %3047 = vmatpush1.msra.mxu0 0.0
        %3048 = vmatprep.subr.mxu0 0.0
        %3049 = vmatpush1.msra.mxu0 0.0
        %3050 = vmatprep.subr.mxu0 0.0
        %3051 = vmatpush1.msra.mxu0 0.0
        %3052 = vmatprep.subr.mxu0 0.0
        %3053 = vmatpush1.msra.mxu0 0.0
        %3054 = vmatprep.subr.mxu0 0.0
        %3055 = vmatpush1.msra.mxu0 0.0
        %3056 = vmatprep.subr.mxu0 0.0
        %3057 = vmatpush1.msra.mxu0 0.0
        %3058 = vmatprep.subr.mxu0 0.0
        %3059 = vmatpush1.msra.mxu0 0.0
        %3060 = vmatprep.subr.mxu0 0.0
        %3061 = vmatpush1.msra.mxu0 0.0
        %3062 = vmatprep.subr.mxu0 0.0
        %3063 = vmatpush1.msra.mxu0 0.0
        %3064 = vmatprep.subr.mxu0 0.0
        %3065 = vmatpush1.msra.mxu0 0.0
        %3066 = vmatprep.subr.mxu0 0.0
        %3067 = vmatpush1.msra.mxu0 0.0
        %3068 = vmatprep.subr.mxu0 0.0
        %3069 = vmatpush1.msra.mxu0 0.0
        %3070 = vmatprep.subr.mxu0 0.0
        %3071 = vmatpush1.msra.mxu0 0.0
        %3072 = vmatprep.subr.mxu0 0.0
        %3073 = vmatpush1.msra.mxu0 0.0
        %3074 = vmatprep.subr.mxu0 0.0
        %3075 = vmatpush1.msra.mxu0 0.0
        %3076 = vmatprep.subr.mxu0 0.0
        %3077 = vmatpush1.msra.mxu0 0.0
        %3078 = vmatprep.subr.mxu0 0.0
        %3079 = vmatpush1.msra.mxu0 0.0
        %3080 = vmatprep.subr.mxu0 0.0
        %3081 = vmatpush1.msra.mxu0 0.0
        %3082 = vmatprep.subr.mxu0 0.0
        %3083 = vmatpush1.msra.mxu0 0.0
        %3084 = vmatprep.subr.mxu0 0.0
        %3085 = vmatpush1.msra.mxu0 0.0
        %3086 = vmatprep.subr.mxu0 0.0
        %3087 = vmatpush1.msra.mxu0 0.0
        %3088 = vmatprep.subr.mxu0 0.0
        %3089 = vmatpush1.msra.mxu0 0.0
        %3090 = vmatprep.subr.mxu0 0.0
        %3091 = vmatpush1.msra.mxu0 0.0
        %3092 = vmatprep.subr.mxu0 0.0
        %3093 = vmatpush1.msra.mxu0 0.0
        %3094 = vmatprep.subr.mxu0 0.0
        %3095 = vmatpush1.msra.mxu0 0.0
        %3096 = vmatprep.subr.mxu0 0.0
        %3097 = vmatpush1.msra.mxu0 0.0
        %3098 = vmatprep.mubr.f32.mxu0 0.0
        %3099 = vmatmul.mubr.f32.gmra.mrb[0].mxu0 %v3032
        %v3100 = vpop.f32.mrb[0].mxu0
        %v3101 = vadd.f32 0.0, %v3100
        %v3102 = vpop.f32.mrb[0].mxu0
        %3103 = vdwg.mxu0
        %v3105 = vsel %vm2270, %v3024, 0
        %3107 = vmatprep.subr.mxu0 0.0
        %3108 = vmatpush1.msra.mxu0 %v1847
        %3109 = vmatprep.subr.mxu0 0.0
        %3110 = vmatpush1.msra.mxu0 0.0
        %3111 = vmatprep.subr.mxu0 0.0
        %3112 = vmatpush1.msra.mxu0 0.0
        %3113 = vmatprep.subr.mxu0 0.0
        %3114 = vmatpush1.msra.mxu0 0.0
        %3115 = vmatprep.subr.mxu0 0.0
        %3116 = vmatpush1.msra.mxu0 0.0
        %3117 = vmatprep.subr.mxu0 0.0
        %3118 = vmatpush1.msra.mxu0 0.0
        %3119 = vmatprep.subr.mxu0 0.0
        %3120 = vmatpush1.msra.mxu0 0.0
        %3121 = vmatprep.subr.mxu0 0.0
        %3122 = vmatpush1.msra.mxu0 0.0
        %3123 = vmatprep.subr.mxu0 0.0
        %3124 = vmatpush1.msra.mxu0 0.0
        %3125 = vmatprep.subr.mxu0 0.0
        %3126 = vmatpush1.msra.mxu0 0.0
        %3127 = vmatprep.subr.mxu0 0.0
        %3128 = vmatpush1.msra.mxu0 0.0
        %3129 = vmatprep.subr.mxu0 0.0
        %3130 = vmatpush1.msra.mxu0 0.0
        %3131 = vmatprep.subr.mxu0 0.0
        %3132 = vmatpush1.msra.mxu0 0.0
        %3133 = vmatprep.subr.mxu0 0.0
        %3134 = vmatpush1.msra.mxu0 0.0
        %3135 = vmatprep.subr.mxu0 0.0
        %3136 = vmatpush1.msra.mxu0 0.0
        %3137 = vmatprep.subr.mxu0 0.0
        %3138 = vmatpush1.msra.mxu0 0.0
        %3139 = vmatprep.subr.mxu0 0.0
        %3140 = vmatpush1.msra.mxu0 0.0
        %3141 = vmatprep.subr.mxu0 0.0
        %3142 = vmatpush1.msra.mxu0 0.0
        %3143 = vmatprep.subr.mxu0 0.0
        %3144 = vmatpush1.msra.mxu0 0.0
        %3145 = vmatprep.subr.mxu0 0.0
        %3146 = vmatpush1.msra.mxu0 0.0
        %3147 = vmatprep.subr.mxu0 0.0
        %3148 = vmatpush1.msra.mxu0 0.0
        %3149 = vmatprep.subr.mxu0 0.0
        %3150 = vmatpush1.msra.mxu0 0.0
        %3151 = vmatprep.subr.mxu0 0.0
        %3152 = vmatpush1.msra.mxu0 0.0
        %3153 = vmatprep.subr.mxu0 0.0
        %3154 = vmatpush1.msra.mxu0 0.0
        %3155 = vmatprep.subr.mxu0 0.0
        %3156 = vmatpush1.msra.mxu0 0.0
        %3157 = vmatprep.subr.mxu0 0.0
        %3158 = vmatpush1.msra.mxu0 0.0
        %3159 = vmatprep.subr.mxu0 0.0
        %3160 = vmatpush1.msra.mxu0 0.0
        %3161 = vmatprep.subr.mxu0 0.0
        %3162 = vmatpush1.msra.mxu0 0.0
        %3163 = vmatprep.subr.mxu0 0.0
        %3164 = vmatpush1.msra.mxu0 0.0
        %3165 = vmatprep.subr.mxu0 0.0
        %3166 = vmatpush1.msra.mxu0 0.0
        %3167 = vmatprep.subr.mxu0 0.0
        %3168 = vmatpush1.msra.mxu0 0.0
        %3169 = vmatprep.subr.mxu0 0.0
        %3170 = vmatpush1.msra.mxu0 0.0
        %3171 = vmatprep.mubr.f32.mxu0 0.0
        %3172 = vmatmul.mubr.f32.gmra.mrb[0].mxu0 %v3105
        %v3173 = vpop.f32.mrb[0].mxu0
        %v3174 = vadd.f32 0.0, %v3173
        %v3175 = vpop.f32.mrb[0].mxu0
        %3176 = vdwg.mxu0
        %v3178 = vsel %vm2270, %v3025, 0
        %3180 = vmatprep.subr.mxu0 0.0
        %3181 = vmatpush1.msra.mxu0 %v1917
        %3182 = vmatprep.subr.mxu0 0.0
        %3183 = vmatpush1.msra.mxu0 0.0
        %3184 = vmatprep.subr.mxu0 0.0
        %3185 = vmatpush1.msra.mxu0 0.0
        %3186 = vmatprep.subr.mxu0 0.0
        %3187 = vmatpush1.msra.mxu0 0.0
        %3188 = vmatprep.subr.mxu0 0.0
        %3189 = vmatpush1.msra.mxu0 0.0
        %3190 = vmatprep.subr.mxu0 0.0
        %3191 = vmatpush1.msra.mxu0 0.0
        %3192 = vmatprep.subr.mxu0 0.0
        %3193 = vmatpush1.msra.mxu0 0.0
        %3194 = vmatprep.subr.mxu0 0.0
        %3195 = vmatpush1.msra.mxu0 0.0
        %3196 = vmatprep.subr.mxu0 0.0
        %3197 = vmatpush1.msra.mxu0 0.0
        %3198 = vmatprep.subr.mxu0 0.0
        %3199 = vmatpush1.msra.mxu0 0.0
        %3200 = vmatprep.subr.mxu0 0.0
        %3201 = vmatpush1.msra.mxu0 0.0
        %3202 = vmatprep.subr.mxu0 0.0
        %3203 = vmatpush1.msra.mxu0 0.0
        %3204 = vmatprep.subr.mxu0 0.0
        %3205 = vmatpush1.msra.mxu0 0.0
        %3206 = vmatprep.subr.mxu0 0.0
        %3207 = vmatpush1.msra.mxu0 0.0
        %3208 = vmatprep.subr.mxu0 0.0
        %3209 = vmatpush1.msra.mxu0 0.0
        %3210 = vmatprep.subr.mxu0 0.0
        %3211 = vmatpush1.msra.mxu0 0.0
        %3212 = vmatprep.subr.mxu0 0.0
        %3213 = vmatpush1.msra.mxu0 0.0
        %3214 = vmatprep.subr.mxu0 0.0
        %3215 = vmatpush1.msra.mxu0 0.0
        %3216 = vmatprep.subr.mxu0 0.0
        %3217 = vmatpush1.msra.mxu0 0.0
        %3218 = vmatprep.subr.mxu0 0.0
        %3219 = vmatpush1.msra.mxu0 0.0
        %3220 = vmatprep.subr.mxu0 0.0
        %3221 = vmatpush1.msra.mxu0 0.0
        %3222 = vmatprep.subr.mxu0 0.0
        %3223 = vmatpush1.msra.mxu0 0.0
        %3224 = vmatprep.subr.mxu0 0.0
        %3225 = vmatpush1.msra.mxu0 0.0
        %3226 = vmatprep.subr.mxu0 0.0
        %3227 = vmatpush1.msra.mxu0 0.0
        %3228 = vmatprep.subr.mxu0 0.0
        %3229 = vmatpush1.msra.mxu0 0.0
        %3230 = vmatprep.subr.mxu0 0.0
        %3231 = vmatpush1.msra.mxu0 0.0
        %3232 = vmatprep.subr.mxu0 0.0
        %3233 = vmatpush1.msra.mxu0 0.0
        %3234 = vmatprep.subr.mxu0 0.0
        %3235 = vmatpush1.msra.mxu0 0.0
        %3236 = vmatprep.subr.mxu0 0.0
        %3237 = vmatpush1.msra.mxu0 0.0
        %3238 = vmatprep.subr.mxu0 0.0
        %3239 = vmatpush1.msra.mxu0 0.0
        %3240 = vmatprep.subr.mxu0 0.0
        %3241 = vmatpush1.msra.mxu0 0.0
        %3242 = vmatprep.subr.mxu0 0.0
        %3243 = vmatpush1.msra.mxu0 0.0
        %3244 = vmatprep.mubr.f32.mxu0 0.0
        %3245 = vmatmul.mubr.f32.gmra.mrb[0].mxu0 %v3178
        %v3246 = vpop.f32.mrb[0].mxu0
        %v3247 = vadd.f32 0.0, %v3246
        %v3248 = vpop.f32.mrb[0].mxu0
        %3249 = vdwg.mxu0
        %v3251 = vsel %vm2270, %v3026, 0
        %3253 = vmatprep.subr.mxu0 0.0
        %3254 = vmatpush1.msra.mxu0 %v1987
        %3255 = vmatprep.subr.mxu0 0.0
        %3256 = vmatpush1.msra.mxu0 0.0
        %3257 = vmatprep.subr.mxu0 0.0
        %3258 = vmatpush1.msra.mxu0 0.0
        %3259 = vmatprep.subr.mxu0 0.0
        %3260 = vmatpush1.msra.mxu0 0.0
        %3261 = vmatprep.subr.mxu0 0.0
        %3262 = vmatpush1.msra.mxu0 0.0
        %3263 = vmatprep.subr.mxu0 0.0
        %3264 = vmatpush1.msra.mxu0 0.0
        %3265 = vmatprep.subr.mxu0 0.0
        %3266 = vmatpush1.msra.mxu0 0.0
        %3267 = vmatprep.subr.mxu0 0.0
        %3268 = vmatpush1.msra.mxu0 0.0
        %3269 = vmatprep.subr.mxu0 0.0
        %3270 = vmatpush1.msra.mxu0 0.0
        %3271 = vmatprep.subr.mxu0 0.0
        %3272 = vmatpush1.msra.mxu0 0.0
        %3273 = vmatprep.subr.mxu0 0.0
        %3274 = vmatpush1.msra.mxu0 0.0
        %3275 = vmatprep.subr.mxu0 0.0
        %3276 = vmatpush1.msra.mxu0 0.0
        %3277 = vmatprep.subr.mxu0 0.0
        %3278 = vmatpush1.msra.mxu0 0.0
        %3279 = vmatprep.subr.mxu0 0.0
        %3280 = vmatpush1.msra.mxu0 0.0
        %3281 = vmatprep.subr.mxu0 0.0
        %3282 = vmatpush1.msra.mxu0 0.0
        %3283 = vmatprep.subr.mxu0 0.0
        %3284 = vmatpush1.msra.mxu0 0.0
        %3285 = vmatprep.subr.mxu0 0.0
        %3286 = vmatpush1.msra.mxu0 0.0
        %3287 = vmatprep.subr.mxu0 0.0
        %3288 = vmatpush1.msra.mxu0 0.0
        %3289 = vmatprep.subr.mxu0 0.0
        %3290 = vmatpush1.msra.mxu0 0.0
        %3291 = vmatprep.subr.mxu0 0.0
        %3292 = vmatpush1.msra.mxu0 0.0
        %3293 = vmatprep.subr.mxu0 0.0
        %3294 = vmatpush1.msra.mxu0 0.0
        %3295 = vmatprep.subr.mxu0 0.0
        %3296 = vmatpush1.msra.mxu0 0.0
        %3297 = vmatprep.subr.mxu0 0.0
        %3298 = vmatpush1.msra.mxu0 0.0
        %3299 = vmatprep.subr.mxu0 0.0
        %3300 = vmatpush1.msra.mxu0 0.0
        %3301 = vmatprep.subr.mxu0 0.0
        %3302 = vmatpush1.msra.mxu0 0.0
        %3303 = vmatprep.subr.mxu0 0.0
        %3304 = vmatpush1.msra.mxu0 0.0
        %3305 = vmatprep.subr.mxu0 0.0
        %3306 = vmatpush1.msra.mxu0 0.0
        %3307 = vmatprep.subr.mxu0 0.0
        %3308 = vmatpush1.msra.mxu0 0.0
        %3309 = vmatprep.subr.mxu0 0.0
        %3310 = vmatpush1.msra.mxu0 0.0
        %3311 = vmatprep.subr.mxu0 0.0
        %3312 = vmatpush1.msra.mxu0 0.0
        %3313 = vmatprep.subr.mxu0 0.0
        %3314 = vmatpush1.msra.mxu0 0.0
        %3315 = vmatprep.subr.mxu0 0.0
        %3316 = vmatpush1.msra.mxu0 0.0
        %3317 = vmatprep.mubr.f32.mxu0 0.0
        %3318 = vmatmul.mubr.f32.gmra.mrb[0].mxu0 %v3251
        %v3319 = vpop.f32.mrb[0].mxu0
        %v3320 = vadd.f32 0.0, %v3319
        %v3321 = vpop.f32.mrb[0].mxu0
        %3322 = vdwg.mxu0
        %v3324 = vsel %vm2270, %v3027, 0
        %3326 = vmatprep.subr.mxu0 0.0
        %3327 = vmatpush1.msra.mxu0 %v2057
        %3328 = vmatprep.subr.mxu0 0.0
        %3329 = vmatpush1.msra.mxu0 0.0
        %3330 = vmatprep.subr.mxu0 0.0
        %3331 = vmatpush1.msra.mxu0 0.0
        %3332 = vmatprep.subr.mxu0 0.0
        %3333 = vmatpush1.msra.mxu0 0.0
        %3334 = vmatprep.subr.mxu0 0.0
        %3335 = vmatpush1.msra.mxu0 0.0
        %3336 = vmatprep.subr.mxu0 0.0
        %3337 = vmatpush1.msra.mxu0 0.0
        %3338 = vmatprep.subr.mxu0 0.0
        %3339 = vmatpush1.msra.mxu0 0.0
        %3340 = vmatprep.subr.mxu0 0.0
        %3341 = vmatpush1.msra.mxu0 0.0
        %3342 = vmatprep.subr.mxu0 0.0
        %3343 = vmatpush1.msra.mxu0 0.0
        %3344 = vmatprep.subr.mxu0 0.0
        %3345 = vmatpush1.msra.mxu0 0.0
        %3346 = vmatprep.subr.mxu0 0.0
        %3347 = vmatpush1.msra.mxu0 0.0
        %3348 = vmatprep.subr.mxu0 0.0
        %3349 = vmatpush1.msra.mxu0 0.0
        %3350 = vmatprep.subr.mxu0 0.0
        %3351 = vmatpush1.msra.mxu0 0.0
        %3352 = vmatprep.subr.mxu0 0.0
        %3353 = vmatpush1.msra.mxu0 0.0
        %3354 = vmatprep.subr.mxu0 0.0
        %3355 = vmatpush1.msra.mxu0 0.0
        %3356 = vmatprep.subr.mxu0 0.0
        %3357 = vmatpush1.msra.mxu0 0.0
        %3358 = vmatprep.subr.mxu0 0.0
        %3359 = vmatpush1.msra.mxu0 0.0
        %3360 = vmatprep.subr.mxu0 0.0
        %3361 = vmatpush1.msra.mxu0 0.0
        %3362 = vmatprep.subr.mxu0 0.0
        %3363 = vmatpush1.msra.mxu0 0.0
        %3364 = vmatprep.subr.mxu0 0.0
        %3365 = vmatpush1.msra.mxu0 0.0
        %3366 = vmatprep.subr.mxu0 0.0
        %3367 = vmatpush1.msra.mxu0 0.0
        %3368 = vmatprep.subr.mxu0 0.0
        %3369 = vmatpush1.msra.mxu0 0.0
        %3370 = vmatprep.subr.mxu0 0.0
        %3371 = vmatpush1.msra.mxu0 0.0
        %3372 = vmatprep.subr.mxu0 0.0
        %3373 = vmatpush1.msra.mxu0 0.0
        %3374 = vmatprep.subr.mxu0 0.0
        %3375 = vmatpush1.msra.mxu0 0.0
        %3376 = vmatprep.subr.mxu0 0.0
        %3377 = vmatpush1.msra.mxu0 0.0
        %3378 = vmatprep.subr.mxu0 0.0
        %3379 = vmatpush1.msra.mxu0 0.0
        %3380 = vmatprep.subr.mxu0 0.0
        %3381 = vmatpush1.msra.mxu0 0.0
        %3382 = vmatprep.subr.mxu0 0.0
        %3383 = vmatpush1.msra.mxu0 0.0
        %3384 = vmatprep.subr.mxu0 0.0
        %3385 = vmatpush1.msra.mxu0 0.0
        %3386 = vmatprep.subr.mxu0 0.0
        %3387 = vmatpush1.msra.mxu0 0.0
        %3388 = vmatprep.subr.mxu0 0.0
        %3389 = vmatpush1.msra.mxu0 0.0
        %3390 = vmatprep.mubr.f32.mxu0 0.0
        %3391 = vmatmul.mubr.f32.gmra.mrb[0].mxu0 %v3324
        %v3392 = vpop.f32.mrb[0].mxu0
        %v3393 = vadd.f32 0.0, %v3392
        %v3394 = vpop.f32.mrb[0].mxu0
        %3395 = vdwg.mxu0
        %v3397 = vsel %vm2270, %v3028, 0
        %3399 = vmatprep.subr.mxu0 0.0
        %3400 = vmatpush1.msra.mxu0 %v2127
        %3401 = vmatprep.subr.mxu0 0.0
        %3402 = vmatpush1.msra.mxu0 0.0
        %3403 = vmatprep.subr.mxu0 0.0
        %3404 = vmatpush1.msra.mxu0 0.0
        %3405 = vmatprep.subr.mxu0 0.0
        %3406 = vmatpush1.msra.mxu0 0.0
        %3407 = vmatprep.subr.mxu0 0.0
        %3408 = vmatpush1.msra.mxu0 0.0
        %3409 = vmatprep.subr.mxu0 0.0
        %3410 = vmatpush1.msra.mxu0 0.0
        %3411 = vmatprep.subr.mxu0 0.0
        %3412 = vmatpush1.msra.mxu0 0.0
        %3413 = vmatprep.subr.mxu0 0.0
        %3414 = vmatpush1.msra.mxu0 0.0
        %3415 = vmatprep.subr.mxu0 0.0
        %3416 = vmatpush1.msra.mxu0 0.0
        %3417 = vmatprep.subr.mxu0 0.0
        %3418 = vmatpush1.msra.mxu0 0.0
        %3419 = vmatprep.subr.mxu0 0.0
        %3420 = vmatpush1.msra.mxu0 0.0
        %3421 = vmatprep.subr.mxu0 0.0
        %3422 = vmatpush1.msra.mxu0 0.0
        %3423 = vmatprep.subr.mxu0 0.0
        %3424 = vmatpush1.msra.mxu0 0.0
        %3425 = vmatprep.subr.mxu0 0.0
        %3426 = vmatpush1.msra.mxu0 0.0
        %3427 = vmatprep.subr.mxu0 0.0
        %3428 = vmatpush1.msra.mxu0 0.0
        %3429 = vmatprep.subr.mxu0 0.0
        %3430 = vmatpush1.msra.mxu0 0.0
        %3431 = vmatprep.subr.mxu0 0.0
        %3432 = vmatpush1.msra.mxu0 0.0
        %3433 = vmatprep.subr.mxu0 0.0
        %3434 = vmatpush1.msra.mxu0 0.0
        %3435 = vmatprep.subr.mxu0 0.0
        %3436 = vmatpush1.msra.mxu0 0.0
        %3437 = vmatprep.subr.mxu0 0.0
        %3438 = vmatpush1.msra.mxu0 0.0
        %3439 = vmatprep.subr.mxu0 0.0
        %3440 = vmatpush1.msra.mxu0 0.0
        %3441 = vmatprep.subr.mxu0 0.0
        %3442 = vmatpush1.msra.mxu0 0.0
        %3443 = vmatprep.subr.mxu0 0.0
        %3444 = vmatpush1.msra.mxu0 0.0
        %3445 = vmatprep.subr.mxu0 0.0
        %3446 = vmatpush1.msra.mxu0 0.0
        %3447 = vmatprep.subr.mxu0 0.0
        %3448 = vmatpush1.msra.mxu0 0.0
        %3449 = vmatprep.subr.mxu0 0.0
        %3450 = vmatpush1.msra.mxu0 0.0
        %3451 = vmatprep.subr.mxu0 0.0
        %3452 = vmatpush1.msra.mxu0 0.0
        %3453 = vmatprep.subr.mxu0 0.0
        %3454 = vmatpush1.msra.mxu0 0.0
        %3455 = vmatprep.subr.mxu0 0.0
        %3456 = vmatpush1.msra.mxu0 0.0
        %3457 = vmatprep.subr.mxu0 0.0
        %3458 = vmatpush1.msra.mxu0 0.0
        %3459 = vmatprep.subr.mxu0 0.0
        %3460 = vmatpush1.msra.mxu0 0.0
        %3461 = vmatprep.subr.mxu0 0.0
        %3462 = vmatpush1.msra.mxu0 0.0
        %3463 = vmatprep.mubr.f32.mxu0 0.0
        %3464 = vmatmul.mubr.f32.gmra.mrb[0].mxu0 %v3397
        %v3465 = vpop.f32.mrb[0].mxu0
        %v3466 = vadd.f32 0.0, %v3465
        %v3467 = vpop.f32.mrb[0].mxu0
        %3468 = vdwg.mxu0
        %v3470 = vsel %vm2270, %v3029, 0
        %3472 = vmatprep.subr.mxu0 0.0
        %3473 = vmatpush1.msra.mxu0 %v2197
        %3474 = vmatprep.subr.mxu0 0.0
        %3475 = vmatpush1.msra.mxu0 0.0
        %3476 = vmatprep.subr.mxu0 0.0
        %3477 = vmatpush1.msra.mxu0 0.0
        %3478 = vmatprep.subr.mxu0 0.0
        %3479 = vmatpush1.msra.mxu0 0.0
        %3480 = vmatprep.subr.mxu0 0.0
        %3481 = vmatpush1.msra.mxu0 0.0
        %3482 = vmatprep.subr.mxu0 0.0
        %3483 = vmatpush1.msra.mxu0 0.0
        %3484 = vmatprep.subr.mxu0 0.0
        %3485 = vmatpush1.msra.mxu0 0.0
        %3486 = vmatprep.subr.mxu0 0.0
        %3487 = vmatpush1.msra.mxu0 0.0
        %3488 = vmatprep.subr.mxu0 0.0
        %3489 = vmatpush1.msra.mxu0 0.0
        %3490 = vmatprep.subr.mxu0 0.0
        %3491 = vmatpush1.msra.mxu0 0.0
        %3492 = vmatprep.subr.mxu0 0.0
        %3493 = vmatpush1.msra.mxu0 0.0
        %3494 = vmatprep.subr.mxu0 0.0
        %3495 = vmatpush1.msra.mxu0 0.0
        %3496 = vmatprep.subr.mxu0 0.0
        %3497 = vmatpush1.msra.mxu0 0.0
        %3498 = vmatprep.subr.mxu0 0.0
        %3499 = vmatpush1.msra.mxu0 0.0
        %3500 = vmatprep.subr.mxu0 0.0
        %3501 = vmatpush1.msra.mxu0 0.0
        %3502 = vmatprep.subr.mxu0 0.0
        %3503 = vmatpush1.msra.mxu0 0.0
        %3504 = vmatprep.subr.mxu0 0.0
        %3505 = vmatpush1.msra.mxu0 0.0
        %3506 = vmatprep.subr.mxu0 0.0
        %3507 = vmatpush1.msra.mxu0 0.0
        %3508 = vmatprep.subr.mxu0 0.0
        %3509 = vmatpush1.msra.mxu0 0.0
        %3510 = vmatprep.subr.mxu0 0.0
        %3511 = vmatpush1.msra.mxu0 0.0
        %3512 = vmatprep.subr.mxu0 0.0
        %3513 = vmatpush1.msra.mxu0 0.0
        %3514 = vmatprep.subr.mxu0 0.0
        %3515 = vmatpush1.msra.mxu0 0.0
        %3516 = vmatprep.subr.mxu0 0.0
        %3517 = vmatpush1.msra.mxu0 0.0
        %3518 = vmatprep.subr.mxu0 0.0
        %3519 = vmatpush1.msra.mxu0 0.0
        %3520 = vmatprep.subr.mxu0 0.0
        %3521 = vmatpush1.msra.mxu0 0.0
        %3522 = vmatprep.subr.mxu0 0.0
        %3523 = vmatpush1.msra.mxu0 0.0
        %3524 = vmatprep.subr.mxu0 0.0
        %3525 = vmatpush1.msra.mxu0 0.0
        %3526 = vmatprep.subr.mxu0 0.0
        %3527 = vmatpush1.msra.mxu0 0.0
        %3528 = vmatprep.subr.mxu0 0.0
        %3529 = vmatpush1.msra.mxu0 0.0
        %3530 = vmatprep.subr.mxu0 0.0
        %3531 = vmatpush1.msra.mxu0 0.0
        %3532 = vmatprep.subr.mxu0 0.0
        %3533 = vmatpush1.msra.mxu0 0.0
        %3534 = vmatprep.subr.mxu0 0.0
        %3535 = vmatpush1.msra.mxu0 0.0
        %3536 = vmatprep.mubr.f32.mxu0 0.0
        %3537 = vmatmul.mubr.f32.gmra.mrb[0].mxu0 %v3470
        %v3538 = vpop.f32.mrb[0].mxu0
        %v3539 = vadd.f32 0.0, %v3538
        %v3540 = vpop.f32.mrb[0].mxu0
        %3541 = vdwg.mxu0
        %v3543 = vsel %vm2270, %v3030, 0
        %3545 = vmatprep.subr.mxu0 0.0
        %3546 = vmatpush1.msra.mxu0 %v2267
        %3547 = vmatprep.subr.mxu0 0.0
        %3548 = vmatpush1.msra.mxu0 0.0
        %3549 = vmatprep.subr.mxu0 0.0
        %3550 = vmatpush1.msra.mxu0 0.0
        %3551 = vmatprep.subr.mxu0 0.0
        %3552 = vmatpush1.msra.mxu0 0.0
        %3553 = vmatprep.subr.mxu0 0.0
        %3554 = vmatpush1.msra.mxu0 0.0
        %3555 = vmatprep.subr.mxu0 0.0
        %3556 = vmatpush1.msra.mxu0 0.0
        %3557 = vmatprep.subr.mxu0 0.0
        %3558 = vmatpush1.msra.mxu0 0.0
        %3559 = vmatprep.subr.mxu0 0.0
        %3560 = vmatpush1.msra.mxu0 0.0
        %3561 = vmatprep.subr.mxu0 0.0
        %3562 = vmatpush1.msra.mxu0 0.0
        %3563 = vmatprep.subr.mxu0 0.0
        %3564 = vmatpush1.msra.mxu0 0.0
        %3565 = vmatprep.subr.mxu0 0.0
        %3566 = vmatpush1.msra.mxu0 0.0
        %3567 = vmatprep.subr.mxu0 0.0
        %3568 = vmatpush1.msra.mxu0 0.0
        %3569 = vmatprep.subr.mxu0 0.0
        %3570 = vmatpush1.msra.mxu0 0.0
        %3571 = vmatprep.subr.mxu0 0.0
        %3572 = vmatpush1.msra.mxu0 0.0
        %3573 = vmatprep.subr.mxu0 0.0
        %3574 = vmatpush1.msra.mxu0 0.0
        %3575 = vmatprep.subr.mxu0 0.0
        %3576 = vmatpush1.msra.mxu0 0.0
        %3577 = vmatprep.subr.mxu0 0.0
        %3578 = vmatpush1.msra.mxu0 0.0
        %3579 = vmatprep.subr.mxu0 0.0
        %3580 = vmatpush1.msra.mxu0 0.0
        %3581 = vmatprep.subr.mxu0 0.0
        %3582 = vmatpush1.msra.mxu0 0.0
        %3583 = vmatprep.subr.mxu0 0.0
        %3584 = vmatpush1.msra.mxu0 0.0
        %3585 = vmatprep.subr.mxu0 0.0
        %3586 = vmatpush1.msra.mxu0 0.0
        %3587 = vmatprep.subr.mxu0 0.0
        %3588 = vmatpush1.msra.mxu0 0.0
        %3589 = vmatprep.subr.mxu0 0.0
        %3590 = vmatpush1.msra.mxu0 0.0
        %3591 = vmatprep.subr.mxu0 0.0
        %3592 = vmatpush1.msra.mxu0 0.0
        %3593 = vmatprep.subr.mxu0 0.0
        %3594 = vmatpush1.msra.mxu0 0.0
        %3595 = vmatprep.subr.mxu0 0.0
        %3596 = vmatpush1.msra.mxu0 0.0
        %3597 = vmatprep.subr.mxu0 0.0
        %3598 = vmatpush1.msra.mxu0 0.0
        %3599 = vmatprep.subr.mxu0 0.0
        %3600 = vmatpush1.msra.mxu0 0.0
        %3601 = vmatprep.subr.mxu0 0.0
        %3602 = vmatpush1.msra.mxu0 0.0
        %3603 = vmatprep.subr.mxu0 0.0
        %3604 = vmatpush1.msra.mxu0 0.0
        %3605 = vmatprep.subr.mxu0 0.0
        %3606 = vmatpush1.msra.mxu0 0.0
        %3607 = vmatprep.subr.mxu0 0.0
        %3608 = vmatpush1.msra.mxu0 0.0
        %3609 = vmatprep.mubr.f32.mxu0 0.0
        %3610 = vmatmul.mubr.f32.gmra.mrb[0].mxu0 %v3543
        %v3611 = vpop.f32.mrb[0].mxu0
        %v3612 = vadd.f32 0.0, %v3611
        %v3613 = vpop.f32.mrb[0].mxu0
        %3614 = vdwg.mxu0
        %v3616 = vsel %vm2270, %v3101, 0
        %3618 = vmatprep.subr.mxu0 0.0
        %3619 = vmatpush1.msra.mxu0 %v506
        %3620 = vmatprep.subr.mxu0 0.0
        %3621 = vmatpush1.msra.mxu0 0.0
        %3622 = vmatprep.subr.mxu0 0.0
        %3623 = vmatpush1.msra.mxu0 0.0
        %3624 = vmatprep.subr.mxu0 0.0
        %3625 = vmatpush1.msra.mxu0 0.0
        %3626 = vmatprep.subr.mxu0 0.0
        %3627 = vmatpush1.msra.mxu0 0.0
        %3628 = vmatprep.subr.mxu0 0.0
        %3629 = vmatpush1.msra.mxu0 0.0
        %3630 = vmatprep.subr.mxu0 0.0
        %3631 = vmatpush1.msra.mxu0 0.0
        %3632 = vmatprep.subr.mxu0 0.0
        %3633 = vmatpush1.msra.mxu0 0.0
        %3634 = vmatprep.subr.mxu0 0.0
        %3635 = vmatpush1.msra.mxu0 0.0
        %3636 = vmatprep.subr.mxu0 0.0
        %3637 = vmatpush1.msra.mxu0 0.0
        %3638 = vmatprep.subr.mxu0 0.0
        %3639 = vmatpush1.msra.mxu0 0.0
        %3640 = vmatprep.subr.mxu0 0.0
        %3641 = vmatpush1.msra.mxu0 0.0
        %3642 = vmatprep.subr.mxu0 0.0
        %3643 = vmatpush1.msra.mxu0 0.0
        %3644 = vmatprep.subr.mxu0 0.0
        %3645 = vmatpush1.msra.mxu0 0.0
        %3646 = vmatprep.subr.mxu0 0.0
        %3647 = vmatpush1.msra.mxu0 0.0
        %3648 = vmatprep.subr.mxu0 0.0
        %3649 = vmatpush1.msra.mxu0 0.0
        %3650 = vmatprep.subr.mxu0 0.0
        %3651 = vmatpush1.msra.mxu0 0.0
        %3652 = vmatprep.subr.mxu0 0.0
        %3653 = vmatpush1.msra.mxu0 0.0
        %3654 = vmatprep.subr.mxu0 0.0
        %3655 = vmatpush1.msra.mxu0 0.0
        %3656 = vmatprep.subr.mxu0 0.0
        %3657 = vmatpush1.msra.mxu0 0.0
        %3658 = vmatprep.subr.mxu0 0.0
        %3659 = vmatpush1.msra.mxu0 0.0
        %3660 = vmatprep.subr.mxu0 0.0
        %3661 = vmatpush1.msra.mxu0 0.0
        %3662 = vmatprep.subr.mxu0 0.0
        %3663 = vmatpush1.msra.mxu0 0.0
        %3664 = vmatprep.subr.mxu0 0.0
        %3665 = vmatpush1.msra.mxu0 0.0
        %3666 = vmatprep.subr.mxu0 0.0
        %3667 = vmatpush1.msra.mxu0 0.0
        %3668 = vmatprep.subr.mxu0 0.0
        %3669 = vmatpush1.msra.mxu0 0.0
        %3670 = vmatprep.subr.mxu0 0.0
        %3671 = vmatpush1.msra.mxu0 0.0
        %3672 = vmatprep.subr.mxu0 0.0
        %3673 = vmatpush1.msra.mxu0 0.0
        %3674 = vmatprep.subr.mxu0 0.0
        %3675 = vmatpush1.msra.mxu0 0.0
        %3676 = vmatprep.subr.mxu0 0.0
        %3677 = vmatpush1.msra.mxu0 0.0
        %3678 = vmatprep.subr.mxu0 0.0
        %3679 = vmatpush1.msra.mxu0 0.0
        %3680 = vmatprep.subr.mxu0 0.0
        %3681 = vmatpush1.msra.mxu0 0.0
        %3682 = vmatprep.mubr.f32.mxu0 0.0
        %3683 = vmatmul.mubr.f32.gmra.mrb[0].mxu0 %v3616
        %v3684 = vpop.f32.mrb[0].mxu0
        %v3685 = vadd.f32 0.0, %v3684
        %v3686 = vpop.f32.mrb[0].mxu0
        %3687 = vdwg.mxu0
        %v3689 = vsel %vm2270, %v3174, 0
        %3691 = vmatprep.subr.mxu0 0.0
        %3692 = vmatpush1.msra.mxu0 %v507
        %3693 = vmatprep.subr.mxu0 0.0
        %3694 = vmatpush1.msra.mxu0 0.0
        %3695 = vmatprep.subr.mxu0 0.0
        %3696 = vmatpush1.msra.mxu0 0.0
        %3697 = vmatprep.subr.mxu0 0.0
        %3698 = vmatpush1.msra.mxu0 0.0
        %3699 = vmatprep.subr.mxu0 0.0
        %3700 = vmatpush1.msra.mxu0 0.0
        %3701 = vmatprep.subr.mxu0 0.0
        %3702 = vmatpush1.msra.mxu0 0.0
        %3703 = vmatprep.subr.mxu0 0.0
        %3704 = vmatpush1.msra.mxu0 0.0
        %3705 = vmatprep.subr.mxu0 0.0
        %3706 = vmatpush1.msra.mxu0 0.0
        %3707 = vmatprep.subr.mxu0 0.0
        %3708 = vmatpush1.msra.mxu0 0.0
        %3709 = vmatprep.subr.mxu0 0.0
        %3710 = vmatpush1.msra.mxu0 0.0
        %3711 = vmatprep.subr.mxu0 0.0
        %3712 = vmatpush1.msra.mxu0 0.0
        %3713 = vmatprep.subr.mxu0 0.0
        %3714 = vmatpush1.msra.mxu0 0.0
        %3715 = vmatprep.subr.mxu0 0.0
        %3716 = vmatpush1.msra.mxu0 0.0
        %3717 = vmatprep.subr.mxu0 0.0
        %3718 = vmatpush1.msra.mxu0 0.0
        %3719 = vmatprep.subr.mxu0 0.0
        %3720 = vmatpush1.msra.mxu0 0.0
        %3721 = vmatprep.subr.mxu0 0.0
        %3722 = vmatpush1.msra.mxu0 0.0
        %3723 = vmatprep.subr.mxu0 0.0
        %3724 = vmatpush1.msra.mxu0 0.0
        %3725 = vmatprep.subr.mxu0 0.0
        %3726 = vmatpush1.msra.mxu0 0.0
        %3727 = vmatprep.subr.mxu0 0.0
        %3728 = vmatpush1.msra.mxu0 0.0
        %3729 = vmatprep.subr.mxu0 0.0
        %3730 = vmatpush1.msra.mxu0 0.0
        %3731 = vmatprep.subr.mxu0 0.0
        %3732 = vmatpush1.msra.mxu0 0.0
        %3733 = vmatprep.subr.mxu0 0.0
        %3734 = vmatpush1.msra.mxu0 0.0
        %3735 = vmatprep.subr.mxu0 0.0
        %3736 = vmatpush1.msra.mxu0 0.0
        %3737 = vmatprep.subr.mxu0 0.0
        %3738 = vmatpush1.msra.mxu0 0.0
        %3739 = vmatprep.subr.mxu0 0.0
        %3740 = vmatpush1.msra.mxu0 0.0
        %3741 = vmatprep.subr.mxu0 0.0
        %3742 = vmatpush1.msra.mxu0 0.0
        %3743 = vmatprep.subr.mxu0 0.0
        %3744 = vmatpush1.msra.mxu0 0.0
        %3745 = vmatprep.subr.mxu0 0.0
        %3746 = vmatpush1.msra.mxu0 0.0
        %3747 = vmatprep.subr.mxu0 0.0
        %3748 = vmatpush1.msra.mxu0 0.0
        %3749 = vmatprep.subr.mxu0 0.0
        %3750 = vmatpush1.msra.mxu0 0.0
        %3751 = vmatprep.subr.mxu0 0.0
        %3752 = vmatpush1.msra.mxu0 0.0
        %3753 = vmatprep.subr.mxu0 0.0
        %3754 = vmatpush1.msra.mxu0 0.0
        %3755 = vmatprep.mubr.f32.mxu0 0.0
        %3756 = vmatmul.mubr.f32.gmra.mrb[0].mxu0 %v3689
        %v3757 = vpop.f32.mrb[0].mxu0
        %v3758 = vadd.f32 0.0, %v3757
        %v3759 = vpop.f32.mrb[0].mxu0
        %3760 = vdwg.mxu0
        %v3762 = vsel %vm2270, %v3247, 0
        %3764 = vmatprep.subr.mxu0 0.0
        %3765 = vmatpush1.msra.mxu0 %v508
        %3766 = vmatprep.subr.mxu0 0.0
        %3767 = vmatpush1.msra.mxu0 0.0
        %3768 = vmatprep.subr.mxu0 0.0
        %3769 = vmatpush1.msra.mxu0 0.0
        %3770 = vmatprep.subr.mxu0 0.0
        %3771 = vmatpush1.msra.mxu0 0.0
        %3772 = vmatprep.subr.mxu0 0.0
        %3773 = vmatpush1.msra.mxu0 0.0
        %3774 = vmatprep.subr.mxu0 0.0
        %3775 = vmatpush1.msra.mxu0 0.0
        %3776 = vmatprep.subr.mxu0 0.0
        %3777 = vmatpush1.msra.mxu0 0.0
        %3778 = vmatprep.subr.mxu0 0.0
        %3779 = vmatpush1.msra.mxu0 0.0
        %3780 = vmatprep.subr.mxu0 0.0
        %3781 = vmatpush1.msra.mxu0 0.0
        %3782 = vmatprep.subr.mxu0 0.0
        %3783 = vmatpush1.msra.mxu0 0.0
        %3784 = vmatprep.subr.mxu0 0.0
        %3785 = vmatpush1.msra.mxu0 0.0
        %3786 = vmatprep.subr.mxu0 0.0
        %3787 = vmatpush1.msra.mxu0 0.0
        %3788 = vmatprep.subr.mxu0 0.0
        %3789 = vmatpush1.msra.mxu0 0.0
        %3790 = vmatprep.subr.mxu0 0.0
        %3791 = vmatpush1.msra.mxu0 0.0
        %3792 = vmatprep.subr.mxu0 0.0
        %3793 = vmatpush1.msra.mxu0 0.0
        %3794 = vmatprep.subr.mxu0 0.0
        %3795 = vmatpush1.msra.mxu0 0.0
        %3796 = vmatprep.subr.mxu0 0.0
        %3797 = vmatpush1.msra.mxu0 0.0
        %3798 = vmatprep.subr.mxu0 0.0
        %3799 = vmatpush1.msra.mxu0 0.0
        %3800 = vmatprep.subr.mxu0 0.0
        %3801 = vmatpush1.msra.mxu0 0.0
        %3802 = vmatprep.subr.mxu0 0.0
        %3803 = vmatpush1.msra.mxu0 0.0
        %3804 = vmatprep.subr.mxu0 0.0
        %3805 = vmatpush1.msra.mxu0 0.0
        %3806 = vmatprep.subr.mxu0 0.0
        %3807 = vmatpush1.msra.mxu0 0.0
        %3808 = vmatprep.subr.mxu0 0.0
        %3809 = vmatpush1.msra.mxu0 0.0
        %3810 = vmatprep.subr.mxu0 0.0
        %3811 = vmatpush1.msra.mxu0 0.0
        %3812 = vmatprep.subr.mxu0 0.0
        %3813 = vmatpush1.msra.mxu0 0.0
        %3814 = vmatprep.subr.mxu0 0.0
        %3815 = vmatpush1.msra.mxu0 0.0
        %3816 = vmatprep.subr.mxu0 0.0
        %3817 = vmatpush1.msra.mxu0 0.0
        %3818 = vmatprep.subr.mxu0 0.0
        %3819 = vmatpush1.msra.mxu0 0.0
        %3820 = vmatprep.subr.mxu0 0.0
        %3821 = vmatpush1.msra.mxu0 0.0
        %3822 = vmatprep.subr.mxu0 0.0
        %3823 = vmatpush1.msra.mxu0 0.0
        %3824 = vmatprep.subr.mxu0 0.0
        %3825 = vmatpush1.msra.mxu0 0.0
        %3826 = vmatprep.subr.mxu0 0.0
        %3827 = vmatpush1.msra.mxu0 0.0
        %3828 = vmatprep.mubr.f32.mxu0 0.0
        %3829 = vmatmul.mubr.f32.gmra.mrb[0].mxu0 %v3762
        %v3830 = vpop.f32.mrb[0].mxu0
        %v3831 = vadd.f32 0.0, %v3830
        %v3832 = vpop.f32.mrb[0].mxu0
        %3833 = vdwg.mxu0
        %v3835 = vsel %vm2270, %v3320, 0
        %3837 = vmatprep.subr.mxu0 0.0
        %3838 = vmatpush1.msra.mxu0 %v509
        %3839 = vmatprep.subr.mxu0 0.0
        %3840 = vmatpush1.msra.mxu0 0.0
        %3841 = vmatprep.subr.mxu0 0.0
        %3842 = vmatpush1.msra.mxu0 0.0
        %3843 = vmatprep.subr.mxu0 0.0
        %3844 = vmatpush1.msra.mxu0 0.0
        %3845 = vmatprep.subr.mxu0 0.0
        %3846 = vmatpush1.msra.mxu0 0.0
        %3847 = vmatprep.subr.mxu0 0.0
        %3848 = vmatpush1.msra.mxu0 0.0
        %3849 = vmatprep.subr.mxu0 0.0
        %3850 = vmatpush1.msra.mxu0 0.0
        %3851 = vmatprep.subr.mxu0 0.0
        %3852 = vmatpush1.msra.mxu0 0.0
        %3853 = vmatprep.subr.mxu0 0.0
        %3854 = vmatpush1.msra.mxu0 0.0
        %3855 = vmatprep.subr.mxu0 0.0
        %3856 = vmatpush1.msra.mxu0 0.0
        %3857 = vmatprep.subr.mxu0 0.0
        %3858 = vmatpush1.msra.mxu0 0.0
        %3859 = vmatprep.subr.mxu0 0.0
        %3860 = vmatpush1.msra.mxu0 0.0
        %3861 = vmatprep.subr.mxu0 0.0
        %3862 = vmatpush1.msra.mxu0 0.0
        %3863 = vmatprep.subr.mxu0 0.0
        %3864 = vmatpush1.msra.mxu0 0.0
        %3865 = vmatprep.subr.mxu0 0.0
        %3866 = vmatpush1.msra.mxu0 0.0
        %3867 = vmatprep.subr.mxu0 0.0
        %3868 = vmatpush1.msra.mxu0 0.0
        %3869 = vmatprep.subr.mxu0 0.0
        %3870 = vmatpush1.msra.mxu0 0.0
        %3871 = vmatprep.subr.mxu0 0.0
        %3872 = vmatpush1.msra.mxu0 0.0
        %3873 = vmatprep.subr.mxu0 0.0
        %3874 = vmatpush1.msra.mxu0 0.0
        %3875 = vmatprep.subr.mxu0 0.0
        %3876 = vmatpush1.msra.mxu0 0.0
        %3877 = vmatprep.subr.mxu0 0.0
        %3878 = vmatpush1.msra.mxu0 0.0
        %3879 = vmatprep.subr.mxu0 0.0
        %3880 = vmatpush1.msra.mxu0 0.0
        %3881 = vmatprep.subr.mxu0 0.0
        %3882 = vmatpush1.msra.mxu0 0.0
        %3883 = vmatprep.subr.mxu0 0.0
        %3884 = vmatpush1.msra.mxu0 0.0
        %3885 = vmatprep.subr.mxu0 0.0
        %3886 = vmatpush1.msra.mxu0 0.0
        %3887 = vmatprep.subr.mxu0 0.0
        %3888 = vmatpush1.msra.mxu0 0.0
        %3889 = vmatprep.subr.mxu0 0.0
        %3890 = vmatpush1.msra.mxu0 0.0
        %3891 = vmatprep.subr.mxu0 0.0
        %3892 = vmatpush1.msra.mxu0 0.0
        %3893 = vmatprep.subr.mxu0 0.0
        %3894 = vmatpush1.msra.mxu0 0.0
        %3895 = vmatprep.subr.mxu0 0.0
        %3896 = vmatpush1.msra.mxu0 0.0
        %3897 = vmatprep.subr.mxu0 0.0
        %3898 = vmatpush1.msra.mxu0 0.0
        %3899 = vmatprep.subr.mxu0 0.0
        %3900 = vmatpush1.msra.mxu0 0.0
        %3901 = vmatprep.mubr.f32.mxu0 0.0
        %3902 = vmatmul.mubr.f32.gmra.mrb[0].mxu0 %v3835
        %v3903 = vpop.f32.mrb[0].mxu0
        %v3904 = vadd.f32 0.0, %v3903
        %v3905 = vpop.f32.mrb[0].mxu0
        %3906 = vdwg.mxu0
        %v3908 = vsel %vm2270, %v3393, 0
        %3910 = vmatprep.subr.mxu0 0.0
        %3911 = vmatpush1.msra.mxu0 %v506
        %3912 = vmatprep.subr.mxu0 0.0
        %3913 = vmatpush1.msra.mxu0 0.0
        %3914 = vmatprep.subr.mxu0 0.0
        %3915 = vmatpush1.msra.mxu0 0.0
        %3916 = vmatprep.subr.mxu0 0.0
        %3917 = vmatpush1.msra.mxu0 0.0
        %3918 = vmatprep.subr.mxu0 0.0
        %3919 = vmatpush1.msra.mxu0 0.0
        %3920 = vmatprep.subr.mxu0 0.0
        %3921 = vmatpush1.msra.mxu0 0.0
        %3922 = vmatprep.subr.mxu0 0.0
        %3923 = vmatpush1.msra.mxu0 0.0
        %3924 = vmatprep.subr.mxu0 0.0
        %3925 = vmatpush1.msra.mxu0 0.0
        %3926 = vmatprep.subr.mxu0 0.0
        %3927 = vmatpush1.msra.mxu0 0.0
        %3928 = vmatprep.subr.mxu0 0.0
        %3929 = vmatpush1.msra.mxu0 0.0
        %3930 = vmatprep.subr.mxu0 0.0
        %3931 = vmatpush1.msra.mxu0 0.0
        %3932 = vmatprep.subr.mxu0 0.0
        %3933 = vmatpush1.msra.mxu0 0.0
        %3934 = vmatprep.subr.mxu0 0.0
        %3935 = vmatpush1.msra.mxu0 0.0
        %3936 = vmatprep.subr.mxu0 0.0
        %3937 = vmatpush1.msra.mxu0 0.0
        %3938 = vmatprep.subr.mxu0 0.0
        %3939 = vmatpush1.msra.mxu0 0.0
        %3940 = vmatprep.subr.mxu0 0.0
        %3941 = vmatpush1.msra.mxu0 0.0
        %3942 = vmatprep.subr.mxu0 0.0
        %3943 = vmatpush1.msra.mxu0 0.0
        %3944 = vmatprep.subr.mxu0 0.0
        %3945 = vmatpush1.msra.mxu0 0.0
        %3946 = vmatprep.subr.mxu0 0.0
        %3947 = vmatpush1.msra.mxu0 0.0
        %3948 = vmatprep.subr.mxu0 0.0
        %3949 = vmatpush1.msra.mxu0 0.0
        %3950 = vmatprep.subr.mxu0 0.0
        %3951 = vmatpush1.msra.mxu0 0.0
        %3952 = vmatprep.subr.mxu0 0.0
        %3953 = vmatpush1.msra.mxu0 0.0
        %3954 = vmatprep.subr.mxu0 0.0
        %3955 = vmatpush1.msra.mxu0 0.0
        %3956 = vmatprep.subr.mxu0 0.0
        %3957 = vmatpush1.msra.mxu0 0.0
        %3958 = vmatprep.subr.mxu0 0.0
        %3959 = vmatpush1.msra.mxu0 0.0
        %3960 = vmatprep.subr.mxu0 0.0
        %3961 = vmatpush1.msra.mxu0 0.0
        %3962 = vmatprep.subr.mxu0 0.0
        %3963 = vmatpush1.msra.mxu0 0.0
        %3964 = vmatprep.subr.mxu0 0.0
        %3965 = vmatpush1.msra.mxu0 0.0
        %3966 = vmatprep.subr.mxu0 0.0
        %3967 = vmatpush1.msra.mxu0 0.0
        %3968 = vmatprep.subr.mxu0 0.0
        %3969 = vmatpush1.msra.mxu0 0.0
        %3970 = vmatprep.subr.mxu0 0.0
        %3971 = vmatpush1.msra.mxu0 0.0
        %3972 = vmatprep.subr.mxu0 0.0
        %3973 = vmatpush1.msra.mxu0 0.0
        %3974 = vmatprep.mubr.f32.mxu0 0.0
        %3975 = vmatmul.mubr.f32.gmra.mrb[0].mxu0 %v3908
        %v3976 = vpop.f32.mrb[0].mxu0
        %v3977 = vadd.f32 0.0, %v3976
        %v3978 = vpop.f32.mrb[0].mxu0
        %3979 = vdwg.mxu0
        %v3981 = vsel %vm2270, %v3466, 0
        %3983 = vmatprep.subr.mxu0 0.0
        %3984 = vmatpush1.msra.mxu0 %v507
        %3985 = vmatprep.subr.mxu0 0.0
        %3986 = vmatpush1.msra.mxu0 0.0
        %3987 = vmatprep.subr.mxu0 0.0
        %3988 = vmatpush1.msra.mxu0 0.0
        %3989 = vmatprep.subr.mxu0 0.0
        %3990 = vmatpush1.msra.mxu0 0.0
        %3991 = vmatprep.subr.mxu0 0.0
        %3992 = vmatpush1.msra.mxu0 0.0
        %3993 = vmatprep.subr.mxu0 0.0
        %3994 = vmatpush1.msra.mxu0 0.0
        %3995 = vmatprep.subr.mxu0 0.0
        %3996 = vmatpush1.msra.mxu0 0.0
        %3997 = vmatprep.subr.mxu0 0.0
        %3998 = vmatpush1.msra.mxu0 0.0
        %3999 = vmatprep.subr.mxu0 0.0
        %4000 = vmatpush1.msra.mxu0 0.0
        %4001 = vmatprep.subr.mxu0 0.0
        %4002 = vmatpush1.msra.mxu0 0.0
        %4003 = vmatprep.subr.mxu0 0.0
        %4004 = vmatpush1.msra.mxu0 0.0
        %4005 = vmatprep.subr.mxu0 0.0
        %4006 = vmatpush1.msra.mxu0 0.0
        %4007 = vmatprep.subr.mxu0 0.0
        %4008 = vmatpush1.msra.mxu0 0.0
        %4009 = vmatprep.subr.mxu0 0.0
        %4010 = vmatpush1.msra.mxu0 0.0
        %4011 = vmatprep.subr.mxu0 0.0
        %4012 = vmatpush1.msra.mxu0 0.0
        %4013 = vmatprep.subr.mxu0 0.0
        %4014 = vmatpush1.msra.mxu0 0.0
        %4015 = vmatprep.subr.mxu0 0.0
        %4016 = vmatpush1.msra.mxu0 0.0
        %4017 = vmatprep.subr.mxu0 0.0
        %4018 = vmatpush1.msra.mxu0 0.0
        %4019 = vmatprep.subr.mxu0 0.0
        %4020 = vmatpush1.msra.mxu0 0.0
        %4021 = vmatprep.subr.mxu0 0.0
        %4022 = vmatpush1.msra.mxu0 0.0
        %4023 = vmatprep.subr.mxu0 0.0
        %4024 = vmatpush1.msra.mxu0 0.0
        %4025 = vmatprep.subr.mxu0 0.0
        %4026 = vmatpush1.msra.mxu0 0.0
        %4027 = vmatprep.subr.mxu0 0.0
        %4028 = vmatpush1.msra.mxu0 0.0
        %4029 = vmatprep.subr.mxu0 0.0
        %4030 = vmatpush1.msra.mxu0 0.0
        %4031 = vmatprep.subr.mxu0 0.0
        %4032 = vmatpush1.msra.mxu0 0.0
        %4033 = vmatprep.subr.mxu0 0.0
        %4034 = vmatpush1.msra.mxu0 0.0
        %4035 = vmatprep.subr.mxu0 0.0
        %4036 = vmatpush1.msra.mxu0 0.0
        %4037 = vmatprep.subr.mxu0 0.0
        %4038 = vmatpush1.msra.mxu0 0.0
        %4039 = vmatprep.subr.mxu0 0.0
        %4040 = vmatpush1.msra.mxu0 0.0
        %4041 = vmatprep.subr.mxu0 0.0
        %4042 = vmatpush1.msra.mxu0 0.0
        %4043 = vmatprep.subr.mxu0 0.0
        %4044 = vmatpush1.msra.mxu0 0.0
        %4045 = vmatprep.subr.mxu0 0.0
        %4046 = vmatpush1.msra.mxu0 0.0
        %4047 = vmatprep.mubr.f32.mxu0 0.0
        %4048 = vmatmul.mubr.f32.gmra.mrb[0].mxu0 %v3981
        %v4049 = vpop.f32.mrb[0].mxu0
        %v4050 = vadd.f32 0.0, %v4049
        %v4051 = vpop.f32.mrb[0].mxu0
        %4052 = vdwg.mxu0
        %v4054 = vsel %vm2270, %v3539, 0
        %4056 = vmatprep.subr.mxu0 0.0
        %4057 = vmatpush1.msra.mxu0 %v508
        %4058 = vmatprep.subr.mxu0 0.0
        %4059 = vmatpush1.msra.mxu0 0.0
        %4060 = vmatprep.subr.mxu0 0.0
        %4061 = vmatpush1.msra.mxu0 0.0
        %4062 = vmatprep.subr.mxu0 0.0
        %4063 = vmatpush1.msra.mxu0 0.0
        %4064 = vmatprep.subr.mxu0 0.0
        %4065 = vmatpush1.msra.mxu0 0.0
        %4066 = vmatprep.subr.mxu0 0.0
        %4067 = vmatpush1.msra.mxu0 0.0
        %4068 = vmatprep.subr.mxu0 0.0
        %4069 = vmatpush1.msra.mxu0 0.0
        %4070 = vmatprep.subr.mxu0 0.0
        %4071 = vmatpush1.msra.mxu0 0.0
        %4072 = vmatprep.subr.mxu0 0.0
        %4073 = vmatpush1.msra.mxu0 0.0
        %4074 = vmatprep.subr.mxu0 0.0
        %4075 = vmatpush1.msra.mxu0 0.0
        %4076 = vmatprep.subr.mxu0 0.0
        %4077 = vmatpush1.msra.mxu0 0.0
        %4078 = vmatprep.subr.mxu0 0.0
        %4079 = vmatpush1.msra.mxu0 0.0
        %4080 = vmatprep.subr.mxu0 0.0
        %4081 = vmatpush1.msra.mxu0 0.0
        %4082 = vmatprep.subr.mxu0 0.0
        %4083 = vmatpush1.msra.mxu0 0.0
        %4084 = vmatprep.subr.mxu0 0.0
        %4085 = vmatpush1.msra.mxu0 0.0
        %4086 = vmatprep.subr.mxu0 0.0
        %4087 = vmatpush1.msra.mxu0 0.0
        %4088 = vmatprep.subr.mxu0 0.0
        %4089 = vmatpush1.msra.mxu0 0.0
        %4090 = vmatprep.subr.mxu0 0.0
        %4091 = vmatpush1.msra.mxu0 0.0
        %4092 = vmatprep.subr.mxu0 0.0
        %4093 = vmatpush1.msra.mxu0 0.0
        %4094 = vmatprep.subr.mxu0 0.0
        %4095 = vmatpush1.msra.mxu0 0.0
        %4096 = vmatprep.subr.mxu0 0.0
        %4097 = vmatpush1.msra.mxu0 0.0
        %4098 = vmatprep.subr.mxu0 0.0
        %4099 = vmatpush1.msra.mxu0 0.0
        %4100 = vmatprep.subr.mxu0 0.0
        %4101 = vmatpush1.msra.mxu0 0.0
        %4102 = vmatprep.subr.mxu0 0.0
        %4103 = vmatpush1.msra.mxu0 0.0
        %4104 = vmatprep.subr.mxu0 0.0
        %4105 = vmatpush1.msra.mxu0 0.0
        %4106 = vmatprep.subr.mxu0 0.0
        %4107 = vmatpush1.msra.mxu0 0.0
        %4108 = vmatprep.subr.mxu0 0.0
        %4109 = vmatpush1.msra.mxu0 0.0
        %4110 = vmatprep.subr.mxu0 0.0
        %4111 = vmatpush1.msra.mxu0 0.0
        %4112 = vmatprep.subr.mxu0 0.0
        %4113 = vmatpush1.msra.mxu0 0.0
        %4114 = vmatprep.subr.mxu0 0.0
        %4115 = vmatpush1.msra.mxu0 0.0
        %4116 = vmatprep.subr.mxu0 0.0
        %4117 = vmatpush1.msra.mxu0 0.0
        %4118 = vmatprep.subr.mxu0 0.0
        %4119 = vmatpush1.msra.mxu0 0.0
        %4120 = vmatprep.mubr.f32.mxu0 0.0
        %4121 = vmatmul.mubr.f32.gmra.mrb[0].mxu0 %v4054
        %v4122 = vpop.f32.mrb[0].mxu0
        %v4123 = vadd.f32 0.0, %v4122
        %v4124 = vpop.f32.mrb[0].mxu0
        %4125 = vdwg.mxu0
        %v4127 = vsel %vm2270, %v3612, 0
        %4129 = vmatprep.subr.mxu0 0.0
        %4130 = vmatpush1.msra.mxu0 %v509
        %4131 = vmatprep.subr.mxu0 0.0
        %4132 = vmatpush1.msra.mxu0 0.0
        %4133 = vmatprep.subr.mxu0 0.0
        %4134 = vmatpush1.msra.mxu0 0.0
        %4135 = vmatprep.subr.mxu0 0.0
        %4136 = vmatpush1.msra.mxu0 0.0
        %4137 = vmatprep.subr.mxu0 0.0
        %4138 = vmatpush1.msra.mxu0 0.0
        %4139 = vmatprep.subr.mxu0 0.0
        %4140 = vmatpush1.msra.mxu0 0.0
        %4141 = vmatprep.subr.mxu0 0.0
        %4142 = vmatpush1.msra.mxu0 0.0
        %4143 = vmatprep.subr.mxu0 0.0
        %4144 = vmatpush1.msra.mxu0 0.0
        %4145 = vmatprep.subr.mxu0 0.0
        %4146 = vmatpush1.msra.mxu0 0.0
        %4147 = vmatprep.subr.mxu0 0.0
        %4148 = vmatpush1.msra.mxu0 0.0
        %4149 = vmatprep.subr.mxu0 0.0
        %4150 = vmatpush1.msra.mxu0 0.0
        %4151 = vmatprep.subr.mxu0 0.0
        %4152 = vmatpush1.msra.mxu0 0.0
        %4153 = vmatprep.subr.mxu0 0.0
        %4154 = vmatpush1.msra.mxu0 0.0
        %4155 = vmatprep.subr.mxu0 0.0
        %4156 = vmatpush1.msra.mxu0 0.0
        %4157 = vmatprep.subr.mxu0 0.0
        %4158 = vmatpush1.msra.mxu0 0.0
        %4159 = vmatprep.subr.mxu0 0.0
        %4160 = vmatpush1.msra.mxu0 0.0
        %4161 = vmatprep.subr.mxu0 0.0
        %4162 = vmatpush1.msra.mxu0 0.0
        %4163 = vmatprep.subr.mxu0 0.0
        %4164 = vmatpush1.msra.mxu0 0.0
        %4165 = vmatprep.subr.mxu0 0.0
        %4166 = vmatpush1.msra.mxu0 0.0
        %4167 = vmatprep.subr.mxu0 0.0
        %4168 = vmatpush1.msra.mxu0 0.0
        %4169 = vmatprep.subr.mxu0 0.0
        %4170 = vmatpush1.msra.mxu0 0.0
        %4171 = vmatprep.subr.mxu0 0.0
        %4172 = vmatpush1.msra.mxu0 0.0
        %4173 = vmatprep.subr.mxu0 0.0
        %4174 = vmatpush1.msra.mxu0 0.0
        %4175 = vmatprep.subr.mxu0 0.0
        %4176 = vmatpush1.msra.mxu0 0.0
        %4177 = vmatprep.subr.mxu0 0.0
        %4178 = vmatpush1.msra.mxu0 0.0
        %4179 = vmatprep.subr.mxu0 0.0
        %4180 = vmatpush1.msra.mxu0 0.0
        %4181 = vmatprep.subr.mxu0 0.0
        %4182 = vmatpush1.msra.mxu0 0.0
        %4183 = vmatprep.subr.mxu0 0.0
        %4184 = vmatpush1.msra.mxu0 0.0
        %4185 = vmatprep.subr.mxu0 0.0
        %4186 = vmatpush1.msra.mxu0 0.0
        %4187 = vmatprep.subr.mxu0 0.0
        %4188 = vmatpush1.msra.mxu0 0.0
        %4189 = vmatprep.subr.mxu0 0.0
        %4190 = vmatpush1.msra.mxu0 0.0
        %4191 = vmatprep.subr.mxu0 0.0
        %4192 = vmatpush1.msra.mxu0 0.0
        %4193 = vmatprep.mubr.f32.mxu0 0.0
        %4194 = vmatmul.mubr.f32.gmra.mrb[0].mxu0 %v4127
        %v4195 = vpop.f32.mrb[0].mxu0
        %v4196 = vadd.f32 0.0, %v4195
        %v4197 = vpop.f32.mrb[0].mxu0
        %4198 = vdwg.mxu0
        %v4199 = vsel %vm535, %v3685, 0.0
        %v4200 = vsel %vm535, %v3758, 0.0
        %v4201 = vadd.f32 %v4199, %v4200
        %v4202 = vsel %vm535, %v3831, 0.0
        %v4203 = vadd.f32 %v4201, %v4202
        %v4204 = vsel %vm535, %v3904, 0.0
        %v4205 = vadd.f32 %v4203, %v4204
        %v4206 = vsel %vm535, %v3977, 0.0
        %v4207 = vsel %vm535, %v4050, 0.0
        %v4208 = vadd.f32 %v4206, %v4207
        %v4209 = vsel %vm535, %v4123, 0.0
        %v4210 = vadd.f32 %v4208, %v4209
        %v4211 = vsel %vm535, %v4196, 0.0
        %v4212 = vadd.f32 %v4210, %v4211
        %v4213 = vlaneseq
        %v4214 = vshrl.u32 %v4213, 7
        %v4215 = vsub.s32 0, %v4214
        %v4216 = vrot.slane %v510, %v4215
        %v4217 = vadd.f32 %v4205, %v4216
        %v4218 = vadd.f32 %v4212, %v4216
        %v4219 = vadd.f32 %v4217, %v436
        %v4220 = vadd.f32 %v4218, %v437
        %v4221 = vsel %vm535, %v4219, 0.0
        %4222 = vadd.xlane.f32.xlu0 %v4221
        %v4223 = vpop.xlane.xlu0 %4222
        %v4224 = vsel %vm535, %v4220, 0.0
        %4225 = vadd.xlane.f32.xlu0 %v4224
        %v4226 = vpop.xlane.xlu0 %4225
        %v4227 = vrcp.pop 32.0
        %v4228 = vmul.f32 %v4223, %v4227
        %v4229 = vmul.f32 %v4226, %v4227
        %v4230 = vsub.f32 %v4219, %v4228
        %v4231 = vsub.f32 %v4220, %v4229
        %v4232 = vmul.f32 %v4230, %v4230
        %v4233 = vmul.f32 %v4231, %v4231
        %v4234 = vsel %vm535, %v4232, 0.0
        %4235 = vadd.xlane.f32.xlu0 %v4234
        %v4236 = vpop.xlane.xlu0 %4235
        %v4237 = vsel %vm535, %v4233, 0.0
        %4238 = vadd.xlane.f32.xlu0 %v4237
        %v4239 = vpop.xlane.xlu0 %4238
        %v4240 = vmul.f32 %v4236, %v4227
        %v4241 = vmul.f32 %v4239, %v4227
        %v4242 = vadd.f32 %v4240, 1e-12
        %v4243 = vadd.f32 %v4241, 1e-12
        %v4244 = vrsqrt.pop %v4242
        %v4245 = vrsqrt.pop %v4243
        %v4246 = vmul.f32 %v4230, %v4244
        %v4247 = vmul.f32 %v4231, %v4245
        %v4248 = vlaneseq
        %v4249 = vshrl.u32 %v4248, 7
        %v4250 = vsub.s32 1, %v4249
        %v4251 = vrot.slane %v510, %v4250
        %v4252 = vmul.f32 %v4251, %v4246
        %v4253 = vmul.f32 %v4251, %v4247
        %v4254 = vlaneseq
        %v4255 = vshrl.u32 %v4254, 7
        %v4256 = vsub.s32 2, %v4255
        %v4257 = vrot.slane %v510, %v4256
        %v4258 = vadd.f32 %v4252, %v4257
        %v4259 = vadd.f32 %v4253, %v4257
        %v4260 = vld [vmem:[%s418] sm:$0xff]
        %v4261 = vld [vmem:[%s418 + $0x8] sm:$0xff]
        %v4262 = vld [vmem:[%s418 + $0x10] sm:$0xff]
        %v4263 = vld [vmem:[%s418 + $0x18] sm:$0xff]
        %v4264 = vld [vmem:[%s421] sm:$0x1]
        %v4266 = vlaneseq
        %v4267 = vshrl.u32 %v4266, 7
        %v4268 = vsub.s32 0, %v4267
        %v4269 = vrot.slane %v4264, %v4268
        %v4272 = vsel %vm535, %v4258, 0
        %v4275 = vsel %vm535, %v4259, 0
        %4277 = vmatprep.subr.mxu0 0.0
        %4278 = vmatpush1.msra.mxu0 %v4260
        %4279 = vmatprep.subr.mxu0 0.0
        %4280 = vmatpush1.msra.mxu0 %v4261
        %4281 = vmatprep.subr.mxu0 0.0
        %4282 = vmatpush1.msra.mxu0 %v4262
        %4283 = vmatprep.subr.mxu0 0.0
        %4284 = vmatpush1.msra.mxu0 %v4263
        %4285 = vmatprep.subr.mxu0 0.0
        %4286 = vmatpush1.msra.mxu0 0.0
        %4287 = vmatprep.subr.mxu0 0.0
        %4288 = vmatpush1.msra.mxu0 0.0
        %4289 = vmatprep.subr.mxu0 0.0
        %4290 = vmatpush1.msra.mxu0 0.0
        %4291 = vmatprep.subr.mxu0 0.0
        %4292 = vmatpush1.msra.mxu0 0.0
        %4293 = vmatprep.subr.mxu0 0.0
        %4294 = vmatpush1.msra.mxu0 0.0
        %4295 = vmatprep.subr.mxu0 0.0
        %4296 = vmatpush1.msra.mxu0 0.0
        %4297 = vmatprep.subr.mxu0 0.0
        %4298 = vmatpush1.msra.mxu0 0.0
        %4299 = vmatprep.subr.mxu0 0.0
        %4300 = vmatpush1.msra.mxu0 0.0
        %4301 = vmatprep.subr.mxu0 0.0
        %4302 = vmatpush1.msra.mxu0 0.0
        %4303 = vmatprep.subr.mxu0 0.0
        %4304 = vmatpush1.msra.mxu0 0.0
        %4305 = vmatprep.subr.mxu0 0.0
        %4306 = vmatpush1.msra.mxu0 0.0
        %4307 = vmatprep.subr.mxu0 0.0
        %4308 = vmatpush1.msra.mxu0 0.0
        %4309 = vmatprep.subr.mxu0 0.0
        %4310 = vmatpush1.msra.mxu0 0.0
        %4311 = vmatprep.subr.mxu0 0.0
        %4312 = vmatpush1.msra.mxu0 0.0
        %4313 = vmatprep.subr.mxu0 0.0
        %4314 = vmatpush1.msra.mxu0 0.0
        %4315 = vmatprep.subr.mxu0 0.0
        %4316 = vmatpush1.msra.mxu0 0.0
        %4317 = vmatprep.subr.mxu0 0.0
        %4318 = vmatpush1.msra.mxu0 0.0
        %4319 = vmatprep.subr.mxu0 0.0
        %4320 = vmatpush1.msra.mxu0 0.0
        %4321 = vmatprep.subr.mxu0 0.0
        %4322 = vmatpush1.msra.mxu0 0.0
        %4323 = vmatprep.subr.mxu0 0.0
        %4324 = vmatpush1.msra.mxu0 0.0
        %4325 = vmatprep.subr.mxu0 0.0
        %4326 = vmatpush1.msra.mxu0 0.0
        %4327 = vmatprep.subr.mxu0 0.0
        %4328 = vmatpush1.msra.mxu0 0.0
        %4329 = vmatprep.subr.mxu0 0.0
        %4330 = vmatpush1.msra.mxu0 0.0
        %4331 = vmatprep.subr.mxu0 0.0
        %4332 = vmatpush1.msra.mxu0 0.0
        %4333 = vmatprep.subr.mxu0 0.0
        %4334 = vmatpush1.msra.mxu0 0.0
        %4335 = vmatprep.subr.mxu0 0.0
        %4336 = vmatpush1.msra.mxu0 0.0
        %4337 = vmatprep.subr.mxu0 0.0
        %4338 = vmatpush1.msra.mxu0 0.0
        %4339 = vmatprep.subr.mxu0 0.0
        %4340 = vmatpush1.msra.mxu0 0.0
        %4341 = vmatprep.mubr.f32.mxu0 0.0
        %4342 = vmatmul.mubr.f32.gmra.mrb[0].mxu0 %v4272
        %v4343 = vpop.f32.mrb[0].mxu0
        %v4344 = vadd.f32 %v4269, %v4343
        %v4345 = vpop.f32.mrb[0].mxu0
        %4346 = vmatprep.mubr.f32.mxu0 0.0
        %4347 = vmatmul.mubr.f32.gmra.mrb[0].mxu0 %v4275
        %v4348 = vpop.f32.mrb[0].mxu0
        %v4349 = vadd.f32 %v4269, %v4348
        %v4350 = vpop.f32.mrb[0].mxu0
        %4351 = vdwg.mxu0
        %v4352 = vmax.f32 %v4344, 0.0
        %v4353 = vmax.f32 %v4349, 0.0
        %v4354 = vld [vmem:[%s426] sm:$0xff]
        %v4355 = vld [vmem:[%s426 + $0x8] sm:$0xff]
        %v4356 = vld [vmem:[%s426 + $0x10] sm:$0xff]
        %v4357 = vld [vmem:[%s426 + $0x18] sm:$0xff]
        %v4358 = vld [vmem:[%s426 + $0x20] sm:$0xff]
        %v4359 = vld [vmem:[%s426 + $0x28] sm:$0xff]
        %v4360 = vld [vmem:[%s426 + $0x30] sm:$0xff]
        %v4361 = vld [vmem:[%s426 + $0x38] sm:$0xff]
        %v4362 = vlaneseq
        %v4363 = vshrl.u32 %v4362, 7
        %v4364 = vsub.s32 3, %v4363
        %v4365 = vrot.slane %v510, %v4364
        %vm4366 = vcmask 523264
        %v4368 = vsel %vm4366, %v4352, 0
        %v4371 = vsel %vm4366, %v4353, 0
        %4373 = vmatprep.subr.mxu0 0.0
        %4374 = vmatpush1.msra.mxu0 %v4354
        %4375 = vmatprep.subr.mxu0 0.0
        %4376 = vmatpush1.msra.mxu0 %v4355
        %4377 = vmatprep.subr.mxu0 0.0
        %4378 = vmatpush1.msra.mxu0 %v4356
        %4379 = vmatprep.subr.mxu0 0.0
        %4380 = vmatpush1.msra.mxu0 %v4357
        %4381 = vmatprep.subr.mxu0 0.0
        %4382 = vmatpush1.msra.mxu0 %v4358
        %4383 = vmatprep.subr.mxu0 0.0
        %4384 = vmatpush1.msra.mxu0 %v4359
        %4385 = vmatprep.subr.mxu0 0.0
        %4386 = vmatpush1.msra.mxu0 %v4360
        %4387 = vmatprep.subr.mxu0 0.0
        %4388 = vmatpush1.msra.mxu0 %v4361
        %4389 = vmatprep.subr.mxu0 0.0
        %4390 = vmatpush1.msra.mxu0 0.0
        %4391 = vmatprep.subr.mxu0 0.0
        %4392 = vmatpush1.msra.mxu0 0.0
        %4393 = vmatprep.subr.mxu0 0.0
        %4394 = vmatpush1.msra.mxu0 0.0
        %4395 = vmatprep.subr.mxu0 0.0
        %4396 = vmatpush1.msra.mxu0 0.0
        %4397 = vmatprep.subr.mxu0 0.0
        %4398 = vmatpush1.msra.mxu0 0.0
        %4399 = vmatprep.subr.mxu0 0.0
        %4400 = vmatpush1.msra.mxu0 0.0
        %4401 = vmatprep.subr.mxu0 0.0
        %4402 = vmatpush1.msra.mxu0 0.0
        %4403 = vmatprep.subr.mxu0 0.0
        %4404 = vmatpush1.msra.mxu0 0.0
        %4405 = vmatprep.subr.mxu0 0.0
        %4406 = vmatpush1.msra.mxu0 0.0
        %4407 = vmatprep.subr.mxu0 0.0
        %4408 = vmatpush1.msra.mxu0 0.0
        %4409 = vmatprep.subr.mxu0 0.0
        %4410 = vmatpush1.msra.mxu0 0.0
        %4411 = vmatprep.subr.mxu0 0.0
        %4412 = vmatpush1.msra.mxu0 0.0
        %4413 = vmatprep.subr.mxu0 0.0
        %4414 = vmatpush1.msra.mxu0 0.0
        %4415 = vmatprep.subr.mxu0 0.0
        %4416 = vmatpush1.msra.mxu0 0.0
        %4417 = vmatprep.subr.mxu0 0.0
        %4418 = vmatpush1.msra.mxu0 0.0
        %4419 = vmatprep.subr.mxu0 0.0
        %4420 = vmatpush1.msra.mxu0 0.0
        %4421 = vmatprep.subr.mxu0 0.0
        %4422 = vmatpush1.msra.mxu0 0.0
        %4423 = vmatprep.subr.mxu0 0.0
        %4424 = vmatpush1.msra.mxu0 0.0
        %4425 = vmatprep.subr.mxu0 0.0
        %4426 = vmatpush1.msra.mxu0 0.0
        %4427 = vmatprep.subr.mxu0 0.0
        %4428 = vmatpush1.msra.mxu0 0.0
        %4429 = vmatprep.subr.mxu0 0.0
        %4430 = vmatpush1.msra.mxu0 0.0
        %4431 = vmatprep.subr.mxu0 0.0
        %4432 = vmatpush1.msra.mxu0 0.0
        %4433 = vmatprep.subr.mxu0 0.0
        %4434 = vmatpush1.msra.mxu0 0.0
        %4435 = vmatprep.subr.mxu0 0.0
        %4436 = vmatpush1.msra.mxu0 0.0
        %4437 = vmatprep.mubr.f32.mxu0 0.0
        %4438 = vmatmul.mubr.f32.gmra.mrb[0].mxu0 %v4368
        %v4439 = vpop.f32.mrb[0].mxu0
        %v4440 = vadd.f32 %v4365, %v4439
        %v4441 = vpop.f32.mrb[0].mxu0
        %4442 = vmatprep.mubr.f32.mxu0 0.0
        %4443 = vmatmul.mubr.f32.gmra.mrb[0].mxu0 %v4371
        %v4444 = vpop.f32.mrb[0].mxu0
        %v4445 = vadd.f32 %v4365, %v4444
        %v4446 = vpop.f32.mrb[0].mxu0
        %4447 = vdwg.mxu0
        %v4448 = vadd.f32 %v4440, %v4258
        %v4449 = vadd.f32 %v4445, %v4259
        %v4450 = vsel %vm535, %v4448, 0.0
        %4451 = vadd.xlane.f32.xlu0 %v4450
        %v4452 = vpop.xlane.xlu0 %4451
        %v4453 = vsel %vm535, %v4449, 0.0
        %4454 = vadd.xlane.f32.xlu0 %v4453
        %v4455 = vpop.xlane.xlu0 %4454
        %v4456 = vmul.f32 %v4452, %v4227
        %v4457 = vmul.f32 %v4455, %v4227
        %v4458 = vsub.f32 %v4448, %v4456
        %v4459 = vsub.f32 %v4449, %v4457
        %v4460 = vmul.f32 %v4458, %v4458
        %v4461 = vmul.f32 %v4459, %v4459
        %v4462 = vsel %vm535, %v4460, 0.0
        %4463 = vadd.xlane.f32.xlu0 %v4462
        %v4464 = vpop.xlane.xlu0 %4463
        %v4465 = vsel %vm535, %v4461, 0.0
        %4466 = vadd.xlane.f32.xlu0 %v4465
        %v4467 = vpop.xlane.xlu0 %4466
        %v4468 = vmul.f32 %v4464, %v4227
        %v4469 = vmul.f32 %v4467, %v4227
        %v4470 = vadd.f32 %v4468, 1e-12
        %v4471 = vadd.f32 %v4469, 1e-12
        %v4472 = vrsqrt.pop %v4470
        %v4473 = vrsqrt.pop %v4471
        %v4474 = vmul.f32 %v4458, %v4472
        %v4475 = vmul.f32 %v4459, %v4473
        %v4476 = vlaneseq
        %v4477 = vshrl.u32 %v4476, 7
        %v4478 = vsub.s32 4, %v4477
        %v4479 = vrot.slane %v510, %v4478
        %v4480 = vmul.f32 %v4479, %v4474
        %v4481 = vmul.f32 %v4479, %v4475
        %v4482 = vlaneseq
        %v4483 = vshrl.u32 %v4482, 7
        %v4484 = vsub.s32 5, %v4483
        %v4485 = vrot.slane %v510, %v4484
        %v4486 = vadd.f32 %v4480, %v4485
        %v4487 = vadd.f32 %v4481, %v4485
        %4488 = vst.msk [vmem:[#allocation2] sm:$0xff] %vm535, %v4486
        %4489 = vst.msk [vmem:[#allocation2 + $0x8] sm:$0xff] %vm535, %v4487
        %p4490 = scmp.eq.s32.totalorder %s21, 1
        // Predicated region
        $region61: #{encoder_multiple_layers.1} parent=55 // pred_check
          %p4491 = pneg %p4490
        $region62: #{encoder_multiple_layers.1} parent=55 // pred_check_branch
          %4493 = sbr.rel (%p4491) target = $region64
        $region63: #{encoder_multiple_layers.1} parent=55 // pred_region
          %4494 = vst.msk [vmem:[#allocation3] sm:$0xff] %vm535, %v4486
          %4495 = vst.msk [vmem:[#allocation3 + $0x8] sm:$0xff] %vm535, %v4487
        $region64: #{encoder_multiple_layers.1} parent=55 // pred_fallthru
          _
        // Predicated region
        $region65: #{encoder_multiple_layers.1} parent=55 // pred_check
          %p4496 = pneg %p258
        $region66: #{encoder_multiple_layers.1} parent=55 // pred_check_branch
          %4498 = sbr.rel (%p4496) target = $region68
        $region67: #{encoder_multiple_layers.1} parent=55 // pred_region
          %s4500 = ssub.s32 256, 256
          %4501 = vsyncadd [#allocation4], %s4500
          %s4502 = sshll.u32 [#allocation3], 4
          %s4503 = int_to_ptr.vmem [resolvable:$true] %s4502
          %4508 = dma.vmem_to_hbm [thread:$0]  %s4503, 256, %s9, [#allocation4], 128, 128, 8
        $region68: #{encoder_multiple_layers.1} parent=55 // pred_fallthru
          _
        // Predicated region
        $region69: #{encoder_multiple_layers.1} parent=55 // pred_check
          %p4509 = pneg %p258
        $region70: #{encoder_multiple_layers.1} parent=55 // pred_check_branch
          %4511 = sbr.rel (%p4509) target = $region72
        $region71: #{encoder_multiple_layers.1} parent=55 // pred_region
          %4512 = dma.done [#allocation4], 256
        $region72: #{encoder_multiple_layers.1} parent=55 // pred_fallthru
          _
      $region56: #{encoder_multiple_layers.1} parent=5 // pred_fallthru
        _
      %p4513 = scmp.le.s32.totalorder 2, %s16
      // Predicated region
      $region73: #{encoder_multiple_layers.1} parent=5 // pred_check
        %p4514 = pneg %p4513
      $region74: #{encoder_multiple_layers.1} parent=5 // pred_check_branch
        %4516 = sbr.rel (%p4514) target = $region76
      $region75: #{encoder_multiple_layers.1} parent=5 // pred_region
        %s4517 = ssub.s32 %s16, 2
      $region76: #{encoder_multiple_layers.1} parent=5 // pred_fallthru
        _
    $region6: #{encoder_multiple_layers.1} parent=1 // loop_footer
      %s20 = sadd.s32 1, %s16
    $region7: #{encoder_multiple_layers.1} parent=1 // loop_footer_branch
      %15 = sbr.rel target = $region3
    $region8: #{encoder_multiple_layers.1} parent=1 // loop_exit
      _
    %4518 = vsyncpa [#allocation4], 1
    %s4519 = scalar_lea.sflag [#allocation4], 1
    %4520 = vsyncpa %s4519, 1

</llo_original>
